<compile_context>
chip_gen: v6e
topology: v6e:2x2x1
jax: 0.10.0
libtpu: 0.0.40
codegen_flags: <defaults>
</compile_context>

<pallas_src>
import functools

import jax
import jax.numpy as jnp
from jax import lax
from jax.experimental import pallas as pl
from jax.experimental.pallas import tpu as pltpu


# ---------------------------------------------------------------------------
# Pallas kernel: fused 2-layer LSTM over the full sequence (single grid step)
# ---------------------------------------------------------------------------
def _lstm_encoder_kernel(x_ref, wih0_ref, whh0_ref, b0_ref,
                         wih1_ref, whh1_ref, b1_ref,
                         out_ref, gx0_sc, *, seq_len, batch):
    f32 = jnp.float32
    bf16 = jnp.bfloat16
    D = whh0_ref.shape[0]
    T, B = seq_len, batch

    # ---- Layer 0: hoisted input projection over ALL timesteps (one big bf16 MXU matmul).
    gx0_sc[...] = (
        jnp.dot(x_ref[...], wih0_ref[...], preferred_element_type=f32)
        + b0_ref[...]
    )

    # Weights live in VMEM/vregs for the whole recurrence.
    # TODO(synk): drive the MXU explicitly (pltpu.matmul_push_rhs once before the loop +
    #             matmul_acc_lhs/matmul_pop per step) so W_hh stays stationary instead of
    #             being re-pushed for every M=8 step; kept on jnp.dot here for robustness.
    whh0 = whh0_ref[...]
    wih1 = wih1_ref[...]
    whh1 = whh1_ref[...]
    b1 = b1_ref[...]

    def cell(gates, c):
        # gates: (B, 4D) f32, gate layout [i | f | o | g].
        # sigmoid(x) = 0.5*(tanh(x/2)+1): single tanh EUP pass over the 3D-wide slab
        # instead of exp + reciprocal.
        ifo = 0.5 * jnp.tanh(0.5 * gates[:, :3 * D]) + 0.5
        g_g = jnp.tanh(gates[:, 3 * D:])
        i_g, f_g, o_g = ifo[:, :D], ifo[:, D:2 * D], ifo[:, 2 * D:]
        c_new = f_g * c + i_g * g_g
        h_new = o_g * jnp.tanh(c_new)
        return h_new, c_new

    def layer0_step(t, h0, c0):
        row = pl.multiple_of(t * B, B)
        gates = gx0_sc[pl.ds(row, B), :] + jnp.dot(
            h0.astype(bf16), whh0, preferred_element_type=f32)
        return cell(gates, c0)

    def layer1_step(t, h0_in, h1, c1):
        # Per-step input projection of layer-0 output; independent of layer-0's step t in
        # the same iteration, so it overlaps with it (wavefront).
        gates = (jnp.dot(h0_in.astype(bf16), wih1, preferred_element_type=f32)
                 + jnp.dot(h1.astype(bf16), whh1, preferred_element_type=f32)
                 + b1)
        h_new, c_new = cell(gates, c1)
        row = pl.multiple_of(t * B, B)
        out_ref[pl.ds(row, B), :] = h_new
        return h_new, c_new

    zeros = jnp.zeros((B, D), f32)

    # Prologue: layer-0 step 0.
    h0, c0 = layer0_step(0, zeros, zeros)

    # Wavefront: iteration t runs layer-1 step (t-1) on h0_{t-1} and layer-0 step t.
    # Both sub-steps depend only on the carry, so they form two independent chains.
    def body(t, carry):
        h0, c0, h1, c1 = carry
        h1n, c1n = layer1_step(t - 1, h0, h1, c1)
        h0n, c0n = layer0_step(t, h0, c0)
        return h0n, c0n, h1n, c1n

    unroll = True if T <= 16 else 4   # full unroll only pays off for short sequences
    h0, c0, h1, c1 = lax.fori_loop(1, T, body, (h0, c0, zeros, zeros),
                                   unroll=unroll)

    # Epilogue: layer-1 step T-1.
    layer1_step(T - 1, h0, h1, c1)


def lstm_encoder_pallas(x_tbd, params):
    """Fused 2-layer LSTM. x_tbd: (T, B, D) time-major f32, B a multiple of 8.

    Returns (T, B, D) float32 (layer-2 hidden states).
    """
    T, B, D = x_tbd.shape
    assert B % 8 == 0, "pad batch to a multiple of 8 before calling the kernel"
    x_flat = x_tbd.reshape(T * B, D).astype(jnp.bfloat16)   # time-major rows, bf16 operand
    as_bf16 = lambda a: a.astype(jnp.bfloat16)

    kernel = functools.partial(_lstm_encoder_kernel, seq_len=T, batch=B)
    full2d = lambda shape: pl.BlockSpec(shape, lambda i: (0, 0))

    out_flat = pl.pallas_call(
        kernel,
        out_shape=jax.ShapeDtypeStruct((T * B, D), jnp.float32),
        grid_spec=pltpu.PrefetchScalarGridSpec(
            num_scalar_prefetch=0,
            grid=(1,),
            in_specs=[
                full2d((T * B, D)),       # x (flattened time-major, bf16)
                full2d((D, 4 * D)),       # W_ih layer 0 (bf16)
                full2d((D, 4 * D)),       # W_hh layer 0 (bf16)
                full2d((1, 4 * D)),       # bias layer 0 (f32)
                full2d((D, 4 * D)),       # W_ih layer 1 (bf16)
                full2d((D, 4 * D)),       # W_hh layer 1 (bf16)
                full2d((1, 4 * D)),       # bias layer 1 (f32)
            ],
            out_specs=full2d((T * B, D)),
            # TODO(synk): at production T*B*4D sizes, chunk this scratch over time windows
            #             (double-buffered) and/or store it bf16 to stay under v7x 64 MiB VMEM.
            scratch_shapes=[
                pltpu.VMEM((T * B, 4 * D), jnp.float32),  # gx0: hoisted layer-0 input gates
            ],
        ),
        compiler_params=pltpu.CompilerParams(
            dimension_semantics=("arbitrary",),   # single sequential grid step
        ),
    )(x_flat,
      as_bf16(params["w_ih_0"]), as_bf16(params["w_hh_0"]), params["b_0"],
      as_bf16(params["w_ih_1"]), as_bf16(params["w_hh_1"]), params["b_1"])
    return out_flat.reshape(T, B, D)


# ---------------------------------------------------------------------------
# Full LSTM_Encoder forward (glue in plain JAX, recurrence in Pallas)
# ---------------------------------------------------------------------------
def lstm_encoder_forward(params, smiles_ids, properties):
    # Embedding lookup (gather) + seq-dim concat: glue, done in plain JAX.
    emb = jnp.take(params["embedding"], smiles_ids, axis=0)        # (B, S, D)
    x = jnp.concatenate([emb, properties], axis=1)                 # (B, T, D)
    B, T, D = x.shape

    x_tbd = jnp.transpose(x, (1, 0, 2))                            # (T, B, D) time-major
    # NOTE: padded rows are sliced off below and never feed reductions. For throughput,
    # batch more real sequences (MXU M up to ~128/256) before padding if the workload allows.
    b_pad = max(8, ((B + 7) // 8) * 8)
    if b_pad != B:
        x_tbd = jnp.pad(x_tbd, ((0, 0), (0, b_pad - B), (0, 0)))

    h = lstm_encoder_pallas(x_tbd, params)                         # (T, b_pad, D)
    # TODO(synk): inter-layer dropout (p=0.2) is train-only in PyTorch; eval semantics
    #             (no dropout) are implemented here.
    return jnp.transpose(h[:, :B, :], (1, 0, 2))                   # (B, T, D) batch_first


# ---------------------------------------------------------------------------
# Pure-JAX reference (lax.scan) — same bf16-operand / f32-accumulate recipe,
# same [i|f|o|g] gate layout, but independent sigmoid/structure.
# ---------------------------------------------------------------------------
def _lstm_layer_ref(x_tbd, w_ih, w_hh, b):
    T, B, D = x_tbd.shape
    w_ih_b = w_ih.astype(jnp.bfloat16)
    w_hh_b = w_hh.astype(jnp.bfloat16)

    def step(carry, x_t):
        h, c = carry
        gates = (jnp.dot(x_t.astype(jnp.bfloat16), w_ih_b,
                         preferred_element_type=jnp.float32)
                 + jnp.dot(h.astype(jnp.bfloat16), w_hh_b,
                           preferred_element_type=jnp.float32)
                 + b)
        i_g = jax.nn.sigmoid(gates[:, 0 * D:1 * D])
        f_g = jax.nn.sigmoid(gates[:, 1 * D:2 * D])
        o_g = jax.nn.sigmoid(gates[:, 2 * D:3 * D])
        g_g = jnp.tanh(gates[:, 3 * D:4 * D])
        c_new = f_g * c + i_g * g_g
        h_new = o_g * jnp.tanh(c_new)
        return (h_new, c_new), h_new

    init = (jnp.zeros((B, D), jnp.float32), jnp.zeros((B, D), jnp.float32))
    _, hs = lax.scan(step, init, x_tbd)
    return hs


def lstm_encoder_ref(params, smiles_ids, properties):
    emb = jnp.take(params["embedding"], smiles_ids, axis=0)
    x = jnp.concatenate([emb, properties], axis=1)
    h = jnp.transpose(x, (1, 0, 2))
    for layer in range(2):
        h = _lstm_layer_ref(h, params[f"w_ih_{layer}"],
                            params[f"w_hh_{layer}"], params[f"b_{layer}"])
    return jnp.transpose(h, (1, 0, 2))


# ---------------------------------------------------------------------------
# Deterministic parameter init (PyTorch-style uniform(-1/sqrt(H), 1/sqrt(H)))
# ---------------------------------------------------------------------------
def init_params(key, vocab_size, d_model):
    ks = jax.random.split(key, 16)
    bound = 1.0 / jnp.sqrt(d_model)
    params = {
        "embedding": jax.random.normal(ks[0], (vocab_size, d_model), jnp.float32),
    }
    for layer in range(2):
        k_wih, k_whh, k_bih, k_bhh = ks[1 + 4 * layer: 5 + 4 * layer]
        # Kernel layout: (D, 4D) with gate column order [i | f | o | g].
        params[f"w_ih_{layer}"] = jax.random.uniform(
            k_wih, (d_model, 4 * d_model), jnp.float32, -bound, bound)
        params[f"w_hh_{layer}"] = jax.random.uniform(
            k_whh, (d_model, 4 * d_model), jnp.float32, -bound, bound)
        b_ih = jax.random.uniform(k_bih, (4 * d_model,), jnp.float32, -bound, bound)
        b_hh = jax.random.uniform(k_bhh, (4 * d_model,), jnp.float32, -bound, bound)
        params[f"b_{layer}"] = (b_ih + b_hh).reshape(1, 4 * d_model)
    return params


if __name__ == "__main__":
    key = jax.random.PRNGKey(0)
    k_par, k_ids, k_prop = jax.random.split(key, 3)

    vocab_size = 40
    d_model = 128        # LSTM input_size == hidden_size == d_model
    B, S, P = 2, 8, 4    # batch, smiles seq len, number of property "tokens"

    params = init_params(k_par, vocab_size, d_model)
    smiles = jax.random.randint(k_ids, (B, S), 0, vocab_size)
    properties = jax.random.normal(k_prop, (B, P, d_model), jnp.float32)

    fwd = jax.jit(lstm_encoder_forward)
    out = fwd(params, smiles, properties)
    out = jax.block_until_ready(out)
    assert out.shape == (B, S + P, d_model), out.shape

    ref = lstm_encoder_ref(params, smiles, properties)
    # Tolerance reflects bf16 matmul operands (f32 accumulation) in both kernel and reference;
    # residual divergence comes only from rounding/order differences across the recurrence.
    max_diff = float(jnp.max(jnp.abs(out - ref)))
    assert jnp.allclose(out, ref, atol=1e-2, rtol=1e-2), max_diff

    print("KERNEL_OK")
</pallas_src>

<mosaic_0001>
module attributes {stable_mosaic.version = 11 : i64} {
  func.func @_lstm_encoder_kernel(%arg0: i32, %arg1: memref<96x128xbf16, #tpu.memory_space<vmem>>, %arg2: memref<128x512xbf16, #tpu.memory_space<vmem>>, %arg3: memref<128x512xbf16, #tpu.memory_space<vmem>>, %arg4: memref<1x512xf32, #tpu.memory_space<vmem>>, %arg5: memref<128x512xbf16, #tpu.memory_space<vmem>>, %arg6: memref<128x512xbf16, #tpu.memory_space<vmem>>, %arg7: memref<1x512xf32, #tpu.memory_space<vmem>>, %arg8: memref<96x128xf32, #tpu.memory_space<vmem>>, %arg9: memref<96x512xf32, #tpu.memory_space<vmem>>) attributes {dimension_semantics = [#tpu.dimension_semantics<arbitrary>], iteration_bounds = array<i64: 1>, scalar_prefetch = 0 : i64, scratch_operands = 1 : i64, tpu.core_type = #tpu.core_type<tc>, window_params = [{pipeline_mode = #tpu.pipeline_mode<synchronous>, transform_indices = @transform_0, window_bounds = array<i64: 96, 128>}, {pipeline_mode = #tpu.pipeline_mode<synchronous>, transform_indices = @transform_1, window_bounds = array<i64: 128, 512>}, {pipeline_mode = #tpu.pipeline_mode<synchronous>, transform_indices = @transform_2, window_bounds = array<i64: 128, 512>}, {pipeline_mode = #tpu.pipeline_mode<synchronous>, transform_indices = @transform_3, window_bounds = array<i64: 1, 512>}, {pipeline_mode = #tpu.pipeline_mode<synchronous>, transform_indices = @transform_4, window_bounds = array<i64: 128, 512>}, {pipeline_mode = #tpu.pipeline_mode<synchronous>, transform_indices = @transform_5, window_bounds = array<i64: 128, 512>}, {pipeline_mode = #tpu.pipeline_mode<synchronous>, transform_indices = @transform_6, window_bounds = array<i64: 1, 512>}, {pipeline_mode = #tpu.pipeline_mode<synchronous>, transform_indices = @transform_7, window_bounds = array<i64: 96, 128>}]} {
    %c0 = arith.constant 0 : index
    %c0_0 = arith.constant 0 : index
    %0 = vector.load %arg1[%c0, %c0_0] : memref<96x128xbf16, #tpu.memory_space<vmem>>, vector<96x128xbf16>
    %c0_1 = arith.constant 0 : index
    %c0_2 = arith.constant 0 : index
    %1 = vector.load %arg2[%c0_1, %c0_2] : memref<128x512xbf16, #tpu.memory_space<vmem>>, vector<128x512xbf16>
    %cst = arith.constant dense<0.000000e+00> : vector<96x512xf32>
    %2 = tpu.matmul %0, %1, %cst {dimension_numbers = #tpu.dot_dimension_numbers<[1], [0], [0], [1], [0, 0, 1, 1], [], []>} : vector<96x128xbf16>, vector<128x512xbf16>, vector<96x512xf32> -> vector<96x512xf32>
    %c0_3 = arith.constant 0 : index
    %c0_4 = arith.constant 0 : index
    %3 = vector.load %arg4[%c0_3, %c0_4] : memref<1x512xf32, #tpu.memory_space<vmem>>, vector<1x512xf32>
    %4 = vector.broadcast %3 : vector<1x512xf32> to vector<96x512xf32>
    %5 = arith.addf %2, %4 : vector<96x512xf32>
    %c0_5 = arith.constant 0 : index
    %c0_6 = arith.constant 0 : index
    %6 = vector.load %arg9[%c0_5, %c0_6] : memref<96x512xf32, #tpu.memory_space<vmem>>, vector<96x512xf32>
    tpu.vector_store %arg9[%c0_5, %c0_6], %5 {strides = array<i32>} : memref<96x512xf32, #tpu.memory_space<vmem>>, vector<96x512xf32>,
    %c0_7 = arith.constant 0 : index
    %c0_8 = arith.constant 0 : index
    %7 = vector.load %arg3[%c0_7, %c0_8] : memref<128x512xbf16, #tpu.memory_space<vmem>>, vector<128x512xbf16>
    %c0_9 = arith.constant 0 : index
    %c0_10 = arith.constant 0 : index
    %8 = vector.load %arg5[%c0_9, %c0_10] : memref<128x512xbf16, #tpu.memory_space<vmem>>, vector<128x512xbf16>
    %c0_11 = arith.constant 0 : index
    %c0_12 = arith.constant 0 : index
    %9 = vector.load %arg6[%c0_11, %c0_12] : memref<128x512xbf16, #tpu.memory_space<vmem>>, vector<128x512xbf16>
    %c0_13 = arith.constant 0 : index
    %c0_14 = arith.constant 0 : index
    %10 = vector.load %arg7[%c0_13, %c0_14] : memref<1x512xf32, #tpu.memory_space<vmem>>, vector<1x512xf32>
    %cst_15 = arith.constant 0.000000e+00 : f32
    %11 = vector.broadcast %cst_15 : f32 to vector<8x128xf32>
    %c0_i32 = arith.constant 0 : i32
    %12 = tpu.assume_multiple %c0_i32, 8 : i32
    %13 = arith.index_cast %12 : i32 to index
    %c0_16 = arith.constant 0 : index
    %14 = vector.load %arg9[%13, %c0_16] : memref<96x512xf32, #tpu.memory_space<vmem>>, vector<8x512xf32>
    %15 = arith.truncf %11 : vector<8x128xf32> to vector<8x128xbf16>
    %cst_17 = arith.constant dense<0.000000e+00> : vector<8x512xf32>
    %16 = tpu.matmul %15, %7, %cst_17 {dimension_numbers = #tpu.dot_dimension_numbers<[1], [0], [0], [1], [0, 0, 1, 1], [], []>} : vector<8x128xbf16>, vector<128x512xbf16>, vector<8x512xf32> -> vector<8x512xf32>
    %17 = arith.addf %14, %16 : vector<8x512xf32>
    %18 = vector.extract_strided_slice %17 {offsets = [0, 0], sizes = [8, 384], strides = [1, 1]} : vector<8x512xf32> to vector<8x384xf32>
    %cst_18 = arith.constant 5.000000e-01 : f32
    %19 = vector.broadcast %cst_18 : f32 to vector<8x384xf32>
    %20 = arith.mulf %19, %18 : vector<8x384xf32>
    %21 = math.tanh %20 : vector<8x384xf32>
    %cst_19 = arith.constant 5.000000e-01 : f32
    %22 = vector.broadcast %cst_19 : f32 to vector<8x384xf32>
    %23 = arith.mulf %22, %21 : vector<8x384xf32>
    %cst_20 = arith.constant 5.000000e-01 : f32
    %24 = vector.broadcast %cst_20 : f32 to vector<8x384xf32>
    %25 = arith.addf %23, %24 : vector<8x384xf32>
    %26 = vector.extract_strided_slice %17 {offsets = [0, 384], sizes = [8, 128], strides = [1, 1]} : vector<8x512xf32> to vector<8x128xf32>
    %27 = math.tanh %26 : vector<8x128xf32>
    %28 = vector.extract_strided_slice %25 {offsets = [0, 0], sizes = [8, 128], strides = [1, 1]} : vector<8x384xf32> to vector<8x128xf32>
    %29 = vector.extract_strided_slice %25 {offsets = [0, 128], sizes = [8, 128], strides = [1, 1]} : vector<8x384xf32> to vector<8x128xf32>
    %30 = vector.extract_strided_slice %25 {offsets = [0, 256], sizes = [8, 128], strides = [1, 1]} : vector<8x384xf32> to vector<8x128xf32>
    %31 = arith.mulf %29, %11 : vector<8x128xf32>
    %32 = arith.mulf %28, %27 : vector<8x128xf32>
    %33 = arith.addf %31, %32 : vector<8x128xf32>
    %34 = math.tanh %33 : vector<8x128xf32>
    %35 = arith.mulf %30, %34 : vector<8x128xf32>
    %c1_i32 = arith.constant 1 : i32
    %c1_i32_21 = arith.constant 1 : i32
    %36 = arith.subi %c1_i32, %c1_i32_21 : i32
    %37 = arith.truncf %35 : vector<8x128xf32> to vector<8x128xbf16>
    %cst_22 = arith.constant dense<0.000000e+00> : vector<8x512xf32>
    %38 = tpu.matmul %37, %8, %cst_22 {dimension_numbers = #tpu.dot_dimension_numbers<[1], [0], [0], [1], [0, 0, 1, 1], [], []>} : vector<8x128xbf16>, vector<128x512xbf16>, vector<8x512xf32> -> vector<8x512xf32>
    %39 = arith.truncf %11 : vector<8x128xf32> to vector<8x128xbf16>
    %cst_23 = arith.constant dense<0.000000e+00> : vector<8x512xf32>
    %40 = tpu.matmul %39, %9, %cst_23 {dimension_numbers = #tpu.dot_dimension_numbers<[1], [0], [0], [1], [0, 0, 1, 1], [], []>} : vector<8x128xbf16>, vector<128x512xbf16>, vector<8x512xf32> -> vector<8x512xf32>
    %41 = arith.addf %38, %40 : vector<8x512xf32>
    %42 = vector.broadcast %10 : vector<1x512xf32> to vector<8x512xf32>
    %43 = arith.addf %41, %42 : vector<8x512xf32>
    %44 = vector.extract_strided_slice %43 {offsets = [0, 0], sizes = [8, 384], strides = [1, 1]} : vector<8x512xf32> to vector<8x384xf32>
    %cst_24 = arith.constant 5.000000e-01 : f32
    %45 = vector.broadcast %cst_24 : f32 to vector<8x384xf32>
    %46 = arith.mulf %45, %44 : vector<8x384xf32>
    %47 = math.tanh %46 : vector<8x384xf32>
    %cst_25 = arith.constant 5.000000e-01 : f32
    %48 = vector.broadcast %cst_25 : f32 to vector<8x384xf32>
    %49 = arith.mulf %48, %47 : vector<8x384xf32>
    %cst_26 = arith.constant 5.000000e-01 : f32
    %50 = vector.broadcast %cst_26 : f32 to vector<8x384xf32>
    %51 = arith.addf %49, %50 : vector<8x384xf32>
    %52 = vector.extract_strided_slice %43 {offsets = [0, 384], sizes = [8, 128], strides = [1, 1]} : vector<8x512xf32> to vector<8x128xf32>
    %53 = math.tanh %52 : vector<8x128xf32>
    %54 = vector.extract_strided_slice %51 {offsets = [0, 0], sizes = [8, 128], strides = [1, 1]} : vector<8x384xf32> to vector<8x128xf32>
    %55 = vector.extract_strided_slice %51 {offsets = [0, 128], sizes = [8, 128], strides = [1, 1]} : vector<8x384xf32> to vector<8x128xf32>
    %56 = vector.extract_strided_slice %51 {offsets = [0, 256], sizes = [8, 128], strides = [1, 1]} : vector<8x384xf32> to vector<8x128xf32>
    %57 = arith.mulf %55, %11 : vector<8x128xf32>
    %58 = arith.mulf %54, %53 : vector<8x128xf32>
    %59 = arith.addf %57, %58 : vector<8x128xf32>
    %60 = math.tanh %59 : vector<8x128xf32>
    %61 = arith.mulf %56, %60 : vector<8x128xf32>
    %c8_i32 = arith.constant 8 : i32
    %62 = arith.muli %36, %c8_i32 : i32
    %63 = tpu.assume_multiple %62, 8 : i32
    %64 = arith.index_cast %63 : i32 to index
    %c0_27 = arith.constant 0 : index
    %65 = vector.load %arg8[%64, %c0_27] : memref<96x128xf32, #tpu.memory_space<vmem>>, vector<8x128xf32>
    tpu.vector_store %arg8[%64, %c0_27], %61 {strides = array<i32>} : memref<96x128xf32, #tpu.memory_space<vmem>>, vector<8x128xf32>,
    %c8_i32_28 = arith.constant 8 : i32
    %66 = arith.muli %c1_i32, %c8_i32_28 : i32
    %67 = tpu.assume_multiple %66, 8 : i32
    %68 = arith.index_cast %67 : i32 to index
    %c0_29 = arith.constant 0 : index
    %69 = vector.load %arg9[%68, %c0_29] : memref<96x512xf32, #tpu.memory_space<vmem>>, vector<8x512xf32>
    %70 = arith.truncf %35 : vector<8x128xf32> to vector<8x128xbf16>
    %cst_30 = arith.constant dense<0.000000e+00> : vector<8x512xf32>
    %71 = tpu.matmul %70, %7, %cst_30 {dimension_numbers = #tpu.dot_dimension_numbers<[1], [0], [0], [1], [0, 0, 1, 1], [], []>} : vector<8x128xbf16>, vector<128x512xbf16>, vector<8x512xf32> -> vector<8x512xf32>
    %72 = arith.addf %69, %71 : vector<8x512xf32>
    %73 = vector.extract_strided_slice %72 {offsets = [0, 0], sizes = [8, 384], strides = [1, 1]} : vector<8x512xf32> to vector<8x384xf32>
    %cst_31 = arith.constant 5.000000e-01 : f32
    %74 = vector.broadcast %cst_31 : f32 to vector<8x384xf32>
    %75 = arith.mulf %74, %73 : vector<8x384xf32>
    %76 = math.tanh %75 : vector<8x384xf32>
    %cst_32 = arith.constant 5.000000e-01 : f32
    %77 = vector.broadcast %cst_32 : f32 to vector<8x384xf32>
    %78 = arith.mulf %77, %76 : vector<8x384xf32>
    %cst_33 = arith.constant 5.000000e-01 : f32
    %79 = vector.broadcast %cst_33 : f32 to vector<8x384xf32>
    %80 = arith.addf %78, %79 : vector<8x384xf32>
    %81 = vector.extract_strided_slice %72 {offsets = [0, 384], sizes = [8, 128], strides = [1, 1]} : vector<8x512xf32> to vector<8x128xf32>
    %82 = math.tanh %81 : vector<8x128xf32>
    %83 = vector.extract_strided_slice %80 {offsets = [0, 0], sizes = [8, 128], strides = [1, 1]} : vector<8x384xf32> to vector<8x128xf32>
    %84 = vector.extract_strided_slice %80 {offsets = [0, 128], sizes = [8, 128], strides = [1, 1]} : vector<8x384xf32> to vector<8x128xf32>
    %85 = vector.extract_strided_slice %80 {offsets = [0, 256], sizes = [8, 128], strides = [1, 1]} : vector<8x384xf32> to vector<8x128xf32>
    %86 = arith.mulf %84, %33 : vector<8x128xf32>
    %87 = arith.mulf %83, %82 : vector<8x128xf32>
    %88 = arith.addf %86, %87 : vector<8x128xf32>
    %89 = math.tanh %88 : vector<8x128xf32>
    %90 = arith.mulf %85, %89 : vector<8x128xf32>
    %c2_i32 = arith.constant 2 : i32
    %c1_i32_34 = arith.constant 1 : i32
    %91 = arith.subi %c2_i32, %c1_i32_34 : i32
    %92 = arith.truncf %90 : vector<8x128xf32> to vector<8x128xbf16>
    %cst_35 = arith.constant dense<0.000000e+00> : vector<8x512xf32>
    %93 = tpu.matmul %92, %8, %cst_35 {dimension_numbers = #tpu.dot_dimension_numbers<[1], [0], [0], [1], [0, 0, 1, 1], [], []>} : vector<8x128xbf16>, vector<128x512xbf16>, vector<8x512xf32> -> vector<8x512xf32>
    %94 = arith.truncf %61 : vector<8x128xf32> to vector<8x128xbf16>
    %cst_36 = arith.constant dense<0.000000e+00> : vector<8x512xf32>
    %95 = tpu.matmul %94, %9, %cst_36 {dimension_numbers = #tpu.dot_dimension_numbers<[1], [0], [0], [1], [0, 0, 1, 1], [], []>} : vector<8x128xbf16>, vector<128x512xbf16>, vector<8x512xf32> -> vector<8x512xf32>
    %96 = arith.addf %93, %95 : vector<8x512xf32>
    %97 = vector.broadcast %10 : vector<1x512xf32> to vector<8x512xf32>
    %98 = arith.addf %96, %97 : vector<8x512xf32>
    %99 = vector.extract_strided_slice %98 {offsets = [0, 0], sizes = [8, 384], strides = [1, 1]} : vector<8x512xf32> to vector<8x384xf32>
    %cst_37 = arith.constant 5.000000e-01 : f32
    %100 = vector.broadcast %cst_37 : f32 to vector<8x384xf32>
    %101 = arith.mulf %100, %99 : vector<8x384xf32>
    %102 = math.tanh %101 : vector<8x384xf32>
    %cst_38 = arith.constant 5.000000e-01 : f32
    %103 = vector.broadcast %cst_38 : f32 to vector<8x384xf32>
    %104 = arith.mulf %103, %102 : vector<8x384xf32>
    %cst_39 = arith.constant 5.000000e-01 : f32
    %105 = vector.broadcast %cst_39 : f32 to vector<8x384xf32>
    %106 = arith.addf %104, %105 : vector<8x384xf32>
    %107 = vector.extract_strided_slice %98 {offsets = [0, 384], sizes = [8, 128], strides = [1, 1]} : vector<8x512xf32> to vector<8x128xf32>
    %108 = math.tanh %107 : vector<8x128xf32>
    %109 = vector.extract_strided_slice %106 {offsets = [0, 0], sizes = [8, 128], strides = [1, 1]} : vector<8x384xf32> to vector<8x128xf32>
    %110 = vector.extract_strided_slice %106 {offsets = [0, 128], sizes = [8, 128], strides = [1, 1]} : vector<8x384xf32> to vector<8x128xf32>
    %111 = vector.extract_strided_slice %106 {offsets = [0, 256], sizes = [8, 128], strides = [1, 1]} : vector<8x384xf32> to vector<8x128xf32>
    %112 = arith.mulf %110, %59 : vector<8x128xf32>
    %113 = arith.mulf %109, %108 : vector<8x128xf32>
    %114 = arith.addf %112, %113 : vector<8x128xf32>
    %115 = math.tanh %114 : vector<8x128xf32>
    %116 = arith.mulf %111, %115 : vector<8x128xf32>
    %c8_i32_40 = arith.constant 8 : i32
    %117 = arith.muli %91, %c8_i32_40 : i32
    %118 = tpu.assume_multiple %117, 8 : i32
    %119 = arith.index_cast %118 : i32 to index
    %c0_41 = arith.constant 0 : index
    %120 = vector.load %arg8[%119, %c0_41] : memref<96x128xf32, #tpu.memory_space<vmem>>, vector<8x128xf32>
    tpu.vector_store %arg8[%119, %c0_41], %116 {strides = array<i32>} : memref<96x128xf32, #tpu.memory_space<vmem>>, vector<8x128xf32>,
    %c8_i32_42 = arith.constant 8 : i32
    %121 = arith.muli %c2_i32, %c8_i32_42 : i32
    %122 = tpu.assume_multiple %121, 8 : i32
    %123 = arith.index_cast %122 : i32 to index
    %c0_43 = arith.constant 0 : index
    %124 = vector.load %arg9[%123, %c0_43] : memref<96x512xf32, #tpu.memory_space<vmem>>, vector<8x512xf32>
    %125 = arith.truncf %90 : vector<8x128xf32> to vector<8x128xbf16>
    %cst_44 = arith.constant dense<0.000000e+00> : vector<8x512xf32>
    %126 = tpu.matmul %125, %7, %cst_44 {dimension_numbers = #tpu.dot_dimension_numbers<[1], [0], [0], [1], [0, 0, 1, 1], [], []>} : vector<8x128xbf16>, vector<128x512xbf16>, vector<8x512xf32> -> vector<8x512xf32>
    %127 = arith.addf %124, %126 : vector<8x512xf32>
    %128 = vector.extract_strided_slice %127 {offsets = [0, 0], sizes = [8, 384], strides = [1, 1]} : vector<8x512xf32> to vector<8x384xf32>
    %cst_45 = arith.constant 5.000000e-01 : f32
    %129 = vector.broadcast %cst_45 : f32 to vector<8x384xf32>
    %130 = arith.mulf %129, %128 : vector<8x384xf32>
    %131 = math.tanh %130 : vector<8x384xf32>
    %cst_46 = arith.constant 5.000000e-01 : f32
    %132 = vector.broadcast %cst_46 : f32 to vector<8x384xf32>
    %133 = arith.mulf %132, %131 : vector<8x384xf32>
    %cst_47 = arith.constant 5.000000e-01 : f32
    %134 = vector.broadcast %cst_47 : f32 to vector<8x384xf32>
    %135 = arith.addf %133, %134 : vector<8x384xf32>
    %136 = vector.extract_strided_slice %127 {offsets = [0, 384], sizes = [8, 128], strides = [1, 1]} : vector<8x512xf32> to vector<8x128xf32>
    %137 = math.tanh %136 : vector<8x128xf32>
    %138 = vector.extract_strided_slice %135 {offsets = [0, 0], sizes = [8, 128], strides = [1, 1]} : vector<8x384xf32> to vector<8x128xf32>
    %139 = vector.extract_strided_slice %135 {offsets = [0, 128], sizes = [8, 128], strides = [1, 1]} : vector<8x384xf32> to vector<8x128xf32>
    %140 = vector.extract_strided_slice %135 {offsets = [0, 256], sizes = [8, 128], strides = [1, 1]} : vector<8x384xf32> to vector<8x128xf32>
    %141 = arith.mulf %139, %88 : vector<8x128xf32>
    %142 = arith.mulf %138, %137 : vector<8x128xf32>
    %143 = arith.addf %141, %142 : vector<8x128xf32>
    %144 = math.tanh %143 : vector<8x128xf32>
    %145 = arith.mulf %140, %144 : vector<8x128xf32>
    %c3_i32 = arith.constant 3 : i32
    %c1_i32_48 = arith.constant 1 : i32
    %146 = arith.subi %c3_i32, %c1_i32_48 : i32
    %147 = arith.truncf %145 : vector<8x128xf32> to vector<8x128xbf16>
    %cst_49 = arith.constant dense<0.000000e+00> : vector<8x512xf32>
    %148 = tpu.matmul %147, %8, %cst_49 {dimension_numbers = #tpu.dot_dimension_numbers<[1], [0], [0], [1], [0, 0, 1, 1], [], []>} : vector<8x128xbf16>, vector<128x512xbf16>, vector<8x512xf32> -> vector<8x512xf32>
    %149 = arith.truncf %116 : vector<8x128xf32> to vector<8x128xbf16>
    %cst_50 = arith.constant dense<0.000000e+00> : vector<8x512xf32>
    %150 = tpu.matmul %149, %9, %cst_50 {dimension_numbers = #tpu.dot_dimension_numbers<[1], [0], [0], [1], [0, 0, 1, 1], [], []>} : vector<8x128xbf16>, vector<128x512xbf16>, vector<8x512xf32> -> vector<8x512xf32>
    %151 = arith.addf %148, %150 : vector<8x512xf32>
    %152 = vector.broadcast %10 : vector<1x512xf32> to vector<8x512xf32>
    %153 = arith.addf %151, %152 : vector<8x512xf32>
    %154 = vector.extract_strided_slice %153 {offsets = [0, 0], sizes = [8, 384], strides = [1, 1]} : vector<8x512xf32> to vector<8x384xf32>
    %cst_51 = arith.constant 5.000000e-01 : f32
    %155 = vector.broadcast %cst_51 : f32 to vector<8x384xf32>
    %156 = arith.mulf %155, %154 : vector<8x384xf32>
    %157 = math.tanh %156 : vector<8x384xf32>
    %cst_52 = arith.constant 5.000000e-01 : f32
    %158 = vector.broadcast %cst_52 : f32 to vector<8x384xf32>
    %159 = arith.mulf %158, %157 : vector<8x384xf32>
    %cst_53 = arith.constant 5.000000e-01 : f32
    %160 = vector.broadcast %cst_53 : f32 to vector<8x384xf32>
    %161 = arith.addf %159, %160 : vector<8x384xf32>
    %162 = vector.extract_strided_slice %153 {offsets = [0, 384], sizes = [8, 128], strides = [1, 1]} : vector<8x512xf32> to vector<8x128xf32>
    %163 = math.tanh %162 : vector<8x128xf32>
    %164 = vector.extract_strided_slice %161 {offsets = [0, 0], sizes = [8, 128], strides = [1, 1]} : vector<8x384xf32> to vector<8x128xf32>
    %165 = vector.extract_strided_slice %161 {offsets = [0, 128], sizes = [8, 128], strides = [1, 1]} : vector<8x384xf32> to vector<8x128xf32>
    %166 = vector.extract_strided_slice %161 {offsets = [0, 256], sizes = [8, 128], strides = [1, 1]} : vector<8x384xf32> to vector<8x128xf32>
    %167 = arith.mulf %165, %114 : vector<8x128xf32>
    %168 = arith.mulf %164, %163 : vector<8x128xf32>
    %169 = arith.addf %167, %168 : vector<8x128xf32>
    %170 = math.tanh %169 : vector<8x128xf32>
    %171 = arith.mulf %166, %170 : vector<8x128xf32>
    %c8_i32_54 = arith.constant 8 : i32
    %172 = arith.muli %146, %c8_i32_54 : i32
    %173 = tpu.assume_multiple %172, 8 : i32
    %174 = arith.index_cast %173 : i32 to index
    %c0_55 = arith.constant 0 : index
    %175 = vector.load %arg8[%174, %c0_55] : memref<96x128xf32, #tpu.memory_space<vmem>>, vector<8x128xf32>
    tpu.vector_store %arg8[%174, %c0_55], %171 {strides = array<i32>} : memref<96x128xf32, #tpu.memory_space<vmem>>, vector<8x128xf32>,
    %c8_i32_56 = arith.constant 8 : i32
    %176 = arith.muli %c3_i32, %c8_i32_56 : i32
    %177 = tpu.assume_multiple %176, 8 : i32
    %178 = arith.index_cast %177 : i32 to index
    %c0_57 = arith.constant 0 : index
    %179 = vector.load %arg9[%178, %c0_57] : memref<96x512xf32, #tpu.memory_space<vmem>>, vector<8x512xf32>
    %180 = arith.truncf %145 : vector<8x128xf32> to vector<8x128xbf16>
    %cst_58 = arith.constant dense<0.000000e+00> : vector<8x512xf32>
    %181 = tpu.matmul %180, %7, %cst_58 {dimension_numbers = #tpu.dot_dimension_numbers<[1], [0], [0], [1], [0, 0, 1, 1], [], []>} : vector<8x128xbf16>, vector<128x512xbf16>, vector<8x512xf32> -> vector<8x512xf32>
    %182 = arith.addf %179, %181 : vector<8x512xf32>
    %183 = vector.extract_strided_slice %182 {offsets = [0, 0], sizes = [8, 384], strides = [1, 1]} : vector<8x512xf32> to vector<8x384xf32>
    %cst_59 = arith.constant 5.000000e-01 : f32
    %184 = vector.broadcast %cst_59 : f32 to vector<8x384xf32>
    %185 = arith.mulf %184, %183 : vector<8x384xf32>
    %186 = math.tanh %185 : vector<8x384xf32>
    %cst_60 = arith.constant 5.000000e-01 : f32
    %187 = vector.broadcast %cst_60 : f32 to vector<8x384xf32>
    %188 = arith.mulf %187, %186 : vector<8x384xf32>
    %cst_61 = arith.constant 5.000000e-01 : f32
    %189 = vector.broadcast %cst_61 : f32 to vector<8x384xf32>
    %190 = arith.addf %188, %189 : vector<8x384xf32>
    %191 = vector.extract_strided_slice %182 {offsets = [0, 384], sizes = [8, 128], strides = [1, 1]} : vector<8x512xf32> to vector<8x128xf32>
    %192 = math.tanh %191 : vector<8x128xf32>
    %193 = vector.extract_strided_slice %190 {offsets = [0, 0], sizes = [8, 128], strides = [1, 1]} : vector<8x384xf32> to vector<8x128xf32>
    %194 = vector.extract_strided_slice %190 {offsets = [0, 128], sizes = [8, 128], strides = [1, 1]} : vector<8x384xf32> to vector<8x128xf32>
    %195 = vector.extract_strided_slice %190 {offsets = [0, 256], sizes = [8, 128], strides = [1, 1]} : vector<8x384xf32> to vector<8x128xf32>
    %196 = arith.mulf %194, %143 : vector<8x128xf32>
    %197 = arith.mulf %193, %192 : vector<8x128xf32>
    %198 = arith.addf %196, %197 : vector<8x128xf32>
    %199 = math.tanh %198 : vector<8x128xf32>
    %200 = arith.mulf %195, %199 : vector<8x128xf32>
    %c4_i32 = arith.constant 4 : i32
    %c1_i32_62 = arith.constant 1 : i32
    %201 = arith.subi %c4_i32, %c1_i32_62 : i32
    %202 = arith.truncf %200 : vector<8x128xf32> to vector<8x128xbf16>
    %cst_63 = arith.constant dense<0.000000e+00> : vector<8x512xf32>
    %203 = tpu.matmul %202, %8, %cst_63 {dimension_numbers = #tpu.dot_dimension_numbers<[1], [0], [0], [1], [0, 0, 1, 1], [], []>} : vector<8x128xbf16>, vector<128x512xbf16>, vector<8x512xf32> -> vector<8x512xf32>
    %204 = arith.truncf %171 : vector<8x128xf32> to vector<8x128xbf16>
    %cst_64 = arith.constant dense<0.000000e+00> : vector<8x512xf32>
    %205 = tpu.matmul %204, %9, %cst_64 {dimension_numbers = #tpu.dot_dimension_numbers<[1], [0], [0], [1], [0, 0, 1, 1], [], []>} : vector<8x128xbf16>, vector<128x512xbf16>, vector<8x512xf32> -> vector<8x512xf32>
    %206 = arith.addf %203, %205 : vector<8x512xf32>
    %207 = vector.broadcast %10 : vector<1x512xf32> to vector<8x512xf32>
    %208 = arith.addf %206, %207 : vector<8x512xf32>
    %209 = vector.extract_strided_slice %208 {offsets = [0, 0], sizes = [8, 384], strides = [1, 1]} : vector<8x512xf32> to vector<8x384xf32>
    %cst_65 = arith.constant 5.000000e-01 : f32
    %210 = vector.broadcast %cst_65 : f32 to vector<8x384xf32>
    %211 = arith.mulf %210, %209 : vector<8x384xf32>
    %212 = math.tanh %211 : vector<8x384xf32>
    %cst_66 = arith.constant 5.000000e-01 : f32
    %213 = vector.broadcast %cst_66 : f32 to vector<8x384xf32>
    %214 = arith.mulf %213, %212 : vector<8x384xf32>
    %cst_67 = arith.constant 5.000000e-01 : f32
    %215 = vector.broadcast %cst_67 : f32 to vector<8x384xf32>
    %216 = arith.addf %214, %215 : vector<8x384xf32>
    %217 = vector.extract_strided_slice %208 {offsets = [0, 384], sizes = [8, 128], strides = [1, 1]} : vector<8x512xf32> to vector<8x128xf32>
    %218 = math.tanh %217 : vector<8x128xf32>
    %219 = vector.extract_strided_slice %216 {offsets = [0, 0], sizes = [8, 128], strides = [1, 1]} : vector<8x384xf32> to vector<8x128xf32>
    %220 = vector.extract_strided_slice %216 {offsets = [0, 128], sizes = [8, 128], strides = [1, 1]} : vector<8x384xf32> to vector<8x128xf32>
    %221 = vector.extract_strided_slice %216 {offsets = [0, 256], sizes = [8, 128], strides = [1, 1]} : vector<8x384xf32> to vector<8x128xf32>
    %222 = arith.mulf %220, %169 : vector<8x128xf32>
    %223 = arith.mulf %219, %218 : vector<8x128xf32>
    %224 = arith.addf %222, %223 : vector<8x128xf32>
    %225 = math.tanh %224 : vector<8x128xf32>
    %226 = arith.mulf %221, %225 : vector<8x128xf32>
    %c8_i32_68 = arith.constant 8 : i32
    %227 = arith.muli %201, %c8_i32_68 : i32
    %228 = tpu.assume_multiple %227, 8 : i32
    %229 = arith.index_cast %228 : i32 to index
    %c0_69 = arith.constant 0 : index
    %230 = vector.load %arg8[%229, %c0_69] : memref<96x128xf32, #tpu.memory_space<vmem>>, vector<8x128xf32>
    tpu.vector_store %arg8[%229, %c0_69], %226 {strides = array<i32>} : memref<96x128xf32, #tpu.memory_space<vmem>>, vector<8x128xf32>,
    %c8_i32_70 = arith.constant 8 : i32
    %231 = arith.muli %c4_i32, %c8_i32_70 : i32
    %232 = tpu.assume_multiple %231, 8 : i32
    %233 = arith.index_cast %232 : i32 to index
    %c0_71 = arith.constant 0 : index
    %234 = vector.load %arg9[%233, %c0_71] : memref<96x512xf32, #tpu.memory_space<vmem>>, vector<8x512xf32>
    %235 = arith.truncf %200 : vector<8x128xf32> to vector<8x128xbf16>
    %cst_72 = arith.constant dense<0.000000e+00> : vector<8x512xf32>
    %236 = tpu.matmul %235, %7, %cst_72 {dimension_numbers = #tpu.dot_dimension_numbers<[1], [0], [0], [1], [0, 0, 1, 1], [], []>} : vector<8x128xbf16>, vector<128x512xbf16>, vector<8x512xf32> -> vector<8x512xf32>
    %237 = arith.addf %234, %236 : vector<8x512xf32>
    %238 = vector.extract_strided_slice %237 {offsets = [0, 0], sizes = [8, 384], strides = [1, 1]} : vector<8x512xf32> to vector<8x384xf32>
    %cst_73 = arith.constant 5.000000e-01 : f32
    %239 = vector.broadcast %cst_73 : f32 to vector<8x384xf32>
    %240 = arith.mulf %239, %238 : vector<8x384xf32>
    %241 = math.tanh %240 : vector<8x384xf32>
    %cst_74 = arith.constant 5.000000e-01 : f32
    %242 = vector.broadcast %cst_74 : f32 to vector<8x384xf32>
    %243 = arith.mulf %242, %241 : vector<8x384xf32>
    %cst_75 = arith.constant 5.000000e-01 : f32
    %244 = vector.broadcast %cst_75 : f32 to vector<8x384xf32>
    %245 = arith.addf %243, %244 : vector<8x384xf32>
    %246 = vector.extract_strided_slice %237 {offsets = [0, 384], sizes = [8, 128], strides = [1, 1]} : vector<8x512xf32> to vector<8x128xf32>
    %247 = math.tanh %246 : vector<8x128xf32>
    %248 = vector.extract_strided_slice %245 {offsets = [0, 0], sizes = [8, 128], strides = [1, 1]} : vector<8x384xf32> to vector<8x128xf32>
    %249 = vector.extract_strided_slice %245 {offsets = [0, 128], sizes = [8, 128], strides = [1, 1]} : vector<8x384xf32> to vector<8x128xf32>
    %250 = vector.extract_strided_slice %245 {offsets = [0, 256], sizes = [8, 128], strides = [1, 1]} : vector<8x384xf32> to vector<8x128xf32>
    %251 = arith.mulf %249, %198 : vector<8x128xf32>
    %252 = arith.mulf %248, %247 : vector<8x128xf32>
    %253 = arith.addf %251, %252 : vector<8x128xf32>
    %254 = math.tanh %253 : vector<8x128xf32>
    %255 = arith.mulf %250, %254 : vector<8x128xf32>
    %c5_i32 = arith.constant 5 : i32
    %c1_i32_76 = arith.constant 1 : i32
    %256 = arith.subi %c5_i32, %c1_i32_76 : i32
    %257 = arith.truncf %255 : vector<8x128xf32> to vector<8x128xbf16>
    %cst_77 = arith.constant dense<0.000000e+00> : vector<8x512xf32>
    %258 = tpu.matmul %257, %8, %cst_77 {dimension_numbers = #tpu.dot_dimension_numbers<[1], [0], [0], [1], [0, 0, 1, 1], [], []>} : vector<8x128xbf16>, vector<128x512xbf16>, vector<8x512xf32> -> vector<8x512xf32>
    %259 = arith.truncf %226 : vector<8x128xf32> to vector<8x128xbf16>
    %cst_78 = arith.constant dense<0.000000e+00> : vector<8x512xf32>
    %260 = tpu.matmul %259, %9, %cst_78 {dimension_numbers = #tpu.dot_dimension_numbers<[1], [0], [0], [1], [0, 0, 1, 1], [], []>} : vector<8x128xbf16>, vector<128x512xbf16>, vector<8x512xf32> -> vector<8x512xf32>
    %261 = arith.addf %258, %260 : vector<8x512xf32>
    %262 = vector.broadcast %10 : vector<1x512xf32> to vector<8x512xf32>
    %263 = arith.addf %261, %262 : vector<8x512xf32>
    %264 = vector.extract_strided_slice %263 {offsets = [0, 0], sizes = [8, 384], strides = [1, 1]} : vector<8x512xf32> to vector<8x384xf32>
    %cst_79 = arith.constant 5.000000e-01 : f32
    %265 = vector.broadcast %cst_79 : f32 to vector<8x384xf32>
    %266 = arith.mulf %265, %264 : vector<8x384xf32>
    %267 = math.tanh %266 : vector<8x384xf32>
    %cst_80 = arith.constant 5.000000e-01 : f32
    %268 = vector.broadcast %cst_80 : f32 to vector<8x384xf32>
    %269 = arith.mulf %268, %267 : vector<8x384xf32>
    %cst_81 = arith.constant 5.000000e-01 : f32
    %270 = vector.broadcast %cst_81 : f32 to vector<8x384xf32>
    %271 = arith.addf %269, %270 : vector<8x384xf32>
    %272 = vector.extract_strided_slice %263 {offsets = [0, 384], sizes = [8, 128], strides = [1, 1]} : vector<8x512xf32> to vector<8x128xf32>
    %273 = math.tanh %272 : vector<8x128xf32>
    %274 = vector.extract_strided_slice %271 {offsets = [0, 0], sizes = [8, 128], strides = [1, 1]} : vector<8x384xf32> to vector<8x128xf32>
    %275 = vector.extract_strided_slice %271 {offsets = [0, 128], sizes = [8, 128], strides = [1, 1]} : vector<8x384xf32> to vector<8x128xf32>
    %276 = vector.extract_strided_slice %271 {offsets = [0, 256], sizes = [8, 128], strides = [1, 1]} : vector<8x384xf32> to vector<8x128xf32>
    %277 = arith.mulf %275, %224 : vector<8x128xf32>
    %278 = arith.mulf %274, %273 : vector<8x128xf32>
    %279 = arith.addf %277, %278 : vector<8x128xf32>
    %280 = math.tanh %279 : vector<8x128xf32>
    %281 = arith.mulf %276, %280 : vector<8x128xf32>
    %c8_i32_82 = arith.constant 8 : i32
    %282 = arith.muli %256, %c8_i32_82 : i32
    %283 = tpu.assume_multiple %282, 8 : i32
    %284 = arith.index_cast %283 : i32 to index
    %c0_83 = arith.constant 0 : index
    %285 = vector.load %arg8[%284, %c0_83] : memref<96x128xf32, #tpu.memory_space<vmem>>, vector<8x128xf32>
    tpu.vector_store %arg8[%284, %c0_83], %281 {strides = array<i32>} : memref<96x128xf32, #tpu.memory_space<vmem>>, vector<8x128xf32>,
    %c8_i32_84 = arith.constant 8 : i32
    %286 = arith.muli %c5_i32, %c8_i32_84 : i32
    %287 = tpu.assume_multiple %286, 8 : i32
    %288 = arith.index_cast %287 : i32 to index
    %c0_85 = arith.constant 0 : index
    %289 = vector.load %arg9[%288, %c0_85] : memref<96x512xf32, #tpu.memory_space<vmem>>, vector<8x512xf32>
    %290 = arith.truncf %255 : vector<8x128xf32> to vector<8x128xbf16>
    %cst_86 = arith.constant dense<0.000000e+00> : vector<8x512xf32>
    %291 = tpu.matmul %290, %7, %cst_86 {dimension_numbers = #tpu.dot_dimension_numbers<[1], [0], [0], [1], [0, 0, 1, 1], [], []>} : vector<8x128xbf16>, vector<128x512xbf16>, vector<8x512xf32> -> vector<8x512xf32>
    %292 = arith.addf %289, %291 : vector<8x512xf32>
    %293 = vector.extract_strided_slice %292 {offsets = [0, 0], sizes = [8, 384], strides = [1, 1]} : vector<8x512xf32> to vector<8x384xf32>
    %cst_87 = arith.constant 5.000000e-01 : f32
    %294 = vector.broadcast %cst_87 : f32 to vector<8x384xf32>
    %295 = arith.mulf %294, %293 : vector<8x384xf32>
    %296 = math.tanh %295 : vector<8x384xf32>
    %cst_88 = arith.constant 5.000000e-01 : f32
    %297 = vector.broadcast %cst_88 : f32 to vector<8x384xf32>
    %298 = arith.mulf %297, %296 : vector<8x384xf32>
    %cst_89 = arith.constant 5.000000e-01 : f32
    %299 = vector.broadcast %cst_89 : f32 to vector<8x384xf32>
    %300 = arith.addf %298, %299 : vector<8x384xf32>
    %301 = vector.extract_strided_slice %292 {offsets = [0, 384], sizes = [8, 128], strides = [1, 1]} : vector<8x512xf32> to vector<8x128xf32>
    %302 = math.tanh %301 : vector<8x128xf32>
    %303 = vector.extract_strided_slice %300 {offsets = [0, 0], sizes = [8, 128], strides = [1, 1]} : vector<8x384xf32> to vector<8x128xf32>
    %304 = vector.extract_strided_slice %300 {offsets = [0, 128], sizes = [8, 128], strides = [1, 1]} : vector<8x384xf32> to vector<8x128xf32>
    %305 = vector.extract_strided_slice %300 {offsets = [0, 256], sizes = [8, 128], strides = [1, 1]} : vector<8x384xf32> to vector<8x128xf32>
    %306 = arith.mulf %304, %253 : vector<8x128xf32>
    %307 = arith.mulf %303, %302 : vector<8x128xf32>
    %308 = arith.addf %306, %307 : vector<8x128xf32>
    %309 = math.tanh %308 : vector<8x128xf32>
    %310 = arith.mulf %305, %309 : vector<8x128xf32>
    %c6_i32 = arith.constant 6 : i32
    %c1_i32_90 = arith.constant 1 : i32
    %311 = arith.subi %c6_i32, %c1_i32_90 : i32
    %312 = arith.truncf %310 : vector<8x128xf32> to vector<8x128xbf16>
    %cst_91 = arith.constant dense<0.000000e+00> : vector<8x512xf32>
    %313 = tpu.matmul %312, %8, %cst_91 {dimension_numbers = #tpu.dot_dimension_numbers<[1], [0], [0], [1], [0, 0, 1, 1], [], []>} : vector<8x128xbf16>, vector<128x512xbf16>, vector<8x512xf32> -> vector<8x512xf32>
    %314 = arith.truncf %281 : vector<8x128xf32> to vector<8x128xbf16>
    %cst_92 = arith.constant dense<0.000000e+00> : vector<8x512xf32>
    %315 = tpu.matmul %314, %9, %cst_92 {dimension_numbers = #tpu.dot_dimension_numbers<[1], [0], [0], [1], [0, 0, 1, 1], [], []>} : vector<8x128xbf16>, vector<128x512xbf16>, vector<8x512xf32> -> vector<8x512xf32>
    %316 = arith.addf %313, %315 : vector<8x512xf32>
    %317 = vector.broadcast %10 : vector<1x512xf32> to vector<8x512xf32>
    %318 = arith.addf %316, %317 : vector<8x512xf32>
    %319 = vector.extract_strided_slice %318 {offsets = [0, 0], sizes = [8, 384], strides = [1, 1]} : vector<8x512xf32> to vector<8x384xf32>
    %cst_93 = arith.constant 5.000000e-01 : f32
    %320 = vector.broadcast %cst_93 : f32 to vector<8x384xf32>
    %321 = arith.mulf %320, %319 : vector<8x384xf32>
    %322 = math.tanh %321 : vector<8x384xf32>
    %cst_94 = arith.constant 5.000000e-01 : f32
    %323 = vector.broadcast %cst_94 : f32 to vector<8x384xf32>
    %324 = arith.mulf %323, %322 : vector<8x384xf32>
    %cst_95 = arith.constant 5.000000e-01 : f32
    %325 = vector.broadcast %cst_95 : f32 to vector<8x384xf32>
    %326 = arith.addf %324, %325 : vector<8x384xf32>
    %327 = vector.extract_strided_slice %318 {offsets = [0, 384], sizes = [8, 128], strides = [1, 1]} : vector<8x512xf32> to vector<8x128xf32>
    %328 = math.tanh %327 : vector<8x128xf32>
    %329 = vector.extract_strided_slice %326 {offsets = [0, 0], sizes = [8, 128], strides = [1, 1]} : vector<8x384xf32> to vector<8x128xf32>
    %330 = vector.extract_strided_slice %326 {offsets = [0, 128], sizes = [8, 128], strides = [1, 1]} : vector<8x384xf32> to vector<8x128xf32>
    %331 = vector.extract_strided_slice %326 {offsets = [0, 256], sizes = [8, 128], strides = [1, 1]} : vector<8x384xf32> to vector<8x128xf32>
    %332 = arith.mulf %330, %279 : vector<8x128xf32>
    %333 = arith.mulf %329, %328 : vector<8x128xf32>
    %334 = arith.addf %332, %333 : vector<8x128xf32>
    %335 = math.tanh %334 : vector<8x128xf32>
    %336 = arith.mulf %331, %335 : vector<8x128xf32>
    %c8_i32_96 = arith.constant 8 : i32
    %337 = arith.muli %311, %c8_i32_96 : i32
    %338 = tpu.assume_multiple %337, 8 : i32
    %339 = arith.index_cast %338 : i32 to index
    %c0_97 = arith.constant 0 : index
    %340 = vector.load %arg8[%339, %c0_97] : memref<96x128xf32, #tpu.memory_space<vmem>>, vector<8x128xf32>
    tpu.vector_store %arg8[%339, %c0_97], %336 {strides = array<i32>} : memref<96x128xf32, #tpu.memory_space<vmem>>, vector<8x128xf32>,
    %c8_i32_98 = arith.constant 8 : i32
    %341 = arith.muli %c6_i32, %c8_i32_98 : i32
    %342 = tpu.assume_multiple %341, 8 : i32
    %343 = arith.index_cast %342 : i32 to index
    %c0_99 = arith.constant 0 : index
    %344 = vector.load %arg9[%343, %c0_99] : memref<96x512xf32, #tpu.memory_space<vmem>>, vector<8x512xf32>
    %345 = arith.truncf %310 : vector<8x128xf32> to vector<8x128xbf16>
    %cst_100 = arith.constant dense<0.000000e+00> : vector<8x512xf32>
    %346 = tpu.matmul %345, %7, %cst_100 {dimension_numbers = #tpu.dot_dimension_numbers<[1], [0], [0], [1], [0, 0, 1, 1], [], []>} : vector<8x128xbf16>, vector<128x512xbf16>, vector<8x512xf32> -> vector<8x512xf32>
    %347 = arith.addf %344, %346 : vector<8x512xf32>
    %348 = vector.extract_strided_slice %347 {offsets = [0, 0], sizes = [8, 384], strides = [1, 1]} : vector<8x512xf32> to vector<8x384xf32>
    %cst_101 = arith.constant 5.000000e-01 : f32
    %349 = vector.broadcast %cst_101 : f32 to vector<8x384xf32>
    %350 = arith.mulf %349, %348 : vector<8x384xf32>
    %351 = math.tanh %350 : vector<8x384xf32>
    %cst_102 = arith.constant 5.000000e-01 : f32
    %352 = vector.broadcast %cst_102 : f32 to vector<8x384xf32>
    %353 = arith.mulf %352, %351 : vector<8x384xf32>
    %cst_103 = arith.constant 5.000000e-01 : f32
    %354 = vector.broadcast %cst_103 : f32 to vector<8x384xf32>
    %355 = arith.addf %353, %354 : vector<8x384xf32>
    %356 = vector.extract_strided_slice %347 {offsets = [0, 384], sizes = [8, 128], strides = [1, 1]} : vector<8x512xf32> to vector<8x128xf32>
    %357 = math.tanh %356 : vector<8x128xf32>
    %358 = vector.extract_strided_slice %355 {offsets = [0, 0], sizes = [8, 128], strides = [1, 1]} : vector<8x384xf32> to vector<8x128xf32>
    %359 = vector.extract_strided_slice %355 {offsets = [0, 128], sizes = [8, 128], strides = [1, 1]} : vector<8x384xf32> to vector<8x128xf32>
    %360 = vector.extract_strided_slice %355 {offsets = [0, 256], sizes = [8, 128], strides = [1, 1]} : vector<8x384xf32> to vector<8x128xf32>
    %361 = arith.mulf %359, %308 : vector<8x128xf32>
    %362 = arith.mulf %358, %357 : vector<8x128xf32>
    %363 = arith.addf %361, %362 : vector<8x128xf32>
    %364 = math.tanh %363 : vector<8x128xf32>
    %365 = arith.mulf %360, %364 : vector<8x128xf32>
    %c7_i32 = arith.constant 7 : i32
    %c1_i32_104 = arith.constant 1 : i32
    %366 = arith.subi %c7_i32, %c1_i32_104 : i32
    %367 = arith.truncf %365 : vector<8x128xf32> to vector<8x128xbf16>
    %cst_105 = arith.constant dense<0.000000e+00> : vector<8x512xf32>
    %368 = tpu.matmul %367, %8, %cst_105 {dimension_numbers = #tpu.dot_dimension_numbers<[1], [0], [0], [1], [0, 0, 1, 1], [], []>} : vector<8x128xbf16>, vector<128x512xbf16>, vector<8x512xf32> -> vector<8x512xf32>
    %369 = arith.truncf %336 : vector<8x128xf32> to vector<8x128xbf16>
    %cst_106 = arith.constant dense<0.000000e+00> : vector<8x512xf32>
    %370 = tpu.matmul %369, %9, %cst_106 {dimension_numbers = #tpu.dot_dimension_numbers<[1], [0], [0], [1], [0, 0, 1, 1], [], []>} : vector<8x128xbf16>, vector<128x512xbf16>, vector<8x512xf32> -> vector<8x512xf32>
    %371 = arith.addf %368, %370 : vector<8x512xf32>
    %372 = vector.broadcast %10 : vector<1x512xf32> to vector<8x512xf32>
    %373 = arith.addf %371, %372 : vector<8x512xf32>
    %374 = vector.extract_strided_slice %373 {offsets = [0, 0], sizes = [8, 384], strides = [1, 1]} : vector<8x512xf32> to vector<8x384xf32>
    %cst_107 = arith.constant 5.000000e-01 : f32
    %375 = vector.broadcast %cst_107 : f32 to vector<8x384xf32>
    %376 = arith.mulf %375, %374 : vector<8x384xf32>
    %377 = math.tanh %376 : vector<8x384xf32>
    %cst_108 = arith.constant 5.000000e-01 : f32
    %378 = vector.broadcast %cst_108 : f32 to vector<8x384xf32>
    %379 = arith.mulf %378, %377 : vector<8x384xf32>
    %cst_109 = arith.constant 5.000000e-01 : f32
    %380 = vector.broadcast %cst_109 : f32 to vector<8x384xf32>
    %381 = arith.addf %379, %380 : vector<8x384xf32>
    %382 = vector.extract_strided_slice %373 {offsets = [0, 384], sizes = [8, 128], strides = [1, 1]} : vector<8x512xf32> to vector<8x128xf32>
    %383 = math.tanh %382 : vector<8x128xf32>
    %384 = vector.extract_strided_slice %381 {offsets = [0, 0], sizes = [8, 128], strides = [1, 1]} : vector<8x384xf32> to vector<8x128xf32>
    %385 = vector.extract_strided_slice %381 {offsets = [0, 128], sizes = [8, 128], strides = [1, 1]} : vector<8x384xf32> to vector<8x128xf32>
    %386 = vector.extract_strided_slice %381 {offsets = [0, 256], sizes = [8, 128], strides = [1, 1]} : vector<8x384xf32> to vector<8x128xf32>
    %387 = arith.mulf %385, %334 : vector<8x128xf32>
    %388 = arith.mulf %384, %383 : vector<8x128xf32>
    %389 = arith.addf %387, %388 : vector<8x128xf32>
    %390 = math.tanh %389 : vector<8x128xf32>
    %391 = arith.mulf %386, %390 : vector<8x128xf32>
    %c8_i32_110 = arith.constant 8 : i32
    %392 = arith.muli %366, %c8_i32_110 : i32
    %393 = tpu.assume_multiple %392, 8 : i32
    %394 = arith.index_cast %393 : i32 to index
    %c0_111 = arith.constant 0 : index
    %395 = vector.load %arg8[%394, %c0_111] : memref<96x128xf32, #tpu.memory_space<vmem>>, vector<8x128xf32>
    tpu.vector_store %arg8[%394, %c0_111], %391 {strides = array<i32>} : memref<96x128xf32, #tpu.memory_space<vmem>>, vector<8x128xf32>,
    %c8_i32_112 = arith.constant 8 : i32
    %396 = arith.muli %c7_i32, %c8_i32_112 : i32
    %397 = tpu.assume_multiple %396, 8 : i32
    %398 = arith.index_cast %397 : i32 to index
    %c0_113 = arith.constant 0 : index
    %399 = vector.load %arg9[%398, %c0_113] : memref<96x512xf32, #tpu.memory_space<vmem>>, vector<8x512xf32>
    %400 = arith.truncf %365 : vector<8x128xf32> to vector<8x128xbf16>
    %cst_114 = arith.constant dense<0.000000e+00> : vector<8x512xf32>
    %401 = tpu.matmul %400, %7, %cst_114 {dimension_numbers = #tpu.dot_dimension_numbers<[1], [0], [0], [1], [0, 0, 1, 1], [], []>} : vector<8x128xbf16>, vector<128x512xbf16>, vector<8x512xf32> -> vector<8x512xf32>
    %402 = arith.addf %399, %401 : vector<8x512xf32>
    %403 = vector.extract_strided_slice %402 {offsets = [0, 0], sizes = [8, 384], strides = [1, 1]} : vector<8x512xf32> to vector<8x384xf32>
    %cst_115 = arith.constant 5.000000e-01 : f32
    %404 = vector.broadcast %cst_115 : f32 to vector<8x384xf32>
    %405 = arith.mulf %404, %403 : vector<8x384xf32>
    %406 = math.tanh %405 : vector<8x384xf32>
    %cst_116 = arith.constant 5.000000e-01 : f32
    %407 = vector.broadcast %cst_116 : f32 to vector<8x384xf32>
    %408 = arith.mulf %407, %406 : vector<8x384xf32>
    %cst_117 = arith.constant 5.000000e-01 : f32
    %409 = vector.broadcast %cst_117 : f32 to vector<8x384xf32>
    %410 = arith.addf %408, %409 : vector<8x384xf32>
    %411 = vector.extract_strided_slice %402 {offsets = [0, 384], sizes = [8, 128], strides = [1, 1]} : vector<8x512xf32> to vector<8x128xf32>
    %412 = math.tanh %411 : vector<8x128xf32>
    %413 = vector.extract_strided_slice %410 {offsets = [0, 0], sizes = [8, 128], strides = [1, 1]} : vector<8x384xf32> to vector<8x128xf32>
    %414 = vector.extract_strided_slice %410 {offsets = [0, 128], sizes = [8, 128], strides = [1, 1]} : vector<8x384xf32> to vector<8x128xf32>
    %415 = vector.extract_strided_slice %410 {offsets = [0, 256], sizes = [8, 128], strides = [1, 1]} : vector<8x384xf32> to vector<8x128xf32>
    %416 = arith.mulf %414, %363 : vector<8x128xf32>
    %417 = arith.mulf %413, %412 : vector<8x128xf32>
    %418 = arith.addf %416, %417 : vector<8x128xf32>
    %419 = math.tanh %418 : vector<8x128xf32>
    %420 = arith.mulf %415, %419 : vector<8x128xf32>
    %c8_i32_118 = arith.constant 8 : i32
    %c1_i32_119 = arith.constant 1 : i32
    %421 = arith.subi %c8_i32_118, %c1_i32_119 : i32
    %422 = arith.truncf %420 : vector<8x128xf32> to vector<8x128xbf16>
    %cst_120 = arith.constant dense<0.000000e+00> : vector<8x512xf32>
    %423 = tpu.matmul %422, %8, %cst_120 {dimension_numbers = #tpu.dot_dimension_numbers<[1], [0], [0], [1], [0, 0, 1, 1], [], []>} : vector<8x128xbf16>, vector<128x512xbf16>, vector<8x512xf32> -> vector<8x512xf32>
    %424 = arith.truncf %391 : vector<8x128xf32> to vector<8x128xbf16>
    %cst_121 = arith.constant dense<0.000000e+00> : vector<8x512xf32>
    %425 = tpu.matmul %424, %9, %cst_121 {dimension_numbers = #tpu.dot_dimension_numbers<[1], [0], [0], [1], [0, 0, 1, 1], [], []>} : vector<8x128xbf16>, vector<128x512xbf16>, vector<8x512xf32> -> vector<8x512xf32>
    %426 = arith.addf %423, %425 : vector<8x512xf32>
    %427 = vector.broadcast %10 : vector<1x512xf32> to vector<8x512xf32>
    %428 = arith.addf %426, %427 : vector<8x512xf32>
    %429 = vector.extract_strided_slice %428 {offsets = [0, 0], sizes = [8, 384], strides = [1, 1]} : vector<8x512xf32> to vector<8x384xf32>
    %cst_122 = arith.constant 5.000000e-01 : f32
    %430 = vector.broadcast %cst_122 : f32 to vector<8x384xf32>
    %431 = arith.mulf %430, %429 : vector<8x384xf32>
    %432 = math.tanh %431 : vector<8x384xf32>
    %cst_123 = arith.constant 5.000000e-01 : f32
    %433 = vector.broadcast %cst_123 : f32 to vector<8x384xf32>
    %434 = arith.mulf %433, %432 : vector<8x384xf32>
    %cst_124 = arith.constant 5.000000e-01 : f32
    %435 = vector.broadcast %cst_124 : f32 to vector<8x384xf32>
    %436 = arith.addf %434, %435 : vector<8x384xf32>
    %437 = vector.extract_strided_slice %428 {offsets = [0, 384], sizes = [8, 128], strides = [1, 1]} : vector<8x512xf32> to vector<8x128xf32>
    %438 = math.tanh %437 : vector<8x128xf32>
    %439 = vector.extract_strided_slice %436 {offsets = [0, 0], sizes = [8, 128], strides = [1, 1]} : vector<8x384xf32> to vector<8x128xf32>
    %440 = vector.extract_strided_slice %436 {offsets = [0, 128], sizes = [8, 128], strides = [1, 1]} : vector<8x384xf32> to vector<8x128xf32>
    %441 = vector.extract_strided_slice %436 {offsets = [0, 256], sizes = [8, 128], strides = [1, 1]} : vector<8x384xf32> to vector<8x128xf32>
    %442 = arith.mulf %440, %389 : vector<8x128xf32>
    %443 = arith.mulf %439, %438 : vector<8x128xf32>
    %444 = arith.addf %442, %443 : vector<8x128xf32>
    %445 = math.tanh %444 : vector<8x128xf32>
    %446 = arith.mulf %441, %445 : vector<8x128xf32>
    %c8_i32_125 = arith.constant 8 : i32
    %447 = arith.muli %421, %c8_i32_125 : i32
    %448 = tpu.assume_multiple %447, 8 : i32
    %449 = arith.index_cast %448 : i32 to index
    %c0_126 = arith.constant 0 : index
    %450 = vector.load %arg8[%449, %c0_126] : memref<96x128xf32, #tpu.memory_space<vmem>>, vector<8x128xf32>
    tpu.vector_store %arg8[%449, %c0_126], %446 {strides = array<i32>} : memref<96x128xf32, #tpu.memory_space<vmem>>, vector<8x128xf32>,
    %c8_i32_127 = arith.constant 8 : i32
    %451 = arith.muli %c8_i32_118, %c8_i32_127 : i32
    %452 = tpu.assume_multiple %451, 8 : i32
    %453 = arith.index_cast %452 : i32 to index
    %c0_128 = arith.constant 0 : index
    %454 = vector.load %arg9[%453, %c0_128] : memref<96x512xf32, #tpu.memory_space<vmem>>, vector<8x512xf32>
    %455 = arith.truncf %420 : vector<8x128xf32> to vector<8x128xbf16>
    %cst_129 = arith.constant dense<0.000000e+00> : vector<8x512xf32>
    %456 = tpu.matmul %455, %7, %cst_129 {dimension_numbers = #tpu.dot_dimension_numbers<[1], [0], [0], [1], [0, 0, 1, 1], [], []>} : vector<8x128xbf16>, vector<128x512xbf16>, vector<8x512xf32> -> vector<8x512xf32>
    %457 = arith.addf %454, %456 : vector<8x512xf32>
    %458 = vector.extract_strided_slice %457 {offsets = [0, 0], sizes = [8, 384], strides = [1, 1]} : vector<8x512xf32> to vector<8x384xf32>
    %cst_130 = arith.constant 5.000000e-01 : f32
    %459 = vector.broadcast %cst_130 : f32 to vector<8x384xf32>
    %460 = arith.mulf %459, %458 : vector<8x384xf32>
    %461 = math.tanh %460 : vector<8x384xf32>
    %cst_131 = arith.constant 5.000000e-01 : f32
    %462 = vector.broadcast %cst_131 : f32 to vector<8x384xf32>
    %463 = arith.mulf %462, %461 : vector<8x384xf32>
    %cst_132 = arith.constant 5.000000e-01 : f32
    %464 = vector.broadcast %cst_132 : f32 to vector<8x384xf32>
    %465 = arith.addf %463, %464 : vector<8x384xf32>
    %466 = vector.extract_strided_slice %457 {offsets = [0, 384], sizes = [8, 128], strides = [1, 1]} : vector<8x512xf32> to vector<8x128xf32>
    %467 = math.tanh %466 : vector<8x128xf32>
    %468 = vector.extract_strided_slice %465 {offsets = [0, 0], sizes = [8, 128], strides = [1, 1]} : vector<8x384xf32> to vector<8x128xf32>
    %469 = vector.extract_strided_slice %465 {offsets = [0, 128], sizes = [8, 128], strides = [1, 1]} : vector<8x384xf32> to vector<8x128xf32>
    %470 = vector.extract_strided_slice %465 {offsets = [0, 256], sizes = [8, 128], strides = [1, 1]} : vector<8x384xf32> to vector<8x128xf32>
    %471 = arith.mulf %469, %418 : vector<8x128xf32>
    %472 = arith.mulf %468, %467 : vector<8x128xf32>
    %473 = arith.addf %471, %472 : vector<8x128xf32>
    %474 = math.tanh %473 : vector<8x128xf32>
    %475 = arith.mulf %470, %474 : vector<8x128xf32>
    %c9_i32 = arith.constant 9 : i32
    %c1_i32_133 = arith.constant 1 : i32
    %476 = arith.subi %c9_i32, %c1_i32_133 : i32
    %477 = arith.truncf %475 : vector<8x128xf32> to vector<8x128xbf16>
    %cst_134 = arith.constant dense<0.000000e+00> : vector<8x512xf32>
    %478 = tpu.matmul %477, %8, %cst_134 {dimension_numbers = #tpu.dot_dimension_numbers<[1], [0], [0], [1], [0, 0, 1, 1], [], []>} : vector<8x128xbf16>, vector<128x512xbf16>, vector<8x512xf32> -> vector<8x512xf32>
    %479 = arith.truncf %446 : vector<8x128xf32> to vector<8x128xbf16>
    %cst_135 = arith.constant dense<0.000000e+00> : vector<8x512xf32>
    %480 = tpu.matmul %479, %9, %cst_135 {dimension_numbers = #tpu.dot_dimension_numbers<[1], [0], [0], [1], [0, 0, 1, 1], [], []>} : vector<8x128xbf16>, vector<128x512xbf16>, vector<8x512xf32> -> vector<8x512xf32>
    %481 = arith.addf %478, %480 : vector<8x512xf32>
    %482 = vector.broadcast %10 : vector<1x512xf32> to vector<8x512xf32>
    %483 = arith.addf %481, %482 : vector<8x512xf32>
    %484 = vector.extract_strided_slice %483 {offsets = [0, 0], sizes = [8, 384], strides = [1, 1]} : vector<8x512xf32> to vector<8x384xf32>
    %cst_136 = arith.constant 5.000000e-01 : f32
    %485 = vector.broadcast %cst_136 : f32 to vector<8x384xf32>
    %486 = arith.mulf %485, %484 : vector<8x384xf32>
    %487 = math.tanh %486 : vector<8x384xf32>
    %cst_137 = arith.constant 5.000000e-01 : f32
    %488 = vector.broadcast %cst_137 : f32 to vector<8x384xf32>
    %489 = arith.mulf %488, %487 : vector<8x384xf32>
    %cst_138 = arith.constant 5.000000e-01 : f32
    %490 = vector.broadcast %cst_138 : f32 to vector<8x384xf32>
    %491 = arith.addf %489, %490 : vector<8x384xf32>
    %492 = vector.extract_strided_slice %483 {offsets = [0, 384], sizes = [8, 128], strides = [1, 1]} : vector<8x512xf32> to vector<8x128xf32>
    %493 = math.tanh %492 : vector<8x128xf32>
    %494 = vector.extract_strided_slice %491 {offsets = [0, 0], sizes = [8, 128], strides = [1, 1]} : vector<8x384xf32> to vector<8x128xf32>
    %495 = vector.extract_strided_slice %491 {offsets = [0, 128], sizes = [8, 128], strides = [1, 1]} : vector<8x384xf32> to vector<8x128xf32>
    %496 = vector.extract_strided_slice %491 {offsets = [0, 256], sizes = [8, 128], strides = [1, 1]} : vector<8x384xf32> to vector<8x128xf32>
    %497 = arith.mulf %495, %444 : vector<8x128xf32>
    %498 = arith.mulf %494, %493 : vector<8x128xf32>
    %499 = arith.addf %497, %498 : vector<8x128xf32>
    %500 = math.tanh %499 : vector<8x128xf32>
    %501 = arith.mulf %496, %500 : vector<8x128xf32>
    %c8_i32_139 = arith.constant 8 : i32
    %502 = arith.muli %476, %c8_i32_139 : i32
    %503 = tpu.assume_multiple %502, 8 : i32
    %504 = arith.index_cast %503 : i32 to index
    %c0_140 = arith.constant 0 : index
    %505 = vector.load %arg8[%504, %c0_140] : memref<96x128xf32, #tpu.memory_space<vmem>>, vector<8x128xf32>
    tpu.vector_store %arg8[%504, %c0_140], %501 {strides = array<i32>} : memref<96x128xf32, #tpu.memory_space<vmem>>, vector<8x128xf32>,
    %c8_i32_141 = arith.constant 8 : i32
    %506 = arith.muli %c9_i32, %c8_i32_141 : i32
    %507 = tpu.assume_multiple %506, 8 : i32
    %508 = arith.index_cast %507 : i32 to index
    %c0_142 = arith.constant 0 : index
    %509 = vector.load %arg9[%508, %c0_142] : memref<96x512xf32, #tpu.memory_space<vmem>>, vector<8x512xf32>
    %510 = arith.truncf %475 : vector<8x128xf32> to vector<8x128xbf16>
    %cst_143 = arith.constant dense<0.000000e+00> : vector<8x512xf32>
    %511 = tpu.matmul %510, %7, %cst_143 {dimension_numbers = #tpu.dot_dimension_numbers<[1], [0], [0], [1], [0, 0, 1, 1], [], []>} : vector<8x128xbf16>, vector<128x512xbf16>, vector<8x512xf32> -> vector<8x512xf32>
    %512 = arith.addf %509, %511 : vector<8x512xf32>
    %513 = vector.extract_strided_slice %512 {offsets = [0, 0], sizes = [8, 384], strides = [1, 1]} : vector<8x512xf32> to vector<8x384xf32>
    %cst_144 = arith.constant 5.000000e-01 : f32
    %514 = vector.broadcast %cst_144 : f32 to vector<8x384xf32>
    %515 = arith.mulf %514, %513 : vector<8x384xf32>
    %516 = math.tanh %515 : vector<8x384xf32>
    %cst_145 = arith.constant 5.000000e-01 : f32
    %517 = vector.broadcast %cst_145 : f32 to vector<8x384xf32>
    %518 = arith.mulf %517, %516 : vector<8x384xf32>
    %cst_146 = arith.constant 5.000000e-01 : f32
    %519 = vector.broadcast %cst_146 : f32 to vector<8x384xf32>
    %520 = arith.addf %518, %519 : vector<8x384xf32>
    %521 = vector.extract_strided_slice %512 {offsets = [0, 384], sizes = [8, 128], strides = [1, 1]} : vector<8x512xf32> to vector<8x128xf32>
    %522 = math.tanh %521 : vector<8x128xf32>
    %523 = vector.extract_strided_slice %520 {offsets = [0, 0], sizes = [8, 128], strides = [1, 1]} : vector<8x384xf32> to vector<8x128xf32>
    %524 = vector.extract_strided_slice %520 {offsets = [0, 128], sizes = [8, 128], strides = [1, 1]} : vector<8x384xf32> to vector<8x128xf32>
    %525 = vector.extract_strided_slice %520 {offsets = [0, 256], sizes = [8, 128], strides = [1, 1]} : vector<8x384xf32> to vector<8x128xf32>
    %526 = arith.mulf %524, %473 : vector<8x128xf32>
    %527 = arith.mulf %523, %522 : vector<8x128xf32>
    %528 = arith.addf %526, %527 : vector<8x128xf32>
    %529 = math.tanh %528 : vector<8x128xf32>
    %530 = arith.mulf %525, %529 : vector<8x128xf32>
    %c10_i32 = arith.constant 10 : i32
    %c1_i32_147 = arith.constant 1 : i32
    %531 = arith.subi %c10_i32, %c1_i32_147 : i32
    %532 = arith.truncf %530 : vector<8x128xf32> to vector<8x128xbf16>
    %cst_148 = arith.constant dense<0.000000e+00> : vector<8x512xf32>
    %533 = tpu.matmul %532, %8, %cst_148 {dimension_numbers = #tpu.dot_dimension_numbers<[1], [0], [0], [1], [0, 0, 1, 1], [], []>} : vector<8x128xbf16>, vector<128x512xbf16>, vector<8x512xf32> -> vector<8x512xf32>
    %534 = arith.truncf %501 : vector<8x128xf32> to vector<8x128xbf16>
    %cst_149 = arith.constant dense<0.000000e+00> : vector<8x512xf32>
    %535 = tpu.matmul %534, %9, %cst_149 {dimension_numbers = #tpu.dot_dimension_numbers<[1], [0], [0], [1], [0, 0, 1, 1], [], []>} : vector<8x128xbf16>, vector<128x512xbf16>, vector<8x512xf32> -> vector<8x512xf32>
    %536 = arith.addf %533, %535 : vector<8x512xf32>
    %537 = vector.broadcast %10 : vector<1x512xf32> to vector<8x512xf32>
    %538 = arith.addf %536, %537 : vector<8x512xf32>
    %539 = vector.extract_strided_slice %538 {offsets = [0, 0], sizes = [8, 384], strides = [1, 1]} : vector<8x512xf32> to vector<8x384xf32>
    %cst_150 = arith.constant 5.000000e-01 : f32
    %540 = vector.broadcast %cst_150 : f32 to vector<8x384xf32>
    %541 = arith.mulf %540, %539 : vector<8x384xf32>
    %542 = math.tanh %541 : vector<8x384xf32>
    %cst_151 = arith.constant 5.000000e-01 : f32
    %543 = vector.broadcast %cst_151 : f32 to vector<8x384xf32>
    %544 = arith.mulf %543, %542 : vector<8x384xf32>
    %cst_152 = arith.constant 5.000000e-01 : f32
    %545 = vector.broadcast %cst_152 : f32 to vector<8x384xf32>
    %546 = arith.addf %544, %545 : vector<8x384xf32>
    %547 = vector.extract_strided_slice %538 {offsets = [0, 384], sizes = [8, 128], strides = [1, 1]} : vector<8x512xf32> to vector<8x128xf32>
    %548 = math.tanh %547 : vector<8x128xf32>
    %549 = vector.extract_strided_slice %546 {offsets = [0, 0], sizes = [8, 128], strides = [1, 1]} : vector<8x384xf32> to vector<8x128xf32>
    %550 = vector.extract_strided_slice %546 {offsets = [0, 128], sizes = [8, 128], strides = [1, 1]} : vector<8x384xf32> to vector<8x128xf32>
    %551 = vector.extract_strided_slice %546 {offsets = [0, 256], sizes = [8, 128], strides = [1, 1]} : vector<8x384xf32> to vector<8x128xf32>
    %552 = arith.mulf %550, %499 : vector<8x128xf32>
    %553 = arith.mulf %549, %548 : vector<8x128xf32>
    %554 = arith.addf %552, %553 : vector<8x128xf32>
    %555 = math.tanh %554 : vector<8x128xf32>
    %556 = arith.mulf %551, %555 : vector<8x128xf32>
    %c8_i32_153 = arith.constant 8 : i32
    %557 = arith.muli %531, %c8_i32_153 : i32
    %558 = tpu.assume_multiple %557, 8 : i32
    %559 = arith.index_cast %558 : i32 to index
    %c0_154 = arith.constant 0 : index
    %560 = vector.load %arg8[%559, %c0_154] : memref<96x128xf32, #tpu.memory_space<vmem>>, vector<8x128xf32>
    tpu.vector_store %arg8[%559, %c0_154], %556 {strides = array<i32>} : memref<96x128xf32, #tpu.memory_space<vmem>>, vector<8x128xf32>,
    %c8_i32_155 = arith.constant 8 : i32
    %561 = arith.muli %c10_i32, %c8_i32_155 : i32
    %562 = tpu.assume_multiple %561, 8 : i32
    %563 = arith.index_cast %562 : i32 to index
    %c0_156 = arith.constant 0 : index
    %564 = vector.load %arg9[%563, %c0_156] : memref<96x512xf32, #tpu.memory_space<vmem>>, vector<8x512xf32>
    %565 = arith.truncf %530 : vector<8x128xf32> to vector<8x128xbf16>
    %cst_157 = arith.constant dense<0.000000e+00> : vector<8x512xf32>
    %566 = tpu.matmul %565, %7, %cst_157 {dimension_numbers = #tpu.dot_dimension_numbers<[1], [0], [0], [1], [0, 0, 1, 1], [], []>} : vector<8x128xbf16>, vector<128x512xbf16>, vector<8x512xf32> -> vector<8x512xf32>
    %567 = arith.addf %564, %566 : vector<8x512xf32>
    %568 = vector.extract_strided_slice %567 {offsets = [0, 0], sizes = [8, 384], strides = [1, 1]} : vector<8x512xf32> to vector<8x384xf32>
    %cst_158 = arith.constant 5.000000e-01 : f32
    %569 = vector.broadcast %cst_158 : f32 to vector<8x384xf32>
    %570 = arith.mulf %569, %568 : vector<8x384xf32>
    %571 = math.tanh %570 : vector<8x384xf32>
    %cst_159 = arith.constant 5.000000e-01 : f32
    %572 = vector.broadcast %cst_159 : f32 to vector<8x384xf32>
    %573 = arith.mulf %572, %571 : vector<8x384xf32>
    %cst_160 = arith.constant 5.000000e-01 : f32
    %574 = vector.broadcast %cst_160 : f32 to vector<8x384xf32>
    %575 = arith.addf %573, %574 : vector<8x384xf32>
    %576 = vector.extract_strided_slice %567 {offsets = [0, 384], sizes = [8, 128], strides = [1, 1]} : vector<8x512xf32> to vector<8x128xf32>
    %577 = math.tanh %576 : vector<8x128xf32>
    %578 = vector.extract_strided_slice %575 {offsets = [0, 0], sizes = [8, 128], strides = [1, 1]} : vector<8x384xf32> to vector<8x128xf32>
    %579 = vector.extract_strided_slice %575 {offsets = [0, 128], sizes = [8, 128], strides = [1, 1]} : vector<8x384xf32> to vector<8x128xf32>
    %580 = vector.extract_strided_slice %575 {offsets = [0, 256], sizes = [8, 128], strides = [1, 1]} : vector<8x384xf32> to vector<8x128xf32>
    %581 = arith.mulf %579, %528 : vector<8x128xf32>
    %582 = arith.mulf %578, %577 : vector<8x128xf32>
    %583 = arith.addf %581, %582 : vector<8x128xf32>
    %584 = math.tanh %583 : vector<8x128xf32>
    %585 = arith.mulf %580, %584 : vector<8x128xf32>
    %c11_i32 = arith.constant 11 : i32
    %c1_i32_161 = arith.constant 1 : i32
    %586 = arith.subi %c11_i32, %c1_i32_161 : i32
    %587 = arith.truncf %585 : vector<8x128xf32> to vector<8x128xbf16>
    %cst_162 = arith.constant dense<0.000000e+00> : vector<8x512xf32>
    %588 = tpu.matmul %587, %8, %cst_162 {dimension_numbers = #tpu.dot_dimension_numbers<[1], [0], [0], [1], [0, 0, 1, 1], [], []>} : vector<8x128xbf16>, vector<128x512xbf16>, vector<8x512xf32> -> vector<8x512xf32>
    %589 = arith.truncf %556 : vector<8x128xf32> to vector<8x128xbf16>
    %cst_163 = arith.constant dense<0.000000e+00> : vector<8x512xf32>
    %590 = tpu.matmul %589, %9, %cst_163 {dimension_numbers = #tpu.dot_dimension_numbers<[1], [0], [0], [1], [0, 0, 1, 1], [], []>} : vector<8x128xbf16>, vector<128x512xbf16>, vector<8x512xf32> -> vector<8x512xf32>
    %591 = arith.addf %588, %590 : vector<8x512xf32>
    %592 = vector.broadcast %10 : vector<1x512xf32> to vector<8x512xf32>
    %593 = arith.addf %591, %592 : vector<8x512xf32>
    %594 = vector.extract_strided_slice %593 {offsets = [0, 0], sizes = [8, 384], strides = [1, 1]} : vector<8x512xf32> to vector<8x384xf32>
    %cst_164 = arith.constant 5.000000e-01 : f32
    %595 = vector.broadcast %cst_164 : f32 to vector<8x384xf32>
    %596 = arith.mulf %595, %594 : vector<8x384xf32>
    %597 = math.tanh %596 : vector<8x384xf32>
    %cst_165 = arith.constant 5.000000e-01 : f32
    %598 = vector.broadcast %cst_165 : f32 to vector<8x384xf32>
    %599 = arith.mulf %598, %597 : vector<8x384xf32>
    %cst_166 = arith.constant 5.000000e-01 : f32
    %600 = vector.broadcast %cst_166 : f32 to vector<8x384xf32>
    %601 = arith.addf %599, %600 : vector<8x384xf32>
    %602 = vector.extract_strided_slice %593 {offsets = [0, 384], sizes = [8, 128], strides = [1, 1]} : vector<8x512xf32> to vector<8x128xf32>
    %603 = math.tanh %602 : vector<8x128xf32>
    %604 = vector.extract_strided_slice %601 {offsets = [0, 0], sizes = [8, 128], strides = [1, 1]} : vector<8x384xf32> to vector<8x128xf32>
    %605 = vector.extract_strided_slice %601 {offsets = [0, 128], sizes = [8, 128], strides = [1, 1]} : vector<8x384xf32> to vector<8x128xf32>
    %606 = vector.extract_strided_slice %601 {offsets = [0, 256], sizes = [8, 128], strides = [1, 1]} : vector<8x384xf32> to vector<8x128xf32>
    %607 = arith.mulf %605, %554 : vector<8x128xf32>
    %608 = arith.mulf %604, %603 : vector<8x128xf32>
    %609 = arith.addf %607, %608 : vector<8x128xf32>
    %610 = math.tanh %609 : vector<8x128xf32>
    %611 = arith.mulf %606, %610 : vector<8x128xf32>
    %c8_i32_167 = arith.constant 8 : i32
    %612 = arith.muli %586, %c8_i32_167 : i32
    %613 = tpu.assume_multiple %612, 8 : i32
    %614 = arith.index_cast %613 : i32 to index
    %c0_168 = arith.constant 0 : index
    %615 = vector.load %arg8[%614, %c0_168] : memref<96x128xf32, #tpu.memory_space<vmem>>, vector<8x128xf32>
    tpu.vector_store %arg8[%614, %c0_168], %611 {strides = array<i32>} : memref<96x128xf32, #tpu.memory_space<vmem>>, vector<8x128xf32>,
    %c8_i32_169 = arith.constant 8 : i32
    %616 = arith.muli %c11_i32, %c8_i32_169 : i32
    %617 = tpu.assume_multiple %616, 8 : i32
    %618 = arith.index_cast %617 : i32 to index
    %c0_170 = arith.constant 0 : index
    %619 = vector.load %arg9[%618, %c0_170] : memref<96x512xf32, #tpu.memory_space<vmem>>, vector<8x512xf32>
    %620 = arith.truncf %585 : vector<8x128xf32> to vector<8x128xbf16>
    %cst_171 = arith.constant dense<0.000000e+00> : vector<8x512xf32>
    %621 = tpu.matmul %620, %7, %cst_171 {dimension_numbers = #tpu.dot_dimension_numbers<[1], [0], [0], [1], [0, 0, 1, 1], [], []>} : vector<8x128xbf16>, vector<128x512xbf16>, vector<8x512xf32> -> vector<8x512xf32>
    %622 = arith.addf %619, %621 : vector<8x512xf32>
    %623 = vector.extract_strided_slice %622 {offsets = [0, 0], sizes = [8, 384], strides = [1, 1]} : vector<8x512xf32> to vector<8x384xf32>
    %cst_172 = arith.constant 5.000000e-01 : f32
    %624 = vector.broadcast %cst_172 : f32 to vector<8x384xf32>
    %625 = arith.mulf %624, %623 : vector<8x384xf32>
    %626 = math.tanh %625 : vector<8x384xf32>
    %cst_173 = arith.constant 5.000000e-01 : f32
    %627 = vector.broadcast %cst_173 : f32 to vector<8x384xf32>
    %628 = arith.mulf %627, %626 : vector<8x384xf32>
    %cst_174 = arith.constant 5.000000e-01 : f32
    %629 = vector.broadcast %cst_174 : f32 to vector<8x384xf32>
    %630 = arith.addf %628, %629 : vector<8x384xf32>
    %631 = vector.extract_strided_slice %622 {offsets = [0, 384], sizes = [8, 128], strides = [1, 1]} : vector<8x512xf32> to vector<8x128xf32>
    %632 = math.tanh %631 : vector<8x128xf32>
    %633 = vector.extract_strided_slice %630 {offsets = [0, 0], sizes = [8, 128], strides = [1, 1]} : vector<8x384xf32> to vector<8x128xf32>
    %634 = vector.extract_strided_slice %630 {offsets = [0, 128], sizes = [8, 128], strides = [1, 1]} : vector<8x384xf32> to vector<8x128xf32>
    %635 = vector.extract_strided_slice %630 {offsets = [0, 256], sizes = [8, 128], strides = [1, 1]} : vector<8x384xf32> to vector<8x128xf32>
    %636 = arith.mulf %634, %583 : vector<8x128xf32>
    %637 = arith.mulf %633, %632 : vector<8x128xf32>
    %638 = arith.addf %636, %637 : vector<8x128xf32>
    %639 = math.tanh %638 : vector<8x128xf32>
    %640 = arith.mulf %635, %639 : vector<8x128xf32>
    %c11_i32_175 = arith.constant 11 : i32
    %641 = arith.truncf %640 : vector<8x128xf32> to vector<8x128xbf16>
    %cst_176 = arith.constant dense<0.000000e+00> : vector<8x512xf32>
    %642 = tpu.matmul %641, %8, %cst_176 {dimension_numbers = #tpu.dot_dimension_numbers<[1], [0], [0], [1], [0, 0, 1, 1], [], []>} : vector<8x128xbf16>, vector<128x512xbf16>, vector<8x512xf32> -> vector<8x512xf32>
    %643 = arith.truncf %611 : vector<8x128xf32> to vector<8x128xbf16>
    %cst_177 = arith.constant dense<0.000000e+00> : vector<8x512xf32>
    %644 = tpu.matmul %643, %9, %cst_177 {dimension_numbers = #tpu.dot_dimension_numbers<[1], [0], [0], [1], [0, 0, 1, 1], [], []>} : vector<8x128xbf16>, vector<128x512xbf16>, vector<8x512xf32> -> vector<8x512xf32>
    %645 = arith.addf %642, %644 : vector<8x512xf32>
    %646 = vector.broadcast %10 : vector<1x512xf32> to vector<8x512xf32>
    %647 = arith.addf %645, %646 : vector<8x512xf32>
    %648 = vector.extract_strided_slice %647 {offsets = [0, 0], sizes = [8, 384], strides = [1, 1]} : vector<8x512xf32> to vector<8x384xf32>
    %cst_178 = arith.constant 5.000000e-01 : f32
    %649 = vector.broadcast %cst_178 : f32 to vector<8x384xf32>
    %650 = arith.mulf %649, %648 : vector<8x384xf32>
    %651 = math.tanh %650 : vector<8x384xf32>
    %cst_179 = arith.constant 5.000000e-01 : f32
    %652 = vector.broadcast %cst_179 : f32 to vector<8x384xf32>
    %653 = arith.mulf %652, %651 : vector<8x384xf32>
    %cst_180 = arith.constant 5.000000e-01 : f32
    %654 = vector.broadcast %cst_180 : f32 to vector<8x384xf32>
    %655 = arith.addf %653, %654 : vector<8x384xf32>
    %656 = vector.extract_strided_slice %647 {offsets = [0, 384], sizes = [8, 128], strides = [1, 1]} : vector<8x512xf32> to vector<8x128xf32>
    %657 = math.tanh %656 : vector<8x128xf32>
    %658 = vector.extract_strided_slice %655 {offsets = [0, 0], sizes = [8, 128], strides = [1, 1]} : vector<8x384xf32> to vector<8x128xf32>
    %659 = vector.extract_strided_slice %655 {offsets = [0, 128], sizes = [8, 128], strides = [1, 1]} : vector<8x384xf32> to vector<8x128xf32>
    %660 = vector.extract_strided_slice %655 {offsets = [0, 256], sizes = [8, 128], strides = [1, 1]} : vector<8x384xf32> to vector<8x128xf32>
    %661 = arith.mulf %659, %609 : vector<8x128xf32>
    %662 = arith.mulf %658, %657 : vector<8x128xf32>
    %663 = arith.addf %661, %662 : vector<8x128xf32>
    %664 = math.tanh %663 : vector<8x128xf32>
    %665 = arith.mulf %660, %664 : vector<8x128xf32>
    %c88_i32 = arith.constant 88 : i32
    %666 = tpu.assume_multiple %c88_i32, 8 : i32
    %667 = arith.index_cast %666 : i32 to index
    %c0_181 = arith.constant 0 : index
    %668 = vector.load %arg8[%667, %c0_181] : memref<96x128xf32, #tpu.memory_space<vmem>>, vector<8x128xf32>
    tpu.vector_store %arg8[%667, %c0_181], %665 {strides = array<i32>} : memref<96x128xf32, #tpu.memory_space<vmem>>, vector<8x128xf32>,
    return
  }
  func.func @transform_0(%arg0: i32) -> (i32, i32) {
    %c0_i32 = arith.constant 0 : i32
    %c0_i32_0 = arith.constant 0 : i32
    %c0_i32_1 = arith.constant 0 : i32
    return %c0_i32, %c0_i32_0 : i32, i32
  }
  func.func @transform_1(%arg0: i32) -> (i32, i32) {
    %c0_i32 = arith.constant 0 : i32
    %c0_i32_0 = arith.constant 0 : i32
    %c0_i32_1 = arith.constant 0 : i32
    return %c0_i32, %c0_i32_0 : i32, i32
  }
  func.func @transform_2(%arg0: i32) -> (i32, i32) {
    %c0_i32 = arith.constant 0 : i32
    %c0_i32_0 = arith.constant 0 : i32
    %c0_i32_1 = arith.constant 0 : i32
    return %c0_i32, %c0_i32_0 : i32, i32
  }
  func.func @transform_3(%arg0: i32) -> (i32, i32) {
    %c0_i32 = arith.constant 0 : i32
    %c0_i32_0 = arith.constant 0 : i32
    %c0_i32_1 = arith.constant 0 : i32
    return %c0_i32, %c0_i32_0 : i32, i32
  }
  func.func @transform_4(%arg0: i32) -> (i32, i32) {
    %c0_i32 = arith.constant 0 : i32
    %c0_i32_0 = arith.constant 0 : i32
    %c0_i32_1 = arith.constant 0 : i32
    return %c0_i32, %c0_i32_0 : i32, i32
  }
  func.func @transform_5(%arg0: i32) -> (i32, i32) {
    %c0_i32 = arith.constant 0 : i32
    %c0_i32_0 = arith.constant 0 : i32
    %c0_i32_1 = arith.constant 0 : i32
    return %c0_i32, %c0_i32_0 : i32, i32
  }
  func.func @transform_6(%arg0: i32) -> (i32, i32) {
    %c0_i32 = arith.constant 0 : i32
    %c0_i32_0 = arith.constant 0 : i32
    %c0_i32_1 = arith.constant 0 : i32
    return %c0_i32, %c0_i32_0 : i32, i32
  }
  func.func @transform_7(%arg0: i32) -> (i32, i32) {
    %c0_i32 = arith.constant 0 : i32
    %c0_i32_0 = arith.constant 0 : i32
    %c0_i32_1 = arith.constant 0 : i32
    return %c0_i32, %c0_i32_0 : i32, i32
  }
}

</mosaic_0001>

<llo_original>
// kernel: lstm_encoder_forward.1
$region0: #{lstm_encoder_forward.1}
  #allocation0 [shape = 'u32[]', space=smem, size = 0x4, offset = 0x4, fixed_abs, tag = 'smem constant byte address 0x4 - core index']
  #allocation1 [shape = 'u32[144,128]{1,0:T(1,128)}', space=vmem, size = 0x12000, scoped, tag = 'internal scratch']
  #allocation2 [shape = 'f32[96,512]{1,0:T(8,128)}', space=vmem, size = 0x30000, scoped, tag = 'scratch operand']
  %s0 = inlined_call_operand.vmem [shape: bf16[96,128], index: 0, kind: input, shape index: {}]
  %s1 = inlined_call_operand.vmem [shape: bf16[128,512], index: 1, kind: input, shape index: {}]
  %s2 = inlined_call_operand.vmem [shape: bf16[128,512], index: 2, kind: input, shape index: {}]
  %s3 = inlined_call_operand.vmem [shape: f32[1,512], index: 3, kind: input, shape index: {}]
  %s4 = inlined_call_operand.vmem [shape: bf16[128,512], index: 4, kind: input, shape index: {}]
  %s5 = inlined_call_operand.vmem [shape: bf16[128,512], index: 5, kind: input, shape index: {}]
  %s6 = inlined_call_operand.vmem [shape: f32[1,512], index: 6, kind: input, shape index: {}]
  %s7 = inlined_call_operand.vmem [shape: f32[96,128], index: 7, kind: output, shape index: {}]
  %s8 = sld [smem:[#allocation0]]
  $region38: #{lstm_encoder_forward.1} parent=0
    _
  %s10 = ssub.s32 1, %s8
  %s11 = scalar_select 0, %s10, %s8
  // Predicated region
  $region2: #{lstm_encoder_forward.1} parent=0 // pred_check
    _
  $region3: #{lstm_encoder_forward.1} parent=0 // pred_check_branch
    %13 = sbr.rel (0) target = $region5
  $region4: #{lstm_encoder_forward.1} parent=0 // pred_region
    _
  $region5: #{lstm_encoder_forward.1} parent=0 // pred_fallthru
    _
  // Predicated region
  $region6: #{lstm_encoder_forward.1} parent=0 // pred_check
    _
  $region7: #{lstm_encoder_forward.1} parent=0 // pred_check_branch
    %15 = sbr.rel (0) target = $region9
  $region8: #{lstm_encoder_forward.1} parent=0 // pred_region
    _
  $region9: #{lstm_encoder_forward.1} parent=0 // pred_fallthru
    _
  // Predicated region
  $region10: #{lstm_encoder_forward.1} parent=0 // pred_check
    _
  $region11: #{lstm_encoder_forward.1} parent=0 // pred_check_branch
    %17 = sbr.rel (0) target = $region13
  $region12: #{lstm_encoder_forward.1} parent=0 // pred_region
    _
  $region13: #{lstm_encoder_forward.1} parent=0 // pred_fallthru
    _
  // Predicated region
  $region14: #{lstm_encoder_forward.1} parent=0 // pred_check
    _
  $region15: #{lstm_encoder_forward.1} parent=0 // pred_check_branch
    %19 = sbr.rel (0) target = $region17
  $region16: #{lstm_encoder_forward.1} parent=0 // pred_region
    _
  $region17: #{lstm_encoder_forward.1} parent=0 // pred_fallthru
    _
  // Predicated region
  $region18: #{lstm_encoder_forward.1} parent=0 // pred_check
    _
  $region19: #{lstm_encoder_forward.1} parent=0 // pred_check_branch
    %21 = sbr.rel (0) target = $region21
  $region20: #{lstm_encoder_forward.1} parent=0 // pred_region
    _
  $region21: #{lstm_encoder_forward.1} parent=0 // pred_fallthru
    _
  // Predicated region
  $region22: #{lstm_encoder_forward.1} parent=0 // pred_check
    _
  $region23: #{lstm_encoder_forward.1} parent=0 // pred_check_branch
    %23 = sbr.rel (0) target = $region25
  $region24: #{lstm_encoder_forward.1} parent=0 // pred_region
    _
  $region25: #{lstm_encoder_forward.1} parent=0 // pred_fallthru
    _
  // Predicated region
  $region26: #{lstm_encoder_forward.1} parent=0 // pred_check
    _
  $region27: #{lstm_encoder_forward.1} parent=0 // pred_check_branch
    %25 = sbr.rel (0) target = $region29
  $region28: #{lstm_encoder_forward.1} parent=0 // pred_region
    _
  $region29: #{lstm_encoder_forward.1} parent=0 // pred_fallthru
    _
  %v27 = vld [vmem:[%s0] sm:$0xf]
  %v28 = vld [vmem:[%s0 + $0x4] sm:$0xf]
  %v29 = vld [vmem:[%s0 + $0x8] sm:$0xf]
  %v30 = vld [vmem:[%s0 + $0xc] sm:$0xf]
  %v31 = vld [vmem:[%s0 + $0x10] sm:$0xf]
  %v32 = vld [vmem:[%s0 + $0x14] sm:$0xf]
  %v33 = vld [vmem:[%s0 + $0x18] sm:$0xf]
  %v34 = vld [vmem:[%s0 + $0x1c] sm:$0xf]
  %v35 = vld [vmem:[%s0 + $0x20] sm:$0xf]
  %v36 = vld [vmem:[%s0 + $0x24] sm:$0xf]
  %v37 = vld [vmem:[%s0 + $0x28] sm:$0xf]
  %v38 = vld [vmem:[%s0 + $0x2c] sm:$0xf]
  %v39 = vld [vmem:[%s1] sm:$0xff]
  %v40 = vld [vmem:[%s1 + $0x8] sm:$0xff]
  %v41 = vld [vmem:[%s1 + $0x10] sm:$0xff]
  %v42 = vld [vmem:[%s1 + $0x18] sm:$0xff]
  %v43 = vld [vmem:[%s1 + $0x20] sm:$0xff]
  %v44 = vld [vmem:[%s1 + $0x28] sm:$0xff]
  %v45 = vld [vmem:[%s1 + $0x30] sm:$0xff]
  %v46 = vld [vmem:[%s1 + $0x38] sm:$0xff]
  %v47 = vld [vmem:[%s1 + $0x40] sm:$0xff]
  %v48 = vld [vmem:[%s1 + $0x48] sm:$0xff]
  %v49 = vld [vmem:[%s1 + $0x50] sm:$0xff]
  %v50 = vld [vmem:[%s1 + $0x58] sm:$0xff]
  %v51 = vld [vmem:[%s1 + $0x60] sm:$0xff]
  %v52 = vld [vmem:[%s1 + $0x68] sm:$0xff]
  %v53 = vld [vmem:[%s1 + $0x70] sm:$0xff]
  %v54 = vld [vmem:[%s1 + $0x78] sm:$0xff]
  %v55 = vld [vmem:[%s1 + $0x80] sm:$0xff]
  %v56 = vld [vmem:[%s1 + $0x88] sm:$0xff]
  %v57 = vld [vmem:[%s1 + $0x90] sm:$0xff]
  %v58 = vld [vmem:[%s1 + $0x98] sm:$0xff]
  %v59 = vld [vmem:[%s1 + $0xa0] sm:$0xff]
  %v60 = vld [vmem:[%s1 + $0xa8] sm:$0xff]
  %v61 = vld [vmem:[%s1 + $0xb0] sm:$0xff]
  %v62 = vld [vmem:[%s1 + $0xb8] sm:$0xff]
  %v63 = vld [vmem:[%s1 + $0xc0] sm:$0xff]
  %v64 = vld [vmem:[%s1 + $0xc8] sm:$0xff]
  %v65 = vld [vmem:[%s1 + $0xd0] sm:$0xff]
  %v66 = vld [vmem:[%s1 + $0xd8] sm:$0xff]
  %v67 = vld [vmem:[%s1 + $0xe0] sm:$0xff]
  %v68 = vld [vmem:[%s1 + $0xe8] sm:$0xff]
  %v69 = vld [vmem:[%s1 + $0xf0] sm:$0xff]
  %v70 = vld [vmem:[%s1 + $0xf8] sm:$0xff]
  %v71 = vld [vmem:[%s3] sm:$0xf]
  %v73 = vlaneseq
  %v74 = vshrl.u32 %v73, 7
  %v75 = vsub.s32 0, %v74
  %v76 = vrot.slane %v71, %v75
  %v77 = vlaneseq
  %v78 = vshrl.u32 %v77, 7
  %v79 = vsub.s32 1, %v78
  %v80 = vrot.slane %v71, %v79
  %v81 = vlaneseq
  %v82 = vshrl.u32 %v81, 7
  %v83 = vsub.s32 2, %v82
  %v84 = vrot.slane %v71, %v83
  %v85 = vlaneseq
  %v86 = vshrl.u32 %v85, 7
  %v87 = vsub.s32 3, %v86
  %v88 = vrot.slane %v71, %v87
  %v105 = vunpack.c.l.b16 %v27
  %v106 = vunpack.c.l.b16 %v28
  %v107 = vunpack.c.l.b16 %v29
  %v108 = vunpack.c.l.b16 %v30
  %v109 = vunpack.c.l.b16 %v31
  %v110 = vunpack.c.l.b16 %v32
  %v111 = vunpack.c.l.b16 %v33
  %v112 = vunpack.c.l.b16 %v34
  %v113 = vunpack.c.l.b16 %v35
  %v114 = vunpack.c.l.b16 %v36
  %v115 = vunpack.c.l.b16 %v37
  %v116 = vunpack.c.l.b16 %v38
  %v117 = vpack.c.b16 %v106, %v105
  %v118 = vpack.c.b16 %v108, %v107
  %v119 = vpack.c.b16 %v110, %v109
  %v120 = vpack.c.b16 %v112, %v111
  %v121 = vpack.c.b16 %v114, %v113
  %v122 = vpack.c.b16 %v116, %v115
  %v161 = vunpack.c.l.b16 %v39
  %v162 = vunpack.c.h.b16 %v39
  %v163 = vunpack.c.l.b16 %v40
  %v164 = vunpack.c.h.b16 %v40
  %v165 = vunpack.c.l.b16 %v41
  %v166 = vunpack.c.h.b16 %v41
  %v167 = vunpack.c.l.b16 %v42
  %v168 = vunpack.c.h.b16 %v42
  %v169 = vunpack.c.l.b16 %v43
  %v170 = vunpack.c.h.b16 %v43
  %v171 = vunpack.c.l.b16 %v44
  %v172 = vunpack.c.h.b16 %v44
  %v173 = vunpack.c.l.b16 %v45
  %v174 = vunpack.c.h.b16 %v45
  %v175 = vunpack.c.l.b16 %v46
  %v176 = vunpack.c.h.b16 %v46
  %v177 = vunpack.c.l.b16 %v47
  %v178 = vunpack.c.h.b16 %v47
  %v179 = vunpack.c.l.b16 %v48
  %v180 = vunpack.c.h.b16 %v48
  %v181 = vunpack.c.l.b16 %v49
  %v182 = vunpack.c.h.b16 %v49
  %v183 = vunpack.c.l.b16 %v50
  %v184 = vunpack.c.h.b16 %v50
  %v185 = vunpack.c.l.b16 %v51
  %v186 = vunpack.c.h.b16 %v51
  %v187 = vunpack.c.l.b16 %v52
  %v188 = vunpack.c.h.b16 %v52
  %v189 = vunpack.c.l.b16 %v53
  %v190 = vunpack.c.h.b16 %v53
  %v191 = vunpack.c.l.b16 %v54
  %v192 = vunpack.c.h.b16 %v54
  %v193 = vunpack.c.l.b16 %v55
  %v194 = vunpack.c.h.b16 %v55
  %v195 = vunpack.c.l.b16 %v56
  %v196 = vunpack.c.h.b16 %v56
  %v197 = vunpack.c.l.b16 %v57
  %v198 = vunpack.c.h.b16 %v57
  %v199 = vunpack.c.l.b16 %v58
  %v200 = vunpack.c.h.b16 %v58
  %v201 = vunpack.c.l.b16 %v59
  %v202 = vunpack.c.h.b16 %v59
  %v203 = vunpack.c.l.b16 %v60
  %v204 = vunpack.c.h.b16 %v60
  %v205 = vunpack.c.l.b16 %v61
  %v206 = vunpack.c.h.b16 %v61
  %v207 = vunpack.c.l.b16 %v62
  %v208 = vunpack.c.h.b16 %v62
  %v209 = vunpack.c.l.b16 %v63
  %v210 = vunpack.c.h.b16 %v63
  %v211 = vunpack.c.l.b16 %v64
  %v212 = vunpack.c.h.b16 %v64
  %v213 = vunpack.c.l.b16 %v65
  %v214 = vunpack.c.h.b16 %v65
  %v215 = vunpack.c.l.b16 %v66
  %v216 = vunpack.c.h.b16 %v66
  %v217 = vunpack.c.l.b16 %v67
  %v218 = vunpack.c.h.b16 %v67
  %v219 = vunpack.c.l.b16 %v68
  %v220 = vunpack.c.h.b16 %v68
  %v221 = vunpack.c.l.b16 %v69
  %v222 = vunpack.c.h.b16 %v69
  %v223 = vunpack.c.l.b16 %v70
  %v224 = vunpack.c.h.b16 %v70
  %v225 = vpack.c.b16 %v165, %v161
  %v226 = vpack.c.b16 %v166, %v162
  %v227 = vpack.c.b16 %v167, %v163
  %v228 = vpack.c.b16 %v168, %v164
  %v229 = vpack.c.b16 %v173, %v169
  %v230 = vpack.c.b16 %v174, %v170
  %v231 = vpack.c.b16 %v175, %v171
  %v232 = vpack.c.b16 %v176, %v172
  %v233 = vpack.c.b16 %v181, %v177
  %v234 = vpack.c.b16 %v182, %v178
  %v235 = vpack.c.b16 %v183, %v179
  %v236 = vpack.c.b16 %v184, %v180
  %v237 = vpack.c.b16 %v189, %v185
  %v238 = vpack.c.b16 %v190, %v186
  %v239 = vpack.c.b16 %v191, %v187
  %v240 = vpack.c.b16 %v192, %v188
  %v241 = vpack.c.b16 %v197, %v193
  %v242 = vpack.c.b16 %v198, %v194
  %v243 = vpack.c.b16 %v199, %v195
  %v244 = vpack.c.b16 %v200, %v196
  %v245 = vpack.c.b16 %v205, %v201
  %v246 = vpack.c.b16 %v206, %v202
  %v247 = vpack.c.b16 %v207, %v203
  %v248 = vpack.c.b16 %v208, %v204
  %v249 = vpack.c.b16 %v213, %v209
  %v250 = vpack.c.b16 %v214, %v210
  %v251 = vpack.c.b16 %v215, %v211
  %v252 = vpack.c.b16 %v216, %v212
  %v253 = vpack.c.b16 %v221, %v217
  %v254 = vpack.c.b16 %v222, %v218
  %v255 = vpack.c.b16 %v223, %v219
  %v256 = vpack.c.b16 %v224, %v220
  %289 = vmatprep.subr.bf16.mxu0 %v254
  %290 = vmatpush1.bf16.msra.mxu0 %v253
  %291 = vmatprep.subr.bf16.mxu0 %v250
  %292 = vmatpush1.bf16.msra.mxu0 %v249
  %293 = vmatprep.subr.bf16.mxu0 %v246
  %294 = vmatpush1.bf16.msra.mxu0 %v245
  %295 = vmatprep.subr.bf16.mxu0 %v242
  %296 = vmatpush1.bf16.msra.mxu0 %v241
  %297 = vmatprep.subr.bf16.mxu0 %v238
  %298 = vmatpush1.bf16.msra.mxu0 %v237
  %299 = vmatprep.subr.bf16.mxu0 %v234
  %300 = vmatpush1.bf16.msra.mxu0 %v233
  %301 = vmatprep.subr.bf16.mxu0 %v230
  %302 = vmatpush1.bf16.msra.mxu0 %v229
  %303 = vmatprep.subr.bf16.mxu0 %v226
  %304 = vmatpush1.bf16.msra.mxu0 %v225
  %305 = vmatprep.subr.bf16.mxu0 0
  %306 = vmatpush2.bf16.msra.mxu0 0
  %307 = vmatprep.subr.bf16.mxu0 0
  %308 = vmatpush2.bf16.msra.mxu0 0
  %309 = vmatprep.subr.bf16.mxu0 0
  %310 = vmatpush2.bf16.msra.mxu0 0
  %311 = vmatprep.subr.bf16.mxu0 0
  %312 = vmatpush2.bf16.msra.mxu0 0
  %313 = vmatprep.subr.bf16.mxu0 0
  %314 = vmatpush2.bf16.msra.mxu0 0
  %315 = vmatprep.subr.bf16.mxu0 0
  %316 = vmatpush2.bf16.msra.mxu0 0
  %317 = vmatprep.subr.bf16.mxu0 0
  %318 = vmatpush2.bf16.msra.mxu0 0
  %319 = vmatprep.subr.bf16.mxu0 0
  %320 = vmatpush2.bf16.msra.mxu0 0
  %321 = vmatprep.mubr.bf16.mxu0 0
  %322 = vmatmul.mubr.bf16.gmra.mxu0 %v117
  %v323 = vpop.f32.mrf.mxu0
  %v324 = vadd.f32 %v76, %v323
  %v325 = vpop.f32.mrf.mxu0
  %v326 = vadd.f32 %v80, %v325
  %v327 = vpop.f32.mrf.mxu0
  %v328 = vadd.f32 %v76, %v327
  %v329 = vpop.f32.mrf.mxu0
  %v330 = vadd.f32 %v80, %v329
  %331 = vmatprep.mubr.bf16.mxu0 0
  %332 = vmatmul.mubr.bf16.gmra.mxu0 %v118
  %v333 = vpop.f32.mrf.mxu0
  %v334 = vadd.f32 %v76, %v333
  %v335 = vpop.f32.mrf.mxu0
  %v336 = vadd.f32 %v80, %v335
  %v337 = vpop.f32.mrf.mxu0
  %v338 = vadd.f32 %v76, %v337
  %v339 = vpop.f32.mrf.mxu0
  %v340 = vadd.f32 %v80, %v339
  %341 = vmatprep.mubr.bf16.mxu0 0
  %342 = vmatmul.mubr.bf16.gmra.mxu0 %v119
  %v343 = vpop.f32.mrf.mxu0
  %v344 = vadd.f32 %v76, %v343
  %v345 = vpop.f32.mrf.mxu0
  %v346 = vadd.f32 %v80, %v345
  %v347 = vpop.f32.mrf.mxu0
  %v348 = vadd.f32 %v76, %v347
  %v349 = vpop.f32.mrf.mxu0
  %v350 = vadd.f32 %v80, %v349
  %351 = vmatprep.mubr.bf16.mxu0 0
  %352 = vmatmul.mubr.bf16.gmra.mxu0 %v120
  %v353 = vpop.f32.mrf.mxu0
  %v354 = vadd.f32 %v76, %v353
  %v355 = vpop.f32.mrf.mxu0
  %v356 = vadd.f32 %v80, %v355
  %v357 = vpop.f32.mrf.mxu0
  %v358 = vadd.f32 %v76, %v357
  %v359 = vpop.f32.mrf.mxu0
  %v360 = vadd.f32 %v80, %v359
  %361 = vmatprep.mubr.bf16.mxu0 0
  %362 = vmatmul.mubr.bf16.gmra.mxu0 %v121
  %v363 = vpop.f32.mrf.mxu0
  %v364 = vadd.f32 %v76, %v363
  %v365 = vpop.f32.mrf.mxu0
  %v366 = vadd.f32 %v80, %v365
  %v367 = vpop.f32.mrf.mxu0
  %v368 = vadd.f32 %v76, %v367
  %v369 = vpop.f32.mrf.mxu0
  %v370 = vadd.f32 %v80, %v369
  %371 = vmatprep.mubr.bf16.mxu0 0
  %372 = vmatmul.mubr.bf16.gmra.mxu0 %v122
  %v373 = vpop.f32.mrf.mxu0
  %v374 = vadd.f32 %v76, %v373
  %v375 = vpop.f32.mrf.mxu0
  %v376 = vadd.f32 %v80, %v375
  %v377 = vpop.f32.mrf.mxu0
  %v378 = vadd.f32 %v76, %v377
  %v379 = vpop.f32.mrf.mxu0
  %v380 = vadd.f32 %v80, %v379
  %381 = vdwg.mxu0
  %382 = vmatprep.subr.bf16.mxu0 %v256
  %383 = vmatpush1.bf16.msra.mxu0 %v255
  %384 = vmatprep.subr.bf16.mxu0 %v252
  %385 = vmatpush1.bf16.msra.mxu0 %v251
  %386 = vmatprep.subr.bf16.mxu0 %v248
  %387 = vmatpush1.bf16.msra.mxu0 %v247
  %388 = vmatprep.subr.bf16.mxu0 %v244
  %389 = vmatpush1.bf16.msra.mxu0 %v243
  %390 = vmatprep.subr.bf16.mxu0 %v240
  %391 = vmatpush1.bf16.msra.mxu0 %v239
  %392 = vmatprep.subr.bf16.mxu0 %v236
  %393 = vmatpush1.bf16.msra.mxu0 %v235
  %394 = vmatprep.subr.bf16.mxu0 %v232
  %395 = vmatpush1.bf16.msra.mxu0 %v231
  %396 = vmatprep.subr.bf16.mxu0 %v228
  %397 = vmatpush1.bf16.msra.mxu0 %v227
  %398 = vmatprep.subr.bf16.mxu0 0
  %399 = vmatpush2.bf16.msra.mxu0 0
  %400 = vmatprep.subr.bf16.mxu0 0
  %401 = vmatpush2.bf16.msra.mxu0 0
  %402 = vmatprep.subr.bf16.mxu0 0
  %403 = vmatpush2.bf16.msra.mxu0 0
  %404 = vmatprep.subr.bf16.mxu0 0
  %405 = vmatpush2.bf16.msra.mxu0 0
  %406 = vmatprep.subr.bf16.mxu0 0
  %407 = vmatpush2.bf16.msra.mxu0 0
  %408 = vmatprep.subr.bf16.mxu0 0
  %409 = vmatpush2.bf16.msra.mxu0 0
  %410 = vmatprep.subr.bf16.mxu0 0
  %411 = vmatpush2.bf16.msra.mxu0 0
  %412 = vmatprep.subr.bf16.mxu0 0
  %413 = vmatpush2.bf16.msra.mxu0 0
  %414 = vmatprep.mubr.bf16.mxu0 0
  %415 = vmatmul.mubr.bf16.gmra.mxu0 %v117
  %v416 = vpop.f32.mrf.mxu0
  %v417 = vadd.f32 %v84, %v416
  %v418 = vpop.f32.mrf.mxu0
  %v419 = vadd.f32 %v88, %v418
  %v420 = vpop.f32.mrf.mxu0
  %v421 = vadd.f32 %v84, %v420
  %v422 = vpop.f32.mrf.mxu0
  %v423 = vadd.f32 %v88, %v422
  %424 = vmatprep.mubr.bf16.mxu0 0
  %425 = vmatmul.mubr.bf16.gmra.mxu0 %v118
  %v426 = vpop.f32.mrf.mxu0
  %v427 = vadd.f32 %v84, %v426
  %v428 = vpop.f32.mrf.mxu0
  %v429 = vadd.f32 %v88, %v428
  %v430 = vpop.f32.mrf.mxu0
  %v431 = vadd.f32 %v84, %v430
  %v432 = vpop.f32.mrf.mxu0
  %v433 = vadd.f32 %v88, %v432
  %434 = vmatprep.mubr.bf16.mxu0 0
  %435 = vmatmul.mubr.bf16.gmra.mxu0 %v119
  %v436 = vpop.f32.mrf.mxu0
  %v437 = vadd.f32 %v84, %v436
  %v438 = vpop.f32.mrf.mxu0
  %v439 = vadd.f32 %v88, %v438
  %v440 = vpop.f32.mrf.mxu0
  %v441 = vadd.f32 %v84, %v440
  %v442 = vpop.f32.mrf.mxu0
  %v443 = vadd.f32 %v88, %v442
  %444 = vmatprep.mubr.bf16.mxu0 0
  %445 = vmatmul.mubr.bf16.gmra.mxu0 %v120
  %v446 = vpop.f32.mrf.mxu0
  %v447 = vadd.f32 %v84, %v446
  %v448 = vpop.f32.mrf.mxu0
  %v449 = vadd.f32 %v88, %v448
  %v450 = vpop.f32.mrf.mxu0
  %v451 = vadd.f32 %v84, %v450
  %v452 = vpop.f32.mrf.mxu0
  %v453 = vadd.f32 %v88, %v452
  %454 = vmatprep.mubr.bf16.mxu0 0
  %455 = vmatmul.mubr.bf16.gmra.mxu0 %v121
  %v456 = vpop.f32.mrf.mxu0
  %v457 = vadd.f32 %v84, %v456
  %v458 = vpop.f32.mrf.mxu0
  %v459 = vadd.f32 %v88, %v458
  %v460 = vpop.f32.mrf.mxu0
  %v461 = vadd.f32 %v84, %v460
  %v462 = vpop.f32.mrf.mxu0
  %v463 = vadd.f32 %v88, %v462
  %464 = vmatprep.mubr.bf16.mxu0 0
  %465 = vmatmul.mubr.bf16.gmra.mxu0 %v122
  %v466 = vpop.f32.mrf.mxu0
  %v467 = vadd.f32 %v84, %v466
  %v468 = vpop.f32.mrf.mxu0
  %v469 = vadd.f32 %v88, %v468
  %v470 = vpop.f32.mrf.mxu0
  %v471 = vadd.f32 %v84, %v470
  %v472 = vpop.f32.mrf.mxu0
  %v473 = vadd.f32 %v88, %v472
  %474 = vdwg.mxu0
  %475 = vst [vmem:[#allocation2] sm:$0xff] %v324
  %476 = vst [vmem:[#allocation2 + $0x8] sm:$0xff] %v326
  %477 = vst [vmem:[#allocation2 + $0x10] sm:$0xff] %v417
  %478 = vst [vmem:[#allocation2 + $0x18] sm:$0xff] %v419
  %479 = vst [vmem:[#allocation2 + $0x20] sm:$0xff] %v328
  %480 = vst [vmem:[#allocation2 + $0x28] sm:$0xff] %v330
  %481 = vst [vmem:[#allocation2 + $0x30] sm:$0xff] %v421
  %482 = vst [vmem:[#allocation2 + $0x38] sm:$0xff] %v423
  %483 = vst [vmem:[#allocation2 + $0x40] sm:$0xff] %v334
  %484 = vst [vmem:[#allocation2 + $0x48] sm:$0xff] %v336
  %485 = vst [vmem:[#allocation2 + $0x50] sm:$0xff] %v427
  %486 = vst [vmem:[#allocation2 + $0x58] sm:$0xff] %v429
  %487 = vst [vmem:[#allocation2 + $0x60] sm:$0xff] %v338
  %488 = vst [vmem:[#allocation2 + $0x68] sm:$0xff] %v340
  %489 = vst [vmem:[#allocation2 + $0x70] sm:$0xff] %v431
  %490 = vst [vmem:[#allocation2 + $0x78] sm:$0xff] %v433
  %491 = vst [vmem:[#allocation2 + $0x80] sm:$0xff] %v344
  %492 = vst [vmem:[#allocation2 + $0x88] sm:$0xff] %v346
  %493 = vst [vmem:[#allocation2 + $0x90] sm:$0xff] %v437
  %494 = vst [vmem:[#allocation2 + $0x98] sm:$0xff] %v439
  %495 = vst [vmem:[#allocation2 + $0xa0] sm:$0xff] %v348
  %496 = vst [vmem:[#allocation2 + $0xa8] sm:$0xff] %v350
  %497 = vst [vmem:[#allocation2 + $0xb0] sm:$0xff] %v441
  %498 = vst [vmem:[#allocation2 + $0xb8] sm:$0xff] %v443
  %499 = vst [vmem:[#allocation2 + $0xc0] sm:$0xff] %v354
  %500 = vst [vmem:[#allocation2 + $0xc8] sm:$0xff] %v356
  %501 = vst [vmem:[#allocation2 + $0xd0] sm:$0xff] %v447
  %502 = vst [vmem:[#allocation2 + $0xd8] sm:$0xff] %v449
  %503 = vst [vmem:[#allocation2 + $0xe0] sm:$0xff] %v358
  %504 = vst [vmem:[#allocation2 + $0xe8] sm:$0xff] %v360
  %505 = vst [vmem:[#allocation2 + $0xf0] sm:$0xff] %v451
  %506 = vst [vmem:[#allocation2 + $0xf8] sm:$0xff] %v453
  %507 = vst [vmem:[#allocation2 + $0x100] sm:$0xff] %v364
  %508 = vst [vmem:[#allocation2 + $0x108] sm:$0xff] %v366
  %509 = vst [vmem:[#allocation2 + $0x110] sm:$0xff] %v457
  %510 = vst [vmem:[#allocation2 + $0x118] sm:$0xff] %v459
  %511 = vst [vmem:[#allocation2 + $0x120] sm:$0xff] %v368
  %512 = vst [vmem:[#allocation2 + $0x128] sm:$0xff] %v370
  %513 = vst [vmem:[#allocation2 + $0x130] sm:$0xff] %v461
  %514 = vst [vmem:[#allocation2 + $0x138] sm:$0xff] %v463
  %515 = vst [vmem:[#allocation2 + $0x140] sm:$0xff] %v374
  %516 = vst [vmem:[#allocation2 + $0x148] sm:$0xff] %v376
  %517 = vst [vmem:[#allocation2 + $0x150] sm:$0xff] %v467
  %518 = vst [vmem:[#allocation2 + $0x158] sm:$0xff] %v469
  %519 = vst [vmem:[#allocation2 + $0x160] sm:$0xff] %v378
  %520 = vst [vmem:[#allocation2 + $0x168] sm:$0xff] %v380
  %521 = vst [vmem:[#allocation2 + $0x170] sm:$0xff] %v471
  %522 = vst [vmem:[#allocation2 + $0x178] sm:$0xff] %v473
  %v523 = vld [vmem:[%s2] sm:$0xff]
  %v524 = vld [vmem:[%s2 + $0x8] sm:$0xff]
  %v525 = vld [vmem:[%s2 + $0x10] sm:$0xff]
  %v526 = vld [vmem:[%s2 + $0x18] sm:$0xff]
  %v527 = vld [vmem:[%s2 + $0x20] sm:$0xff]
  %v528 = vld [vmem:[%s2 + $0x28] sm:$0xff]
  %v529 = vld [vmem:[%s2 + $0x30] sm:$0xff]
  %v530 = vld [vmem:[%s2 + $0x38] sm:$0xff]
  %v531 = vld [vmem:[%s2 + $0x40] sm:$0xff]
  %v532 = vld [vmem:[%s2 + $0x48] sm:$0xff]
  %v533 = vld [vmem:[%s2 + $0x50] sm:$0xff]
  %v534 = vld [vmem:[%s2 + $0x58] sm:$0xff]
  %v535 = vld [vmem:[%s2 + $0x60] sm:$0xff]
  %v536 = vld [vmem:[%s2 + $0x68] sm:$0xff]
  %v537 = vld [vmem:[%s2 + $0x70] sm:$0xff]
  %v538 = vld [vmem:[%s2 + $0x78] sm:$0xff]
  %v539 = vld [vmem:[%s2 + $0x80] sm:$0xff]
  %v540 = vld [vmem:[%s2 + $0x88] sm:$0xff]
  %v541 = vld [vmem:[%s2 + $0x90] sm:$0xff]
  %v542 = vld [vmem:[%s2 + $0x98] sm:$0xff]
  %v543 = vld [vmem:[%s2 + $0xa0] sm:$0xff]
  %v544 = vld [vmem:[%s2 + $0xa8] sm:$0xff]
  %v545 = vld [vmem:[%s2 + $0xb0] sm:$0xff]
  %v546 = vld [vmem:[%s2 + $0xb8] sm:$0xff]
  %v547 = vld [vmem:[%s2 + $0xc0] sm:$0xff]
  %v548 = vld [vmem:[%s2 + $0xc8] sm:$0xff]
  %v549 = vld [vmem:[%s2 + $0xd0] sm:$0xff]
  %v550 = vld [vmem:[%s2 + $0xd8] sm:$0xff]
  %v551 = vld [vmem:[%s2 + $0xe0] sm:$0xff]
  %v552 = vld [vmem:[%s2 + $0xe8] sm:$0xff]
  %v553 = vld [vmem:[%s2 + $0xf0] sm:$0xff]
  %v554 = vld [vmem:[%s2 + $0xf8] sm:$0xff]
  %v555 = vld [vmem:[%s4] sm:$0xff]
  %v556 = vld [vmem:[%s4 + $0x8] sm:$0xff]
  %v557 = vld [vmem:[%s4 + $0x10] sm:$0xff]
  %v558 = vld [vmem:[%s4 + $0x18] sm:$0xff]
  %v559 = vld [vmem:[%s4 + $0x20] sm:$0xff]
  %v560 = vld [vmem:[%s4 + $0x28] sm:$0xff]
  %v561 = vld [vmem:[%s4 + $0x30] sm:$0xff]
  %v562 = vld [vmem:[%s4 + $0x38] sm:$0xff]
  %v563 = vld [vmem:[%s4 + $0x40] sm:$0xff]
  %v564 = vld [vmem:[%s4 + $0x48] sm:$0xff]
  %v565 = vld [vmem:[%s4 + $0x50] sm:$0xff]
  %v566 = vld [vmem:[%s4 + $0x58] sm:$0xff]
  %v567 = vld [vmem:[%s4 + $0x60] sm:$0xff]
  %v568 = vld [vmem:[%s4 + $0x68] sm:$0xff]
  %v569 = vld [vmem:[%s4 + $0x70] sm:$0xff]
  %v570 = vld [vmem:[%s4 + $0x78] sm:$0xff]
  %v571 = vld [vmem:[%s4 + $0x80] sm:$0xff]
  %v572 = vld [vmem:[%s4 + $0x88] sm:$0xff]
  %v573 = vld [vmem:[%s4 + $0x90] sm:$0xff]
  %v574 = vld [vmem:[%s4 + $0x98] sm:$0xff]
  %v575 = vld [vmem:[%s4 + $0xa0] sm:$0xff]
  %v576 = vld [vmem:[%s4 + $0xa8] sm:$0xff]
  %v577 = vld [vmem:[%s4 + $0xb0] sm:$0xff]
  %v578 = vld [vmem:[%s4 + $0xb8] sm:$0xff]
  %v579 = vld [vmem:[%s4 + $0xc0] sm:$0xff]
  %v580 = vld [vmem:[%s4 + $0xc8] sm:$0xff]
  %v581 = vld [vmem:[%s4 + $0xd0] sm:$0xff]
  %v582 = vld [vmem:[%s4 + $0xd8] sm:$0xff]
  %v583 = vld [vmem:[%s4 + $0xe0] sm:$0xff]
  %v584 = vld [vmem:[%s4 + $0xe8] sm:$0xff]
  %v585 = vld [vmem:[%s4 + $0xf0] sm:$0xff]
  %v586 = vld [vmem:[%s4 + $0xf8] sm:$0xff]
  %v587 = vld [vmem:[%s5] sm:$0xff]
  %v588 = vld [vmem:[%s5 + $0x8] sm:$0xff]
  %v589 = vld [vmem:[%s5 + $0x10] sm:$0xff]
  %v590 = vld [vmem:[%s5 + $0x18] sm:$0xff]
  %v591 = vld [vmem:[%s5 + $0x20] sm:$0xff]
  %v592 = vld [vmem:[%s5 + $0x28] sm:$0xff]
  %v593 = vld [vmem:[%s5 + $0x30] sm:$0xff]
  %v594 = vld [vmem:[%s5 + $0x38] sm:$0xff]
  %v595 = vld [vmem:[%s5 + $0x40] sm:$0xff]
  %v596 = vld [vmem:[%s5 + $0x48] sm:$0xff]
  %v597 = vld [vmem:[%s5 + $0x50] sm:$0xff]
  %v598 = vld [vmem:[%s5 + $0x58] sm:$0xff]
  %v599 = vld [vmem:[%s5 + $0x60] sm:$0xff]
  %v600 = vld [vmem:[%s5 + $0x68] sm:$0xff]
  %v601 = vld [vmem:[%s5 + $0x70] sm:$0xff]
  %v602 = vld [vmem:[%s5 + $0x78] sm:$0xff]
  %v603 = vld [vmem:[%s5 + $0x80] sm:$0xff]
  %v604 = vld [vmem:[%s5 + $0x88] sm:$0xff]
  %v605 = vld [vmem:[%s5 + $0x90] sm:$0xff]
  %v606 = vld [vmem:[%s5 + $0x98] sm:$0xff]
  %v607 = vld [vmem:[%s5 + $0xa0] sm:$0xff]
  %v608 = vld [vmem:[%s5 + $0xa8] sm:$0xff]
  %v609 = vld [vmem:[%s5 + $0xb0] sm:$0xff]
  %v610 = vld [vmem:[%s5 + $0xb8] sm:$0xff]
  %v611 = vld [vmem:[%s5 + $0xc0] sm:$0xff]
  %v612 = vld [vmem:[%s5 + $0xc8] sm:$0xff]
  %v613 = vld [vmem:[%s5 + $0xd0] sm:$0xff]
  %v614 = vld [vmem:[%s5 + $0xd8] sm:$0xff]
  %v615 = vld [vmem:[%s5 + $0xe0] sm:$0xff]
  %v616 = vld [vmem:[%s5 + $0xe8] sm:$0xff]
  %v617 = vld [vmem:[%s5 + $0xf0] sm:$0xff]
  %v618 = vld [vmem:[%s5 + $0xf8] sm:$0xff]
  %v619 = vld [vmem:[%s6] sm:$0xf]
  %s620 = smul.u32 0, 4
  %s621 = smul.addr %s620, 8
  %s622 = scalar_lea.vmem [#allocation2], %s621
  %v623 = vld [vmem:[%s622] sm:$0xff]
  %v624 = vld [vmem:[%s622 + $0x8] sm:$0xff]
  %v625 = vld [vmem:[%s622 + $0x10] sm:$0xff]
  %v626 = vld [vmem:[%s622 + $0x18] sm:$0xff]
  %v659 = vunpack.c.l.b16 %v523
  %v660 = vunpack.c.h.b16 %v523
  %v661 = vunpack.c.l.b16 %v524
  %v662 = vunpack.c.h.b16 %v524
  %v663 = vunpack.c.l.b16 %v525
  %v664 = vunpack.c.h.b16 %v525
  %v665 = vunpack.c.l.b16 %v526
  %v666 = vunpack.c.h.b16 %v526
  %v667 = vunpack.c.l.b16 %v527
  %v668 = vunpack.c.h.b16 %v527
  %v669 = vunpack.c.l.b16 %v528
  %v670 = vunpack.c.h.b16 %v528
  %v671 = vunpack.c.l.b16 %v529
  %v672 = vunpack.c.h.b16 %v529
  %v673 = vunpack.c.l.b16 %v530
  %v674 = vunpack.c.h.b16 %v530
  %v675 = vunpack.c.l.b16 %v531
  %v676 = vunpack.c.h.b16 %v531
  %v677 = vunpack.c.l.b16 %v532
  %v678 = vunpack.c.h.b16 %v532
  %v679 = vunpack.c.l.b16 %v533
  %v680 = vunpack.c.h.b16 %v533
  %v681 = vunpack.c.l.b16 %v534
  %v682 = vunpack.c.h.b16 %v534
  %v683 = vunpack.c.l.b16 %v535
  %v684 = vunpack.c.h.b16 %v535
  %v685 = vunpack.c.l.b16 %v536
  %v686 = vunpack.c.h.b16 %v536
  %v687 = vunpack.c.l.b16 %v537
  %v688 = vunpack.c.h.b16 %v537
  %v689 = vunpack.c.l.b16 %v538
  %v690 = vunpack.c.h.b16 %v538
  %v691 = vunpack.c.l.b16 %v539
  %v692 = vunpack.c.h.b16 %v539
  %v693 = vunpack.c.l.b16 %v540
  %v694 = vunpack.c.h.b16 %v540
  %v695 = vunpack.c.l.b16 %v541
  %v696 = vunpack.c.h.b16 %v541
  %v697 = vunpack.c.l.b16 %v542
  %v698 = vunpack.c.h.b16 %v542
  %v699 = vunpack.c.l.b16 %v543
  %v700 = vunpack.c.h.b16 %v543
  %v701 = vunpack.c.l.b16 %v544
  %v702 = vunpack.c.h.b16 %v544
  %v703 = vunpack.c.l.b16 %v545
  %v704 = vunpack.c.h.b16 %v545
  %v705 = vunpack.c.l.b16 %v546
  %v706 = vunpack.c.h.b16 %v546
  %v707 = vunpack.c.l.b16 %v547
  %v708 = vunpack.c.h.b16 %v547
  %v709 = vunpack.c.l.b16 %v548
  %v710 = vunpack.c.h.b16 %v548
  %v711 = vunpack.c.l.b16 %v549
  %v712 = vunpack.c.h.b16 %v549
  %v713 = vunpack.c.l.b16 %v550
  %v714 = vunpack.c.h.b16 %v550
  %v715 = vunpack.c.l.b16 %v551
  %v716 = vunpack.c.h.b16 %v551
  %v717 = vunpack.c.l.b16 %v552
  %v718 = vunpack.c.h.b16 %v552
  %v719 = vunpack.c.l.b16 %v553
  %v720 = vunpack.c.h.b16 %v553
  %v721 = vunpack.c.l.b16 %v554
  %v722 = vunpack.c.h.b16 %v554
  %v723 = vpack.c.b16 %v663, %v659
  %v724 = vpack.c.b16 %v664, %v660
  %v725 = vpack.c.b16 %v665, %v661
  %v726 = vpack.c.b16 %v666, %v662
  %v727 = vpack.c.b16 %v671, %v667
  %v728 = vpack.c.b16 %v672, %v668
  %v729 = vpack.c.b16 %v673, %v669
  %v730 = vpack.c.b16 %v674, %v670
  %v731 = vpack.c.b16 %v679, %v675
  %v732 = vpack.c.b16 %v680, %v676
  %v733 = vpack.c.b16 %v681, %v677
  %v734 = vpack.c.b16 %v682, %v678
  %v735 = vpack.c.b16 %v687, %v683
  %v736 = vpack.c.b16 %v688, %v684
  %v737 = vpack.c.b16 %v689, %v685
  %v738 = vpack.c.b16 %v690, %v686
  %v739 = vpack.c.b16 %v695, %v691
  %v740 = vpack.c.b16 %v696, %v692
  %v741 = vpack.c.b16 %v697, %v693
  %v742 = vpack.c.b16 %v698, %v694
  %v743 = vpack.c.b16 %v703, %v699
  %v744 = vpack.c.b16 %v704, %v700
  %v745 = vpack.c.b16 %v705, %v701
  %v746 = vpack.c.b16 %v706, %v702
  %v747 = vpack.c.b16 %v711, %v707
  %v748 = vpack.c.b16 %v712, %v708
  %v749 = vpack.c.b16 %v713, %v709
  %v750 = vpack.c.b16 %v714, %v710
  %v751 = vpack.c.b16 %v719, %v715
  %v752 = vpack.c.b16 %v720, %v716
  %v753 = vpack.c.b16 %v721, %v717
  %v754 = vpack.c.b16 %v722, %v718
  %787 = vmatprep.subr.bf16.mxu0 %v752
  %788 = vmatpush1.bf16.msra.mxu0 %v751
  %789 = vmatprep.subr.bf16.mxu0 %v748
  %790 = vmatpush1.bf16.msra.mxu0 %v747
  %791 = vmatprep.subr.bf16.mxu0 %v744
  %792 = vmatpush1.bf16.msra.mxu0 %v743
  %793 = vmatprep.subr.bf16.mxu0 %v740
  %794 = vmatpush1.bf16.msra.mxu0 %v739
  %795 = vmatprep.subr.bf16.mxu0 %v736
  %796 = vmatpush1.bf16.msra.mxu0 %v735
  %797 = vmatprep.subr.bf16.mxu0 %v732
  %798 = vmatpush1.bf16.msra.mxu0 %v731
  %799 = vmatprep.subr.bf16.mxu0 %v728
  %800 = vmatpush1.bf16.msra.mxu0 %v727
  %801 = vmatprep.subr.bf16.mxu0 %v724
  %802 = vmatpush1.bf16.msra.mxu0 %v723
  %803 = vmatprep.subr.bf16.mxu0 0
  %804 = vmatpush2.bf16.msra.mxu0 0
  %805 = vmatprep.subr.bf16.mxu0 0
  %806 = vmatpush2.bf16.msra.mxu0 0
  %807 = vmatprep.subr.bf16.mxu0 0
  %808 = vmatpush2.bf16.msra.mxu0 0
  %809 = vmatprep.subr.bf16.mxu0 0
  %810 = vmatpush2.bf16.msra.mxu0 0
  %811 = vmatprep.subr.bf16.mxu0 0
  %812 = vmatpush2.bf16.msra.mxu0 0
  %813 = vmatprep.subr.bf16.mxu0 0
  %814 = vmatpush2.bf16.msra.mxu0 0
  %815 = vmatprep.subr.bf16.mxu0 0
  %816 = vmatpush2.bf16.msra.mxu0 0
  %817 = vmatprep.subr.bf16.mxu0 0
  %818 = vmatpush2.bf16.msra.mxu0 0
  %819 = vmatprep.mubr.bf16.mxu0 0
  %820 = vmatmul.mubr.bf16.gmra.mxu0 0
  %v821 = vpop.f32.mrf.mxu0
  %v822 = vadd.f32 0.0, %v821
  %v823 = vpop.f32.mrf.mxu0
  %v824 = vadd.f32 0.0, %v823
  %v825 = vpop.f32.mrf.mxu0
  %v826 = vpop.f32.mrf.mxu0
  %827 = vdwg.mxu0
  %828 = vmatprep.subr.bf16.mxu0 %v754
  %829 = vmatpush1.bf16.msra.mxu0 %v753
  %830 = vmatprep.subr.bf16.mxu0 %v750
  %831 = vmatpush1.bf16.msra.mxu0 %v749
  %832 = vmatprep.subr.bf16.mxu0 %v746
  %833 = vmatpush1.bf16.msra.mxu0 %v745
  %834 = vmatprep.subr.bf16.mxu0 %v742
  %835 = vmatpush1.bf16.msra.mxu0 %v741
  %836 = vmatprep.subr.bf16.mxu0 %v738
  %837 = vmatpush1.bf16.msra.mxu0 %v737
  %838 = vmatprep.subr.bf16.mxu0 %v734
  %839 = vmatpush1.bf16.msra.mxu0 %v733
  %840 = vmatprep.subr.bf16.mxu0 %v730
  %841 = vmatpush1.bf16.msra.mxu0 %v729
  %842 = vmatprep.subr.bf16.mxu0 %v726
  %843 = vmatpush1.bf16.msra.mxu0 %v725
  %844 = vmatprep.subr.bf16.mxu0 0
  %845 = vmatpush2.bf16.msra.mxu0 0
  %846 = vmatprep.subr.bf16.mxu0 0
  %847 = vmatpush2.bf16.msra.mxu0 0
  %848 = vmatprep.subr.bf16.mxu0 0
  %849 = vmatpush2.bf16.msra.mxu0 0
  %850 = vmatprep.subr.bf16.mxu0 0
  %851 = vmatpush2.bf16.msra.mxu0 0
  %852 = vmatprep.subr.bf16.mxu0 0
  %853 = vmatpush2.bf16.msra.mxu0 0
  %854 = vmatprep.subr.bf16.mxu0 0
  %855 = vmatpush2.bf16.msra.mxu0 0
  %856 = vmatprep.subr.bf16.mxu0 0
  %857 = vmatpush2.bf16.msra.mxu0 0
  %858 = vmatprep.subr.bf16.mxu0 0
  %859 = vmatpush2.bf16.msra.mxu0 0
  %860 = vmatprep.mubr.bf16.mxu0 0
  %861 = vmatmul.mubr.bf16.gmra.mxu0 0
  %v862 = vpop.f32.mrf.mxu0
  %v863 = vadd.f32 0.0, %v862
  %v864 = vpop.f32.mrf.mxu0
  %v865 = vadd.f32 0.0, %v864
  %v866 = vpop.f32.mrf.mxu0
  %v867 = vpop.f32.mrf.mxu0
  %868 = vdwg.mxu0
  %v869 = vadd.f32 %v623, %v822
  %v870 = vadd.f32 %v624, %v824
  %v871 = vadd.f32 %v625, %v863
  %v872 = vadd.f32 %v626, %v865
  %v873 = vmul.f32 %v869, 0.5
  %v874 = vmul.f32 %v870, 0.5
  %v875 = vmul.f32 %v871, 0.5
  %v876 = vtanh.pop %v873
  %v877 = vtanh.pop %v874
  %v878 = vtanh.pop %v875
  %v879 = vmul.f32 %v876, 0.5
  %v880 = vmul.f32 %v877, 0.5
  %v881 = vmul.f32 %v878, 0.5
  %v882 = vadd.f32 %v879, 0.5
  %v883 = vadd.f32 %v880, 0.5
  %v884 = vadd.f32 %v881, 0.5
  %v885 = vtanh.pop %v872
  %v886 = vmul.f32 %v883, 0.0
  %v887 = vmul.f32 %v882, %v885
  %v888 = vadd.f32 %v886, %v887
  %v889 = vtanh.pop %v888
  %v890 = vmul.f32 %v884, %v889
  %v891 = vpack.c.bf16 %v890, %v890
  %v924 = vunpack.c.l.b16 %v587
  %v925 = vunpack.c.h.b16 %v587
  %v926 = vunpack.c.l.b16 %v588
  %v927 = vunpack.c.h.b16 %v588
  %v928 = vunpack.c.l.b16 %v589
  %v929 = vunpack.c.h.b16 %v589
  %v930 = vunpack.c.l.b16 %v590
  %v931 = vunpack.c.h.b16 %v590
  %v932 = vunpack.c.l.b16 %v591
  %v933 = vunpack.c.h.b16 %v591
  %v934 = vunpack.c.l.b16 %v592
  %v935 = vunpack.c.h.b16 %v592
  %v936 = vunpack.c.l.b16 %v593
  %v937 = vunpack.c.h.b16 %v593
  %v938 = vunpack.c.l.b16 %v594
  %v939 = vunpack.c.h.b16 %v594
  %v940 = vunpack.c.l.b16 %v595
  %v941 = vunpack.c.h.b16 %v595
  %v942 = vunpack.c.l.b16 %v596
  %v943 = vunpack.c.h.b16 %v596
  %v944 = vunpack.c.l.b16 %v597
  %v945 = vunpack.c.h.b16 %v597
  %v946 = vunpack.c.l.b16 %v598
  %v947 = vunpack.c.h.b16 %v598
  %v948 = vunpack.c.l.b16 %v599
  %v949 = vunpack.c.h.b16 %v599
  %v950 = vunpack.c.l.b16 %v600
  %v951 = vunpack.c.h.b16 %v600
  %v952 = vunpack.c.l.b16 %v601
  %v953 = vunpack.c.h.b16 %v601
  %v954 = vunpack.c.l.b16 %v602
  %v955 = vunpack.c.h.b16 %v602
  %v956 = vunpack.c.l.b16 %v603
  %v957 = vunpack.c.h.b16 %v603
  %v958 = vunpack.c.l.b16 %v604
  %v959 = vunpack.c.h.b16 %v604
  %v960 = vunpack.c.l.b16 %v605
  %v961 = vunpack.c.h.b16 %v605
  %v962 = vunpack.c.l.b16 %v606
  %v963 = vunpack.c.h.b16 %v606
  %v964 = vunpack.c.l.b16 %v607
  %v965 = vunpack.c.h.b16 %v607
  %v966 = vunpack.c.l.b16 %v608
  %v967 = vunpack.c.h.b16 %v608
  %v968 = vunpack.c.l.b16 %v609
  %v969 = vunpack.c.h.b16 %v609
  %v970 = vunpack.c.l.b16 %v610
  %v971 = vunpack.c.h.b16 %v610
  %v972 = vunpack.c.l.b16 %v611
  %v973 = vunpack.c.h.b16 %v611
  %v974 = vunpack.c.l.b16 %v612
  %v975 = vunpack.c.h.b16 %v612
  %v976 = vunpack.c.l.b16 %v613
  %v977 = vunpack.c.h.b16 %v613
  %v978 = vunpack.c.l.b16 %v614
  %v979 = vunpack.c.h.b16 %v614
  %v980 = vunpack.c.l.b16 %v615
  %v981 = vunpack.c.h.b16 %v615
  %v982 = vunpack.c.l.b16 %v616
  %v983 = vunpack.c.h.b16 %v616
  %v984 = vunpack.c.l.b16 %v617
  %v985 = vunpack.c.h.b16 %v617
  %v986 = vunpack.c.l.b16 %v618
  %v987 = vunpack.c.h.b16 %v618
  %v988 = vpack.c.b16 %v928, %v924
  %v989 = vpack.c.b16 %v929, %v925
  %v990 = vpack.c.b16 %v930, %v926
  %v991 = vpack.c.b16 %v931, %v927
  %v992 = vpack.c.b16 %v936, %v932
  %v993 = vpack.c.b16 %v937, %v933
  %v994 = vpack.c.b16 %v938, %v934
  %v995 = vpack.c.b16 %v939, %v935
  %v996 = vpack.c.b16 %v944, %v940
  %v997 = vpack.c.b16 %v945, %v941
  %v998 = vpack.c.b16 %v946, %v942
  %v999 = vpack.c.b16 %v947, %v943
  %v1000 = vpack.c.b16 %v952, %v948
  %v1001 = vpack.c.b16 %v953, %v949
  %v1002 = vpack.c.b16 %v954, %v950
  %v1003 = vpack.c.b16 %v955, %v951
  %v1004 = vpack.c.b16 %v960, %v956
  %v1005 = vpack.c.b16 %v961, %v957
  %v1006 = vpack.c.b16 %v962, %v958
  %v1007 = vpack.c.b16 %v963, %v959
  %v1008 = vpack.c.b16 %v968, %v964
  %v1009 = vpack.c.b16 %v969, %v965
  %v1010 = vpack.c.b16 %v970, %v966
  %v1011 = vpack.c.b16 %v971, %v967
  %v1012 = vpack.c.b16 %v976, %v972
  %v1013 = vpack.c.b16 %v977, %v973
  %v1014 = vpack.c.b16 %v978, %v974
  %v1015 = vpack.c.b16 %v979, %v975
  %v1016 = vpack.c.b16 %v984, %v980
  %v1017 = vpack.c.b16 %v985, %v981
  %v1018 = vpack.c.b16 %v986, %v982
  %v1019 = vpack.c.b16 %v987, %v983
  %1052 = vmatprep.subr.bf16.mxu0 %v1017
  %1053 = vmatpush1.bf16.msra.mxu0 %v1016
  %1054 = vmatprep.subr.bf16.mxu0 %v1013
  %1055 = vmatpush1.bf16.msra.mxu0 %v1012
  %1056 = vmatprep.subr.bf16.mxu0 %v1009
  %1057 = vmatpush1.bf16.msra.mxu0 %v1008
  %1058 = vmatprep.subr.bf16.mxu0 %v1005
  %1059 = vmatpush1.bf16.msra.mxu0 %v1004
  %1060 = vmatprep.subr.bf16.mxu0 %v1001
  %1061 = vmatpush1.bf16.msra.mxu0 %v1000
  %1062 = vmatprep.subr.bf16.mxu0 %v997
  %1063 = vmatpush1.bf16.msra.mxu0 %v996
  %1064 = vmatprep.subr.bf16.mxu0 %v993
  %1065 = vmatpush1.bf16.msra.mxu0 %v992
  %1066 = vmatprep.subr.bf16.mxu0 %v989
  %1067 = vmatpush1.bf16.msra.mxu0 %v988
  %1068 = vmatprep.subr.bf16.mxu0 0
  %1069 = vmatpush2.bf16.msra.mxu0 0
  %1070 = vmatprep.subr.bf16.mxu0 0
  %1071 = vmatpush2.bf16.msra.mxu0 0
  %1072 = vmatprep.subr.bf16.mxu0 0
  %1073 = vmatpush2.bf16.msra.mxu0 0
  %1074 = vmatprep.subr.bf16.mxu0 0
  %1075 = vmatpush2.bf16.msra.mxu0 0
  %1076 = vmatprep.subr.bf16.mxu0 0
  %1077 = vmatpush2.bf16.msra.mxu0 0
  %1078 = vmatprep.subr.bf16.mxu0 0
  %1079 = vmatpush2.bf16.msra.mxu0 0
  %1080 = vmatprep.subr.bf16.mxu0 0
  %1081 = vmatpush2.bf16.msra.mxu0 0
  %1082 = vmatprep.subr.bf16.mxu0 0
  %1083 = vmatpush2.bf16.msra.mxu0 0
  %1084 = vmatprep.mubr.bf16.mxu0 0
  %1085 = vmatmul.mubr.bf16.gmra.mxu0 0
  %v1086 = vpop.f32.mrf.mxu0
  %v1087 = vadd.f32 0.0, %v1086
  %v1088 = vpop.f32.mrf.mxu0
  %v1089 = vadd.f32 0.0, %v1088
  %v1090 = vpop.f32.mrf.mxu0
  %v1091 = vpop.f32.mrf.mxu0
  %1092 = vdwg.mxu0
  %1093 = vmatprep.subr.bf16.mxu0 %v1019
  %1094 = vmatpush1.bf16.msra.mxu0 %v1018
  %1095 = vmatprep.subr.bf16.mxu0 %v1015
  %1096 = vmatpush1.bf16.msra.mxu0 %v1014
  %1097 = vmatprep.subr.bf16.mxu0 %v1011
  %1098 = vmatpush1.bf16.msra.mxu0 %v1010
  %1099 = vmatprep.subr.bf16.mxu0 %v1007
  %1100 = vmatpush1.bf16.msra.mxu0 %v1006
  %1101 = vmatprep.subr.bf16.mxu0 %v1003
  %1102 = vmatpush1.bf16.msra.mxu0 %v1002
  %1103 = vmatprep.subr.bf16.mxu0 %v999
  %1104 = vmatpush1.bf16.msra.mxu0 %v998
  %1105 = vmatprep.subr.bf16.mxu0 %v995
  %1106 = vmatpush1.bf16.msra.mxu0 %v994
  %1107 = vmatprep.subr.bf16.mxu0 %v991
  %1108 = vmatpush1.bf16.msra.mxu0 %v990
  %1109 = vmatprep.subr.bf16.mxu0 0
  %1110 = vmatpush2.bf16.msra.mxu0 0
  %1111 = vmatprep.subr.bf16.mxu0 0
  %1112 = vmatpush2.bf16.msra.mxu0 0
  %1113 = vmatprep.subr.bf16.mxu0 0
  %1114 = vmatpush2.bf16.msra.mxu0 0
  %1115 = vmatprep.subr.bf16.mxu0 0
  %1116 = vmatpush2.bf16.msra.mxu0 0
  %1117 = vmatprep.subr.bf16.mxu0 0
  %1118 = vmatpush2.bf16.msra.mxu0 0
  %1119 = vmatprep.subr.bf16.mxu0 0
  %1120 = vmatpush2.bf16.msra.mxu0 0
  %1121 = vmatprep.subr.bf16.mxu0 0
  %1122 = vmatpush2.bf16.msra.mxu0 0
  %1123 = vmatprep.subr.bf16.mxu0 0
  %1124 = vmatpush2.bf16.msra.mxu0 0
  %1125 = vmatprep.mubr.bf16.mxu0 0
  %1126 = vmatmul.mubr.bf16.gmra.mxu0 0
  %v1127 = vpop.f32.mrf.mxu0
  %v1128 = vadd.f32 0.0, %v1127
  %v1129 = vpop.f32.mrf.mxu0
  %v1130 = vadd.f32 0.0, %v1129
  %v1131 = vpop.f32.mrf.mxu0
  %v1132 = vpop.f32.mrf.mxu0
  %1133 = vdwg.mxu0
  %v1166 = vunpack.c.l.b16 %v555
  %v1167 = vunpack.c.h.b16 %v555
  %v1168 = vunpack.c.l.b16 %v556
  %v1169 = vunpack.c.h.b16 %v556
  %v1170 = vunpack.c.l.b16 %v557
  %v1171 = vunpack.c.h.b16 %v557
  %v1172 = vunpack.c.l.b16 %v558
  %v1173 = vunpack.c.h.b16 %v558
  %v1174 = vunpack.c.l.b16 %v559
  %v1175 = vunpack.c.h.b16 %v559
  %v1176 = vunpack.c.l.b16 %v560
  %v1177 = vunpack.c.h.b16 %v560
  %v1178 = vunpack.c.l.b16 %v561
  %v1179 = vunpack.c.h.b16 %v561
  %v1180 = vunpack.c.l.b16 %v562
  %v1181 = vunpack.c.h.b16 %v562
  %v1182 = vunpack.c.l.b16 %v563
  %v1183 = vunpack.c.h.b16 %v563
  %v1184 = vunpack.c.l.b16 %v564
  %v1185 = vunpack.c.h.b16 %v564
  %v1186 = vunpack.c.l.b16 %v565
  %v1187 = vunpack.c.h.b16 %v565
  %v1188 = vunpack.c.l.b16 %v566
  %v1189 = vunpack.c.h.b16 %v566
  %v1190 = vunpack.c.l.b16 %v567
  %v1191 = vunpack.c.h.b16 %v567
  %v1192 = vunpack.c.l.b16 %v568
  %v1193 = vunpack.c.h.b16 %v568
  %v1194 = vunpack.c.l.b16 %v569
  %v1195 = vunpack.c.h.b16 %v569
  %v1196 = vunpack.c.l.b16 %v570
  %v1197 = vunpack.c.h.b16 %v570
  %v1198 = vunpack.c.l.b16 %v571
  %v1199 = vunpack.c.h.b16 %v571
  %v1200 = vunpack.c.l.b16 %v572
  %v1201 = vunpack.c.h.b16 %v572
  %v1202 = vunpack.c.l.b16 %v573
  %v1203 = vunpack.c.h.b16 %v573
  %v1204 = vunpack.c.l.b16 %v574
  %v1205 = vunpack.c.h.b16 %v574
  %v1206 = vunpack.c.l.b16 %v575
  %v1207 = vunpack.c.h.b16 %v575
  %v1208 = vunpack.c.l.b16 %v576
  %v1209 = vunpack.c.h.b16 %v576
  %v1210 = vunpack.c.l.b16 %v577
  %v1211 = vunpack.c.h.b16 %v577
  %v1212 = vunpack.c.l.b16 %v578
  %v1213 = vunpack.c.h.b16 %v578
  %v1214 = vunpack.c.l.b16 %v579
  %v1215 = vunpack.c.h.b16 %v579
  %v1216 = vunpack.c.l.b16 %v580
  %v1217 = vunpack.c.h.b16 %v580
  %v1218 = vunpack.c.l.b16 %v581
  %v1219 = vunpack.c.h.b16 %v581
  %v1220 = vunpack.c.l.b16 %v582
  %v1221 = vunpack.c.h.b16 %v582
  %v1222 = vunpack.c.l.b16 %v583
  %v1223 = vunpack.c.h.b16 %v583
  %v1224 = vunpack.c.l.b16 %v584
  %v1225 = vunpack.c.h.b16 %v584
  %v1226 = vunpack.c.l.b16 %v585
  %v1227 = vunpack.c.h.b16 %v585
  %v1228 = vunpack.c.l.b16 %v586
  %v1229 = vunpack.c.h.b16 %v586
  %v1230 = vpack.c.b16 %v1170, %v1166
  %v1231 = vpack.c.b16 %v1171, %v1167
  %v1232 = vpack.c.b16 %v1172, %v1168
  %v1233 = vpack.c.b16 %v1173, %v1169
  %v1234 = vpack.c.b16 %v1178, %v1174
  %v1235 = vpack.c.b16 %v1179, %v1175
  %v1236 = vpack.c.b16 %v1180, %v1176
  %v1237 = vpack.c.b16 %v1181, %v1177
  %v1238 = vpack.c.b16 %v1186, %v1182
  %v1239 = vpack.c.b16 %v1187, %v1183
  %v1240 = vpack.c.b16 %v1188, %v1184
  %v1241 = vpack.c.b16 %v1189, %v1185
  %v1242 = vpack.c.b16 %v1194, %v1190
  %v1243 = vpack.c.b16 %v1195, %v1191
  %v1244 = vpack.c.b16 %v1196, %v1192
  %v1245 = vpack.c.b16 %v1197, %v1193
  %v1246 = vpack.c.b16 %v1202, %v1198
  %v1247 = vpack.c.b16 %v1203, %v1199
  %v1248 = vpack.c.b16 %v1204, %v1200
  %v1249 = vpack.c.b16 %v1205, %v1201
  %v1250 = vpack.c.b16 %v1210, %v1206
  %v1251 = vpack.c.b16 %v1211, %v1207
  %v1252 = vpack.c.b16 %v1212, %v1208
  %v1253 = vpack.c.b16 %v1213, %v1209
  %v1254 = vpack.c.b16 %v1218, %v1214
  %v1255 = vpack.c.b16 %v1219, %v1215
  %v1256 = vpack.c.b16 %v1220, %v1216
  %v1257 = vpack.c.b16 %v1221, %v1217
  %v1258 = vpack.c.b16 %v1226, %v1222
  %v1259 = vpack.c.b16 %v1227, %v1223
  %v1260 = vpack.c.b16 %v1228, %v1224
  %v1261 = vpack.c.b16 %v1229, %v1225
  %1294 = vmatprep.subr.bf16.mxu0 %v1259
  %1295 = vmatpush1.bf16.msra.mxu0 %v1258
  %1296 = vmatprep.subr.bf16.mxu0 %v1255
  %1297 = vmatpush1.bf16.msra.mxu0 %v1254
  %1298 = vmatprep.subr.bf16.mxu0 %v1251
  %1299 = vmatpush1.bf16.msra.mxu0 %v1250
  %1300 = vmatprep.subr.bf16.mxu0 %v1247
  %1301 = vmatpush1.bf16.msra.mxu0 %v1246
  %1302 = vmatprep.subr.bf16.mxu0 %v1243
  %1303 = vmatpush1.bf16.msra.mxu0 %v1242
  %1304 = vmatprep.subr.bf16.mxu0 %v1239
  %1305 = vmatpush1.bf16.msra.mxu0 %v1238
  %1306 = vmatprep.subr.bf16.mxu0 %v1235
  %1307 = vmatpush1.bf16.msra.mxu0 %v1234
  %1308 = vmatprep.subr.bf16.mxu0 %v1231
  %1309 = vmatpush1.bf16.msra.mxu0 %v1230
  %1310 = vmatprep.subr.bf16.mxu0 0
  %1311 = vmatpush2.bf16.msra.mxu0 0
  %1312 = vmatprep.subr.bf16.mxu0 0
  %1313 = vmatpush2.bf16.msra.mxu0 0
  %1314 = vmatprep.subr.bf16.mxu0 0
  %1315 = vmatpush2.bf16.msra.mxu0 0
  %1316 = vmatprep.subr.bf16.mxu0 0
  %1317 = vmatpush2.bf16.msra.mxu0 0
  %1318 = vmatprep.subr.bf16.mxu0 0
  %1319 = vmatpush2.bf16.msra.mxu0 0
  %1320 = vmatprep.subr.bf16.mxu0 0
  %1321 = vmatpush2.bf16.msra.mxu0 0
  %1322 = vmatprep.subr.bf16.mxu0 0
  %1323 = vmatpush2.bf16.msra.mxu0 0
  %1324 = vmatprep.subr.bf16.mxu0 0
  %1325 = vmatpush2.bf16.msra.mxu0 0
  %1326 = vmatprep.mubr.bf16.mxu0 0
  %1327 = vmatmul.mubr.bf16.gmra.mxu0 %v891
  %v1328 = vpop.f32.mrf.mxu0
  %v1329 = vadd.f32 %v1087, %v1328
  %v1330 = vpop.f32.mrf.mxu0
  %v1331 = vadd.f32 %v1089, %v1330
  %v1332 = vpop.f32.mrf.mxu0
  %v1333 = vpop.f32.mrf.mxu0
  %1334 = vdwg.mxu0
  %1335 = vmatprep.subr.bf16.mxu0 %v1261
  %1336 = vmatpush1.bf16.msra.mxu0 %v1260
  %1337 = vmatprep.subr.bf16.mxu0 %v1257
  %1338 = vmatpush1.bf16.msra.mxu0 %v1256
  %1339 = vmatprep.subr.bf16.mxu0 %v1253
  %1340 = vmatpush1.bf16.msra.mxu0 %v1252
  %1341 = vmatprep.subr.bf16.mxu0 %v1249
  %1342 = vmatpush1.bf16.msra.mxu0 %v1248
  %1343 = vmatprep.subr.bf16.mxu0 %v1245
  %1344 = vmatpush1.bf16.msra.mxu0 %v1244
  %1345 = vmatprep.subr.bf16.mxu0 %v1241
  %1346 = vmatpush1.bf16.msra.mxu0 %v1240
  %1347 = vmatprep.subr.bf16.mxu0 %v1237
  %1348 = vmatpush1.bf16.msra.mxu0 %v1236
  %1349 = vmatprep.subr.bf16.mxu0 %v1233
  %1350 = vmatpush1.bf16.msra.mxu0 %v1232
  %1351 = vmatprep.subr.bf16.mxu0 0
  %1352 = vmatpush2.bf16.msra.mxu0 0
  %1353 = vmatprep.subr.bf16.mxu0 0
  %1354 = vmatpush2.bf16.msra.mxu0 0
  %1355 = vmatprep.subr.bf16.mxu0 0
  %1356 = vmatpush2.bf16.msra.mxu0 0
  %1357 = vmatprep.subr.bf16.mxu0 0
  %1358 = vmatpush2.bf16.msra.mxu0 0
  %1359 = vmatprep.subr.bf16.mxu0 0
  %1360 = vmatpush2.bf16.msra.mxu0 0
  %1361 = vmatprep.subr.bf16.mxu0 0
  %1362 = vmatpush2.bf16.msra.mxu0 0
  %1363 = vmatprep.subr.bf16.mxu0 0
  %1364 = vmatpush2.bf16.msra.mxu0 0
  %1365 = vmatprep.subr.bf16.mxu0 0
  %1366 = vmatpush2.bf16.msra.mxu0 0
  %1367 = vmatprep.mubr.bf16.mxu0 0
  %1368 = vmatmul.mubr.bf16.gmra.mxu0 %v891
  %v1369 = vpop.f32.mrf.mxu0
  %v1370 = vadd.f32 %v1128, %v1369
  %v1371 = vpop.f32.mrf.mxu0
  %v1372 = vadd.f32 %v1130, %v1371
  %v1373 = vpop.f32.mrf.mxu0
  %v1374 = vpop.f32.mrf.mxu0
  %1375 = vdwg.mxu0
  %v1377 = vlaneseq
  %v1378 = vshrl.u32 %v1377, 7
  %v1379 = vsub.s32 0, %v1378
  %v1380 = vrot.slane %v619, %v1379
  %v1381 = vlaneseq
  %v1382 = vshrl.u32 %v1381, 7
  %v1383 = vsub.s32 1, %v1382
  %v1384 = vrot.slane %v619, %v1383
  %v1385 = vlaneseq
  %v1386 = vshrl.u32 %v1385, 7
  %v1387 = vsub.s32 2, %v1386
  %v1388 = vrot.slane %v619, %v1387
  %v1389 = vlaneseq
  %v1390 = vshrl.u32 %v1389, 7
  %v1391 = vsub.s32 3, %v1390
  %v1392 = vrot.slane %v619, %v1391
  %v1397 = vadd.f32 %v1329, %v1380
  %v1398 = vadd.f32 %v1331, %v1384
  %v1399 = vadd.f32 %v1370, %v1388
  %v1400 = vadd.f32 %v1372, %v1392
  %v1401 = vmul.f32 %v1397, 0.5
  %v1402 = vmul.f32 %v1398, 0.5
  %v1403 = vmul.f32 %v1399, 0.5
  %v1404 = vtanh.pop %v1401
  %v1405 = vtanh.pop %v1402
  %v1406 = vtanh.pop %v1403
  %v1407 = vmul.f32 %v1404, 0.5
  %v1408 = vmul.f32 %v1405, 0.5
  %v1409 = vmul.f32 %v1406, 0.5
  %v1410 = vadd.f32 %v1407, 0.5
  %v1411 = vadd.f32 %v1408, 0.5
  %v1412 = vadd.f32 %v1409, 0.5
  %v1413 = vtanh.pop %v1400
  %v1414 = vmul.f32 %v1411, 0.0
  %v1415 = vmul.f32 %v1410, %v1413
  %v1416 = vadd.f32 %v1414, %v1415
  %v1417 = vtanh.pop %v1416
  %v1418 = vmul.f32 %v1412, %v1417
  %1419 = vst [vmem:[%s7] sm:$0xff] %v1418
  %s1420 = smul.u32 1, 4
  %s1421 = smul.addr %s1420, 8
  %s1422 = scalar_lea.vmem [#allocation2], %s1421
  %v1423 = vld [vmem:[%s1422] sm:$0xff]
  %v1424 = vld [vmem:[%s1422 + $0x8] sm:$0xff]
  %v1425 = vld [vmem:[%s1422 + $0x10] sm:$0xff]
  %v1426 = vld [vmem:[%s1422 + $0x18] sm:$0xff]
  %1427 = vmatprep.subr.bf16.mxu0 %v752
  %1428 = vmatpush1.bf16.msra.mxu0 %v751
  %1429 = vmatprep.subr.bf16.mxu0 %v748
  %1430 = vmatpush1.bf16.msra.mxu0 %v747
  %1431 = vmatprep.subr.bf16.mxu0 %v744
  %1432 = vmatpush1.bf16.msra.mxu0 %v743
  %1433 = vmatprep.subr.bf16.mxu0 %v740
  %1434 = vmatpush1.bf16.msra.mxu0 %v739
  %1435 = vmatprep.subr.bf16.mxu0 %v736
  %1436 = vmatpush1.bf16.msra.mxu0 %v735
  %1437 = vmatprep.subr.bf16.mxu0 %v732
  %1438 = vmatpush1.bf16.msra.mxu0 %v731
  %1439 = vmatprep.subr.bf16.mxu0 %v728
  %1440 = vmatpush1.bf16.msra.mxu0 %v727
  %1441 = vmatprep.subr.bf16.mxu0 %v724
  %1442 = vmatpush1.bf16.msra.mxu0 %v723
  %1443 = vmatprep.subr.bf16.mxu0 0
  %1444 = vmatpush2.bf16.msra.mxu0 0
  %1445 = vmatprep.subr.bf16.mxu0 0
  %1446 = vmatpush2.bf16.msra.mxu0 0
  %1447 = vmatprep.subr.bf16.mxu0 0
  %1448 = vmatpush2.bf16.msra.mxu0 0
  %1449 = vmatprep.subr.bf16.mxu0 0
  %1450 = vmatpush2.bf16.msra.mxu0 0
  %1451 = vmatprep.subr.bf16.mxu0 0
  %1452 = vmatpush2.bf16.msra.mxu0 0
  %1453 = vmatprep.subr.bf16.mxu0 0
  %1454 = vmatpush2.bf16.msra.mxu0 0
  %1455 = vmatprep.subr.bf16.mxu0 0
  %1456 = vmatpush2.bf16.msra.mxu0 0
  %1457 = vmatprep.subr.bf16.mxu0 0
  %1458 = vmatpush2.bf16.msra.mxu0 0
  %1459 = vmatprep.mubr.bf16.mxu0 0
  %1460 = vmatmul.mubr.bf16.gmra.mxu0 %v891
  %v1461 = vpop.f32.mrf.mxu0
  %v1462 = vadd.f32 0.0, %v1461
  %v1463 = vpop.f32.mrf.mxu0
  %v1464 = vadd.f32 0.0, %v1463
  %v1465 = vpop.f32.mrf.mxu0
  %v1466 = vpop.f32.mrf.mxu0
  %1467 = vdwg.mxu0
  %1468 = vmatprep.subr.bf16.mxu0 %v754
  %1469 = vmatpush1.bf16.msra.mxu0 %v753
  %1470 = vmatprep.subr.bf16.mxu0 %v750
  %1471 = vmatpush1.bf16.msra.mxu0 %v749
  %1472 = vmatprep.subr.bf16.mxu0 %v746
  %1473 = vmatpush1.bf16.msra.mxu0 %v745
  %1474 = vmatprep.subr.bf16.mxu0 %v742
  %1475 = vmatpush1.bf16.msra.mxu0 %v741
  %1476 = vmatprep.subr.bf16.mxu0 %v738
  %1477 = vmatpush1.bf16.msra.mxu0 %v737
  %1478 = vmatprep.subr.bf16.mxu0 %v734
  %1479 = vmatpush1.bf16.msra.mxu0 %v733
  %1480 = vmatprep.subr.bf16.mxu0 %v730
  %1481 = vmatpush1.bf16.msra.mxu0 %v729
  %1482 = vmatprep.subr.bf16.mxu0 %v726
  %1483 = vmatpush1.bf16.msra.mxu0 %v725
  %1484 = vmatprep.subr.bf16.mxu0 0
  %1485 = vmatpush2.bf16.msra.mxu0 0
  %1486 = vmatprep.subr.bf16.mxu0 0
  %1487 = vmatpush2.bf16.msra.mxu0 0
  %1488 = vmatprep.subr.bf16.mxu0 0
  %1489 = vmatpush2.bf16.msra.mxu0 0
  %1490 = vmatprep.subr.bf16.mxu0 0
  %1491 = vmatpush2.bf16.msra.mxu0 0
  %1492 = vmatprep.subr.bf16.mxu0 0
  %1493 = vmatpush2.bf16.msra.mxu0 0
  %1494 = vmatprep.subr.bf16.mxu0 0
  %1495 = vmatpush2.bf16.msra.mxu0 0
  %1496 = vmatprep.subr.bf16.mxu0 0
  %1497 = vmatpush2.bf16.msra.mxu0 0
  %1498 = vmatprep.subr.bf16.mxu0 0
  %1499 = vmatpush2.bf16.msra.mxu0 0
  %1500 = vmatprep.mubr.bf16.mxu0 0
  %1501 = vmatmul.mubr.bf16.gmra.mxu0 %v891
  %v1502 = vpop.f32.mrf.mxu0
  %v1503 = vadd.f32 0.0, %v1502
  %v1504 = vpop.f32.mrf.mxu0
  %v1505 = vadd.f32 0.0, %v1504
  %v1506 = vpop.f32.mrf.mxu0
  %v1507 = vpop.f32.mrf.mxu0
  %1508 = vdwg.mxu0
  %v1509 = vadd.f32 %v1423, %v1462
  %v1510 = vadd.f32 %v1424, %v1464
  %v1511 = vadd.f32 %v1425, %v1503
  %v1512 = vadd.f32 %v1426, %v1505
  %v1513 = vmul.f32 %v1509, 0.5
  %v1514 = vmul.f32 %v1510, 0.5
  %v1515 = vmul.f32 %v1511, 0.5
  %v1516 = vtanh.pop %v1513
  %v1517 = vtanh.pop %v1514
  %v1518 = vtanh.pop %v1515
  %v1519 = vmul.f32 %v1516, 0.5
  %v1520 = vmul.f32 %v1517, 0.5
  %v1521 = vmul.f32 %v1518, 0.5
  %v1522 = vadd.f32 %v1519, 0.5
  %v1523 = vadd.f32 %v1520, 0.5
  %v1524 = vadd.f32 %v1521, 0.5
  %v1525 = vtanh.pop %v1512
  %v1526 = vmul.f32 %v1523, %v888
  %v1527 = vmul.f32 %v1522, %v1525
  %v1528 = vadd.f32 %v1526, %v1527
  %v1529 = vtanh.pop %v1528
  %v1530 = vmul.f32 %v1524, %v1529
  %v1531 = vpack.c.bf16 %v1530, %v1530
  %v1532 = vpack.c.bf16 %v1418, %v1418
  %1533 = vmatprep.subr.bf16.mxu0 %v1017
  %1534 = vmatpush1.bf16.msra.mxu0 %v1016
  %1535 = vmatprep.subr.bf16.mxu0 %v1013
  %1536 = vmatpush1.bf16.msra.mxu0 %v1012
  %1537 = vmatprep.subr.bf16.mxu0 %v1009
  %1538 = vmatpush1.bf16.msra.mxu0 %v1008
  %1539 = vmatprep.subr.bf16.mxu0 %v1005
  %1540 = vmatpush1.bf16.msra.mxu0 %v1004
  %1541 = vmatprep.subr.bf16.mxu0 %v1001
  %1542 = vmatpush1.bf16.msra.mxu0 %v1000
  %1543 = vmatprep.subr.bf16.mxu0 %v997
  %1544 = vmatpush1.bf16.msra.mxu0 %v996
  %1545 = vmatprep.subr.bf16.mxu0 %v993
  %1546 = vmatpush1.bf16.msra.mxu0 %v992
  %1547 = vmatprep.subr.bf16.mxu0 %v989
  %1548 = vmatpush1.bf16.msra.mxu0 %v988
  %1549 = vmatprep.subr.bf16.mxu0 0
  %1550 = vmatpush2.bf16.msra.mxu0 0
  %1551 = vmatprep.subr.bf16.mxu0 0
  %1552 = vmatpush2.bf16.msra.mxu0 0
  %1553 = vmatprep.subr.bf16.mxu0 0
  %1554 = vmatpush2.bf16.msra.mxu0 0
  %1555 = vmatprep.subr.bf16.mxu0 0
  %1556 = vmatpush2.bf16.msra.mxu0 0
  %1557 = vmatprep.subr.bf16.mxu0 0
  %1558 = vmatpush2.bf16.msra.mxu0 0
  %1559 = vmatprep.subr.bf16.mxu0 0
  %1560 = vmatpush2.bf16.msra.mxu0 0
  %1561 = vmatprep.subr.bf16.mxu0 0
  %1562 = vmatpush2.bf16.msra.mxu0 0
  %1563 = vmatprep.subr.bf16.mxu0 0
  %1564 = vmatpush2.bf16.msra.mxu0 0
  %1565 = vmatprep.mubr.bf16.mxu0 0
  %1566 = vmatmul.mubr.bf16.gmra.mxu0 %v1532
  %v1567 = vpop.f32.mrf.mxu0
  %v1568 = vadd.f32 0.0, %v1567
  %v1569 = vpop.f32.mrf.mxu0
  %v1570 = vadd.f32 0.0, %v1569
  %v1571 = vpop.f32.mrf.mxu0
  %v1572 = vpop.f32.mrf.mxu0
  %1573 = vdwg.mxu0
  %1574 = vmatprep.subr.bf16.mxu0 %v1019
  %1575 = vmatpush1.bf16.msra.mxu0 %v1018
  %1576 = vmatprep.subr.bf16.mxu0 %v1015
  %1577 = vmatpush1.bf16.msra.mxu0 %v1014
  %1578 = vmatprep.subr.bf16.mxu0 %v1011
  %1579 = vmatpush1.bf16.msra.mxu0 %v1010
  %1580 = vmatprep.subr.bf16.mxu0 %v1007
  %1581 = vmatpush1.bf16.msra.mxu0 %v1006
  %1582 = vmatprep.subr.bf16.mxu0 %v1003
  %1583 = vmatpush1.bf16.msra.mxu0 %v1002
  %1584 = vmatprep.subr.bf16.mxu0 %v999
  %1585 = vmatpush1.bf16.msra.mxu0 %v998
  %1586 = vmatprep.subr.bf16.mxu0 %v995
  %1587 = vmatpush1.bf16.msra.mxu0 %v994
  %1588 = vmatprep.subr.bf16.mxu0 %v991
  %1589 = vmatpush1.bf16.msra.mxu0 %v990
  %1590 = vmatprep.subr.bf16.mxu0 0
  %1591 = vmatpush2.bf16.msra.mxu0 0
  %1592 = vmatprep.subr.bf16.mxu0 0
  %1593 = vmatpush2.bf16.msra.mxu0 0
  %1594 = vmatprep.subr.bf16.mxu0 0
  %1595 = vmatpush2.bf16.msra.mxu0 0
  %1596 = vmatprep.subr.bf16.mxu0 0
  %1597 = vmatpush2.bf16.msra.mxu0 0
  %1598 = vmatprep.subr.bf16.mxu0 0
  %1599 = vmatpush2.bf16.msra.mxu0 0
  %1600 = vmatprep.subr.bf16.mxu0 0
  %1601 = vmatpush2.bf16.msra.mxu0 0
  %1602 = vmatprep.subr.bf16.mxu0 0
  %1603 = vmatpush2.bf16.msra.mxu0 0
  %1604 = vmatprep.subr.bf16.mxu0 0
  %1605 = vmatpush2.bf16.msra.mxu0 0
  %1606 = vmatprep.mubr.bf16.mxu0 0
  %1607 = vmatmul.mubr.bf16.gmra.mxu0 %v1532
  %v1608 = vpop.f32.mrf.mxu0
  %v1609 = vadd.f32 0.0, %v1608
  %v1610 = vpop.f32.mrf.mxu0
  %v1611 = vadd.f32 0.0, %v1610
  %v1612 = vpop.f32.mrf.mxu0
  %v1613 = vpop.f32.mrf.mxu0
  %1614 = vdwg.mxu0
  %1615 = vmatprep.subr.bf16.mxu0 %v1259
  %1616 = vmatpush1.bf16.msra.mxu0 %v1258
  %1617 = vmatprep.subr.bf16.mxu0 %v1255
  %1618 = vmatpush1.bf16.msra.mxu0 %v1254
  %1619 = vmatprep.subr.bf16.mxu0 %v1251
  %1620 = vmatpush1.bf16.msra.mxu0 %v1250
  %1621 = vmatprep.subr.bf16.mxu0 %v1247
  %1622 = vmatpush1.bf16.msra.mxu0 %v1246
  %1623 = vmatprep.subr.bf16.mxu0 %v1243
  %1624 = vmatpush1.bf16.msra.mxu0 %v1242
  %1625 = vmatprep.subr.bf16.mxu0 %v1239
  %1626 = vmatpush1.bf16.msra.mxu0 %v1238
  %1627 = vmatprep.subr.bf16.mxu0 %v1235
  %1628 = vmatpush1.bf16.msra.mxu0 %v1234
  %1629 = vmatprep.subr.bf16.mxu0 %v1231
  %1630 = vmatpush1.bf16.msra.mxu0 %v1230
  %1631 = vmatprep.subr.bf16.mxu0 0
  %1632 = vmatpush2.bf16.msra.mxu0 0
  %1633 = vmatprep.subr.bf16.mxu0 0
  %1634 = vmatpush2.bf16.msra.mxu0 0
  %1635 = vmatprep.subr.bf16.mxu0 0
  %1636 = vmatpush2.bf16.msra.mxu0 0
  %1637 = vmatprep.subr.bf16.mxu0 0
  %1638 = vmatpush2.bf16.msra.mxu0 0
  %1639 = vmatprep.subr.bf16.mxu0 0
  %1640 = vmatpush2.bf16.msra.mxu0 0
  %1641 = vmatprep.subr.bf16.mxu0 0
  %1642 = vmatpush2.bf16.msra.mxu0 0
  %1643 = vmatprep.subr.bf16.mxu0 0
  %1644 = vmatpush2.bf16.msra.mxu0 0
  %1645 = vmatprep.subr.bf16.mxu0 0
  %1646 = vmatpush2.bf16.msra.mxu0 0
  %1647 = vmatprep.mubr.bf16.mxu0 0
  %1648 = vmatmul.mubr.bf16.gmra.mxu0 %v1531
  %v1649 = vpop.f32.mrf.mxu0
  %v1650 = vadd.f32 %v1568, %v1649
  %v1651 = vpop.f32.mrf.mxu0
  %v1652 = vadd.f32 %v1570, %v1651
  %v1653 = vpop.f32.mrf.mxu0
  %v1654 = vpop.f32.mrf.mxu0
  %1655 = vdwg.mxu0
  %1656 = vmatprep.subr.bf16.mxu0 %v1261
  %1657 = vmatpush1.bf16.msra.mxu0 %v1260
  %1658 = vmatprep.subr.bf16.mxu0 %v1257
  %1659 = vmatpush1.bf16.msra.mxu0 %v1256
  %1660 = vmatprep.subr.bf16.mxu0 %v1253
  %1661 = vmatpush1.bf16.msra.mxu0 %v1252
  %1662 = vmatprep.subr.bf16.mxu0 %v1249
  %1663 = vmatpush1.bf16.msra.mxu0 %v1248
  %1664 = vmatprep.subr.bf16.mxu0 %v1245
  %1665 = vmatpush1.bf16.msra.mxu0 %v1244
  %1666 = vmatprep.subr.bf16.mxu0 %v1241
  %1667 = vmatpush1.bf16.msra.mxu0 %v1240
  %1668 = vmatprep.subr.bf16.mxu0 %v1237
  %1669 = vmatpush1.bf16.msra.mxu0 %v1236
  %1670 = vmatprep.subr.bf16.mxu0 %v1233
  %1671 = vmatpush1.bf16.msra.mxu0 %v1232
  %1672 = vmatprep.subr.bf16.mxu0 0
  %1673 = vmatpush2.bf16.msra.mxu0 0
  %1674 = vmatprep.subr.bf16.mxu0 0
  %1675 = vmatpush2.bf16.msra.mxu0 0
  %1676 = vmatprep.subr.bf16.mxu0 0
  %1677 = vmatpush2.bf16.msra.mxu0 0
  %1678 = vmatprep.subr.bf16.mxu0 0
  %1679 = vmatpush2.bf16.msra.mxu0 0
  %1680 = vmatprep.subr.bf16.mxu0 0
  %1681 = vmatpush2.bf16.msra.mxu0 0
  %1682 = vmatprep.subr.bf16.mxu0 0
  %1683 = vmatpush2.bf16.msra.mxu0 0
  %1684 = vmatprep.subr.bf16.mxu0 0
  %1685 = vmatpush2.bf16.msra.mxu0 0
  %1686 = vmatprep.subr.bf16.mxu0 0
  %1687 = vmatpush2.bf16.msra.mxu0 0
  %1688 = vmatprep.mubr.bf16.mxu0 0
  %1689 = vmatmul.mubr.bf16.gmra.mxu0 %v1531
  %v1690 = vpop.f32.mrf.mxu0
  %v1691 = vadd.f32 %v1609, %v1690
  %v1692 = vpop.f32.mrf.mxu0
  %v1693 = vadd.f32 %v1611, %v1692
  %v1694 = vpop.f32.mrf.mxu0
  %v1695 = vpop.f32.mrf.mxu0
  %1696 = vdwg.mxu0
  %v1697 = vadd.f32 %v1650, %v1380
  %v1698 = vadd.f32 %v1652, %v1384
  %v1699 = vadd.f32 %v1691, %v1388
  %v1700 = vadd.f32 %v1693, %v1392
  %v1701 = vmul.f32 %v1697, 0.5
  %v1702 = vmul.f32 %v1698, 0.5
  %v1703 = vmul.f32 %v1699, 0.5
  %v1704 = vtanh.pop %v1701
  %v1705 = vtanh.pop %v1702
  %v1706 = vtanh.pop %v1703
  %v1707 = vmul.f32 %v1704, 0.5
  %v1708 = vmul.f32 %v1705, 0.5
  %v1709 = vmul.f32 %v1706, 0.5
  %v1710 = vadd.f32 %v1707, 0.5
  %v1711 = vadd.f32 %v1708, 0.5
  %v1712 = vadd.f32 %v1709, 0.5
  %v1713 = vtanh.pop %v1700
  %v1714 = vmul.f32 %v1711, %v1416
  %v1715 = vmul.f32 %v1710, %v1713
  %v1716 = vadd.f32 %v1714, %v1715
  %v1717 = vtanh.pop %v1716
  %v1718 = vmul.f32 %v1712, %v1717
  %s1719 = scalar_lea.vmem %s7, 8
  %1720 = vst [vmem:[%s1719] sm:$0xff] %v1718
  %s1721 = smul.u32 2, 4
  %s1722 = smul.addr %s1721, 8
  %s1723 = scalar_lea.vmem [#allocation2], %s1722
  %v1724 = vld [vmem:[%s1723] sm:$0xff]
  %v1725 = vld [vmem:[%s1723 + $0x8] sm:$0xff]
  %v1726 = vld [vmem:[%s1723 + $0x10] sm:$0xff]
  %v1727 = vld [vmem:[%s1723 + $0x18] sm:$0xff]
  %1728 = vmatprep.subr.bf16.mxu0 %v752
  %1729 = vmatpush1.bf16.msra.mxu0 %v751
  %1730 = vmatprep.subr.bf16.mxu0 %v748
  %1731 = vmatpush1.bf16.msra.mxu0 %v747
  %1732 = vmatprep.subr.bf16.mxu0 %v744
  %1733 = vmatpush1.bf16.msra.mxu0 %v743
  %1734 = vmatprep.subr.bf16.mxu0 %v740
  %1735 = vmatpush1.bf16.msra.mxu0 %v739
  %1736 = vmatprep.subr.bf16.mxu0 %v736
  %1737 = vmatpush1.bf16.msra.mxu0 %v735
  %1738 = vmatprep.subr.bf16.mxu0 %v732
  %1739 = vmatpush1.bf16.msra.mxu0 %v731
  %1740 = vmatprep.subr.bf16.mxu0 %v728
  %1741 = vmatpush1.bf16.msra.mxu0 %v727
  %1742 = vmatprep.subr.bf16.mxu0 %v724
  %1743 = vmatpush1.bf16.msra.mxu0 %v723
  %1744 = vmatprep.subr.bf16.mxu0 0
  %1745 = vmatpush2.bf16.msra.mxu0 0
  %1746 = vmatprep.subr.bf16.mxu0 0
  %1747 = vmatpush2.bf16.msra.mxu0 0
  %1748 = vmatprep.subr.bf16.mxu0 0
  %1749 = vmatpush2.bf16.msra.mxu0 0
  %1750 = vmatprep.subr.bf16.mxu0 0
  %1751 = vmatpush2.bf16.msra.mxu0 0
  %1752 = vmatprep.subr.bf16.mxu0 0
  %1753 = vmatpush2.bf16.msra.mxu0 0
  %1754 = vmatprep.subr.bf16.mxu0 0
  %1755 = vmatpush2.bf16.msra.mxu0 0
  %1756 = vmatprep.subr.bf16.mxu0 0
  %1757 = vmatpush2.bf16.msra.mxu0 0
  %1758 = vmatprep.subr.bf16.mxu0 0
  %1759 = vmatpush2.bf16.msra.mxu0 0
  %1760 = vmatprep.mubr.bf16.mxu0 0
  %1761 = vmatmul.mubr.bf16.gmra.mxu0 %v1531
  %v1762 = vpop.f32.mrf.mxu0
  %v1763 = vadd.f32 0.0, %v1762
  %v1764 = vpop.f32.mrf.mxu0
  %v1765 = vadd.f32 0.0, %v1764
  %v1766 = vpop.f32.mrf.mxu0
  %v1767 = vpop.f32.mrf.mxu0
  %1768 = vdwg.mxu0
  %1769 = vmatprep.subr.bf16.mxu0 %v754
  %1770 = vmatpush1.bf16.msra.mxu0 %v753
  %1771 = vmatprep.subr.bf16.mxu0 %v750
  %1772 = vmatpush1.bf16.msra.mxu0 %v749
  %1773 = vmatprep.subr.bf16.mxu0 %v746
  %1774 = vmatpush1.bf16.msra.mxu0 %v745
  %1775 = vmatprep.subr.bf16.mxu0 %v742
  %1776 = vmatpush1.bf16.msra.mxu0 %v741
  %1777 = vmatprep.subr.bf16.mxu0 %v738
  %1778 = vmatpush1.bf16.msra.mxu0 %v737
  %1779 = vmatprep.subr.bf16.mxu0 %v734
  %1780 = vmatpush1.bf16.msra.mxu0 %v733
  %1781 = vmatprep.subr.bf16.mxu0 %v730
  %1782 = vmatpush1.bf16.msra.mxu0 %v729
  %1783 = vmatprep.subr.bf16.mxu0 %v726
  %1784 = vmatpush1.bf16.msra.mxu0 %v725
  %1785 = vmatprep.subr.bf16.mxu0 0
  %1786 = vmatpush2.bf16.msra.mxu0 0
  %1787 = vmatprep.subr.bf16.mxu0 0
  %1788 = vmatpush2.bf16.msra.mxu0 0
  %1789 = vmatprep.subr.bf16.mxu0 0
  %1790 = vmatpush2.bf16.msra.mxu0 0
  %1791 = vmatprep.subr.bf16.mxu0 0
  %1792 = vmatpush2.bf16.msra.mxu0 0
  %1793 = vmatprep.subr.bf16.mxu0 0
  %1794 = vmatpush2.bf16.msra.mxu0 0
  %1795 = vmatprep.subr.bf16.mxu0 0
  %1796 = vmatpush2.bf16.msra.mxu0 0
  %1797 = vmatprep.subr.bf16.mxu0 0
  %1798 = vmatpush2.bf16.msra.mxu0 0
  %1799 = vmatprep.subr.bf16.mxu0 0
  %1800 = vmatpush2.bf16.msra.mxu0 0
  %1801 = vmatprep.mubr.bf16.mxu0 0
  %1802 = vmatmul.mubr.bf16.gmra.mxu0 %v1531
  %v1803 = vpop.f32.mrf.mxu0
  %v1804 = vadd.f32 0.0, %v1803
  %v1805 = vpop.f32.mrf.mxu0
  %v1806 = vadd.f32 0.0, %v1805
  %v1807 = vpop.f32.mrf.mxu0
  %v1808 = vpop.f32.mrf.mxu0
  %1809 = vdwg.mxu0
  %v1810 = vadd.f32 %v1724, %v1763
  %v1811 = vadd.f32 %v1725, %v1765
  %v1812 = vadd.f32 %v1726, %v1804
  %v1813 = vadd.f32 %v1727, %v1806
  %v1814 = vmul.f32 %v1810, 0.5
  %v1815 = vmul.f32 %v1811, 0.5
  %v1816 = vmul.f32 %v1812, 0.5
  %v1817 = vtanh.pop %v1814
  %v1818 = vtanh.pop %v1815
  %v1819 = vtanh.pop %v1816
  %v1820 = vmul.f32 %v1817, 0.5
  %v1821 = vmul.f32 %v1818, 0.5
  %v1822 = vmul.f32 %v1819, 0.5
  %v1823 = vadd.f32 %v1820, 0.5
  %v1824 = vadd.f32 %v1821, 0.5
  %v1825 = vadd.f32 %v1822, 0.5
  %v1826 = vtanh.pop %v1813
  %v1827 = vmul.f32 %v1824, %v1528
  %v1828 = vmul.f32 %v1823, %v1826
  %v1829 = vadd.f32 %v1827, %v1828
  %v1830 = vtanh.pop %v1829
  %v1831 = vmul.f32 %v1825, %v1830
  %v1832 = vpack.c.bf16 %v1831, %v1831
  %v1833 = vpack.c.bf16 %v1718, %v1718
  %1834 = vmatprep.subr.bf16.mxu0 %v1017
  %1835 = vmatpush1.bf16.msra.mxu0 %v1016
  %1836 = vmatprep.subr.bf16.mxu0 %v1013
  %1837 = vmatpush1.bf16.msra.mxu0 %v1012
  %1838 = vmatprep.subr.bf16.mxu0 %v1009
  %1839 = vmatpush1.bf16.msra.mxu0 %v1008
  %1840 = vmatprep.subr.bf16.mxu0 %v1005
  %1841 = vmatpush1.bf16.msra.mxu0 %v1004
  %1842 = vmatprep.subr.bf16.mxu0 %v1001
  %1843 = vmatpush1.bf16.msra.mxu0 %v1000
  %1844 = vmatprep.subr.bf16.mxu0 %v997
  %1845 = vmatpush1.bf16.msra.mxu0 %v996
  %1846 = vmatprep.subr.bf16.mxu0 %v993
  %1847 = vmatpush1.bf16.msra.mxu0 %v992
  %1848 = vmatprep.subr.bf16.mxu0 %v989
  %1849 = vmatpush1.bf16.msra.mxu0 %v988
  %1850 = vmatprep.subr.bf16.mxu0 0
  %1851 = vmatpush2.bf16.msra.mxu0 0
  %1852 = vmatprep.subr.bf16.mxu0 0
  %1853 = vmatpush2.bf16.msra.mxu0 0
  %1854 = vmatprep.subr.bf16.mxu0 0
  %1855 = vmatpush2.bf16.msra.mxu0 0
  %1856 = vmatprep.subr.bf16.mxu0 0
  %1857 = vmatpush2.bf16.msra.mxu0 0
  %1858 = vmatprep.subr.bf16.mxu0 0
  %1859 = vmatpush2.bf16.msra.mxu0 0
  %1860 = vmatprep.subr.bf16.mxu0 0
  %1861 = vmatpush2.bf16.msra.mxu0 0
  %1862 = vmatprep.subr.bf16.mxu0 0
  %1863 = vmatpush2.bf16.msra.mxu0 0
  %1864 = vmatprep.subr.bf16.mxu0 0
  %1865 = vmatpush2.bf16.msra.mxu0 0
  %1866 = vmatprep.mubr.bf16.mxu0 0
  %1867 = vmatmul.mubr.bf16.gmra.mxu0 %v1833
  %v1868 = vpop.f32.mrf.mxu0
  %v1869 = vadd.f32 0.0, %v1868
  %v1870 = vpop.f32.mrf.mxu0
  %v1871 = vadd.f32 0.0, %v1870
  %v1872 = vpop.f32.mrf.mxu0
  %v1873 = vpop.f32.mrf.mxu0
  %1874 = vdwg.mxu0
  %1875 = vmatprep.subr.bf16.mxu0 %v1019
  %1876 = vmatpush1.bf16.msra.mxu0 %v1018
  %1877 = vmatprep.subr.bf16.mxu0 %v1015
  %1878 = vmatpush1.bf16.msra.mxu0 %v1014
  %1879 = vmatprep.subr.bf16.mxu0 %v1011
  %1880 = vmatpush1.bf16.msra.mxu0 %v1010
  %1881 = vmatprep.subr.bf16.mxu0 %v1007
  %1882 = vmatpush1.bf16.msra.mxu0 %v1006
  %1883 = vmatprep.subr.bf16.mxu0 %v1003
  %1884 = vmatpush1.bf16.msra.mxu0 %v1002
  %1885 = vmatprep.subr.bf16.mxu0 %v999
  %1886 = vmatpush1.bf16.msra.mxu0 %v998
  %1887 = vmatprep.subr.bf16.mxu0 %v995
  %1888 = vmatpush1.bf16.msra.mxu0 %v994
  %1889 = vmatprep.subr.bf16.mxu0 %v991
  %1890 = vmatpush1.bf16.msra.mxu0 %v990
  %1891 = vmatprep.subr.bf16.mxu0 0
  %1892 = vmatpush2.bf16.msra.mxu0 0
  %1893 = vmatprep.subr.bf16.mxu0 0
  %1894 = vmatpush2.bf16.msra.mxu0 0
  %1895 = vmatprep.subr.bf16.mxu0 0
  %1896 = vmatpush2.bf16.msra.mxu0 0
  %1897 = vmatprep.subr.bf16.mxu0 0
  %1898 = vmatpush2.bf16.msra.mxu0 0
  %1899 = vmatprep.subr.bf16.mxu0 0
  %1900 = vmatpush2.bf16.msra.mxu0 0
  %1901 = vmatprep.subr.bf16.mxu0 0
  %1902 = vmatpush2.bf16.msra.mxu0 0
  %1903 = vmatprep.subr.bf16.mxu0 0
  %1904 = vmatpush2.bf16.msra.mxu0 0
  %1905 = vmatprep.subr.bf16.mxu0 0
  %1906 = vmatpush2.bf16.msra.mxu0 0
  %1907 = vmatprep.mubr.bf16.mxu0 0
  %1908 = vmatmul.mubr.bf16.gmra.mxu0 %v1833
  %v1909 = vpop.f32.mrf.mxu0
  %v1910 = vadd.f32 0.0, %v1909
  %v1911 = vpop.f32.mrf.mxu0
  %v1912 = vadd.f32 0.0, %v1911
  %v1913 = vpop.f32.mrf.mxu0
  %v1914 = vpop.f32.mrf.mxu0
  %1915 = vdwg.mxu0
  %1916 = vmatprep.subr.bf16.mxu0 %v1259
  %1917 = vmatpush1.bf16.msra.mxu0 %v1258
  %1918 = vmatprep.subr.bf16.mxu0 %v1255
  %1919 = vmatpush1.bf16.msra.mxu0 %v1254
  %1920 = vmatprep.subr.bf16.mxu0 %v1251
  %1921 = vmatpush1.bf16.msra.mxu0 %v1250
  %1922 = vmatprep.subr.bf16.mxu0 %v1247
  %1923 = vmatpush1.bf16.msra.mxu0 %v1246
  %1924 = vmatprep.subr.bf16.mxu0 %v1243
  %1925 = vmatpush1.bf16.msra.mxu0 %v1242
  %1926 = vmatprep.subr.bf16.mxu0 %v1239
  %1927 = vmatpush1.bf16.msra.mxu0 %v1238
  %1928 = vmatprep.subr.bf16.mxu0 %v1235
  %1929 = vmatpush1.bf16.msra.mxu0 %v1234
  %1930 = vmatprep.subr.bf16.mxu0 %v1231
  %1931 = vmatpush1.bf16.msra.mxu0 %v1230
  %1932 = vmatprep.subr.bf16.mxu0 0
  %1933 = vmatpush2.bf16.msra.mxu0 0
  %1934 = vmatprep.subr.bf16.mxu0 0
  %1935 = vmatpush2.bf16.msra.mxu0 0
  %1936 = vmatprep.subr.bf16.mxu0 0
  %1937 = vmatpush2.bf16.msra.mxu0 0
  %1938 = vmatprep.subr.bf16.mxu0 0
  %1939 = vmatpush2.bf16.msra.mxu0 0
  %1940 = vmatprep.subr.bf16.mxu0 0
  %1941 = vmatpush2.bf16.msra.mxu0 0
  %1942 = vmatprep.subr.bf16.mxu0 0
  %1943 = vmatpush2.bf16.msra.mxu0 0
  %1944 = vmatprep.subr.bf16.mxu0 0
  %1945 = vmatpush2.bf16.msra.mxu0 0
  %1946 = vmatprep.subr.bf16.mxu0 0
  %1947 = vmatpush2.bf16.msra.mxu0 0
  %1948 = vmatprep.mubr.bf16.mxu0 0
  %1949 = vmatmul.mubr.bf16.gmra.mxu0 %v1832
  %v1950 = vpop.f32.mrf.mxu0
  %v1951 = vadd.f32 %v1869, %v1950
  %v1952 = vpop.f32.mrf.mxu0
  %v1953 = vadd.f32 %v1871, %v1952
  %v1954 = vpop.f32.mrf.mxu0
  %v1955 = vpop.f32.mrf.mxu0
  %1956 = vdwg.mxu0
  %1957 = vmatprep.subr.bf16.mxu0 %v1261
  %1958 = vmatpush1.bf16.msra.mxu0 %v1260
  %1959 = vmatprep.subr.bf16.mxu0 %v1257
  %1960 = vmatpush1.bf16.msra.mxu0 %v1256
  %1961 = vmatprep.subr.bf16.mxu0 %v1253
  %1962 = vmatpush1.bf16.msra.mxu0 %v1252
  %1963 = vmatprep.subr.bf16.mxu0 %v1249
  %1964 = vmatpush1.bf16.msra.mxu0 %v1248
  %1965 = vmatprep.subr.bf16.mxu0 %v1245
  %1966 = vmatpush1.bf16.msra.mxu0 %v1244
  %1967 = vmatprep.subr.bf16.mxu0 %v1241
  %1968 = vmatpush1.bf16.msra.mxu0 %v1240
  %1969 = vmatprep.subr.bf16.mxu0 %v1237
  %1970 = vmatpush1.bf16.msra.mxu0 %v1236
  %1971 = vmatprep.subr.bf16.mxu0 %v1233
  %1972 = vmatpush1.bf16.msra.mxu0 %v1232
  %1973 = vmatprep.subr.bf16.mxu0 0
  %1974 = vmatpush2.bf16.msra.mxu0 0
  %1975 = vmatprep.subr.bf16.mxu0 0
  %1976 = vmatpush2.bf16.msra.mxu0 0
  %1977 = vmatprep.subr.bf16.mxu0 0
  %1978 = vmatpush2.bf16.msra.mxu0 0
  %1979 = vmatprep.subr.bf16.mxu0 0
  %1980 = vmatpush2.bf16.msra.mxu0 0
  %1981 = vmatprep.subr.bf16.mxu0 0
  %1982 = vmatpush2.bf16.msra.mxu0 0
  %1983 = vmatprep.subr.bf16.mxu0 0
  %1984 = vmatpush2.bf16.msra.mxu0 0
  %1985 = vmatprep.subr.bf16.mxu0 0
  %1986 = vmatpush2.bf16.msra.mxu0 0
  %1987 = vmatprep.subr.bf16.mxu0 0
  %1988 = vmatpush2.bf16.msra.mxu0 0
  %1989 = vmatprep.mubr.bf16.mxu0 0
  %1990 = vmatmul.mubr.bf16.gmra.mxu0 %v1832
  %v1991 = vpop.f32.mrf.mxu0
  %v1992 = vadd.f32 %v1910, %v1991
  %v1993 = vpop.f32.mrf.mxu0
  %v1994 = vadd.f32 %v1912, %v1993
  %v1995 = vpop.f32.mrf.mxu0
  %v1996 = vpop.f32.mrf.mxu0
  %1997 = vdwg.mxu0
  %v1998 = vadd.f32 %v1951, %v1380
  %v1999 = vadd.f32 %v1953, %v1384
  %v2000 = vadd.f32 %v1992, %v1388
  %v2001 = vadd.f32 %v1994, %v1392
  %v2002 = vmul.f32 %v1998, 0.5
  %v2003 = vmul.f32 %v1999, 0.5
  %v2004 = vmul.f32 %v2000, 0.5
  %v2005 = vtanh.pop %v2002
  %v2006 = vtanh.pop %v2003
  %v2007 = vtanh.pop %v2004
  %v2008 = vmul.f32 %v2005, 0.5
  %v2009 = vmul.f32 %v2006, 0.5
  %v2010 = vmul.f32 %v2007, 0.5
  %v2011 = vadd.f32 %v2008, 0.5
  %v2012 = vadd.f32 %v2009, 0.5
  %v2013 = vadd.f32 %v2010, 0.5
  %v2014 = vtanh.pop %v2001
  %v2015 = vmul.f32 %v2012, %v1716
  %v2016 = vmul.f32 %v2011, %v2014
  %v2017 = vadd.f32 %v2015, %v2016
  %v2018 = vtanh.pop %v2017
  %v2019 = vmul.f32 %v2013, %v2018
  %s2020 = scalar_lea.vmem %s7, 16
  %2021 = vst [vmem:[%s2020] sm:$0xff] %v2019
  %s2022 = smul.u32 3, 4
  %s2023 = smul.addr %s2022, 8
  %s2024 = scalar_lea.vmem [#allocation2], %s2023
  %v2025 = vld [vmem:[%s2024] sm:$0xff]
  %v2026 = vld [vmem:[%s2024 + $0x8] sm:$0xff]
  %v2027 = vld [vmem:[%s2024 + $0x10] sm:$0xff]
  %v2028 = vld [vmem:[%s2024 + $0x18] sm:$0xff]
  %2029 = vmatprep.subr.bf16.mxu0 %v752
  %2030 = vmatpush1.bf16.msra.mxu0 %v751
  %2031 = vmatprep.subr.bf16.mxu0 %v748
  %2032 = vmatpush1.bf16.msra.mxu0 %v747
  %2033 = vmatprep.subr.bf16.mxu0 %v744
  %2034 = vmatpush1.bf16.msra.mxu0 %v743
  %2035 = vmatprep.subr.bf16.mxu0 %v740
  %2036 = vmatpush1.bf16.msra.mxu0 %v739
  %2037 = vmatprep.subr.bf16.mxu0 %v736
  %2038 = vmatpush1.bf16.msra.mxu0 %v735
  %2039 = vmatprep.subr.bf16.mxu0 %v732
  %2040 = vmatpush1.bf16.msra.mxu0 %v731
  %2041 = vmatprep.subr.bf16.mxu0 %v728
  %2042 = vmatpush1.bf16.msra.mxu0 %v727
  %2043 = vmatprep.subr.bf16.mxu0 %v724
  %2044 = vmatpush1.bf16.msra.mxu0 %v723
  %2045 = vmatprep.subr.bf16.mxu0 0
  %2046 = vmatpush2.bf16.msra.mxu0 0
  %2047 = vmatprep.subr.bf16.mxu0 0
  %2048 = vmatpush2.bf16.msra.mxu0 0
  %2049 = vmatprep.subr.bf16.mxu0 0
  %2050 = vmatpush2.bf16.msra.mxu0 0
  %2051 = vmatprep.subr.bf16.mxu0 0
  %2052 = vmatpush2.bf16.msra.mxu0 0
  %2053 = vmatprep.subr.bf16.mxu0 0
  %2054 = vmatpush2.bf16.msra.mxu0 0
  %2055 = vmatprep.subr.bf16.mxu0 0
  %2056 = vmatpush2.bf16.msra.mxu0 0
  %2057 = vmatprep.subr.bf16.mxu0 0
  %2058 = vmatpush2.bf16.msra.mxu0 0
  %2059 = vmatprep.subr.bf16.mxu0 0
  %2060 = vmatpush2.bf16.msra.mxu0 0
  %2061 = vmatprep.mubr.bf16.mxu0 0
  %2062 = vmatmul.mubr.bf16.gmra.mxu0 %v1832
  %v2063 = vpop.f32.mrf.mxu0
  %v2064 = vadd.f32 0.0, %v2063
  %v2065 = vpop.f32.mrf.mxu0
  %v2066 = vadd.f32 0.0, %v2065
  %v2067 = vpop.f32.mrf.mxu0
  %v2068 = vpop.f32.mrf.mxu0
  %2069 = vdwg.mxu0
  %2070 = vmatprep.subr.bf16.mxu0 %v754
  %2071 = vmatpush1.bf16.msra.mxu0 %v753
  %2072 = vmatprep.subr.bf16.mxu0 %v750
  %2073 = vmatpush1.bf16.msra.mxu0 %v749
  %2074 = vmatprep.subr.bf16.mxu0 %v746
  %2075 = vmatpush1.bf16.msra.mxu0 %v745
  %2076 = vmatprep.subr.bf16.mxu0 %v742
  %2077 = vmatpush1.bf16.msra.mxu0 %v741
  %2078 = vmatprep.subr.bf16.mxu0 %v738
  %2079 = vmatpush1.bf16.msra.mxu0 %v737
  %2080 = vmatprep.subr.bf16.mxu0 %v734
  %2081 = vmatpush1.bf16.msra.mxu0 %v733
  %2082 = vmatprep.subr.bf16.mxu0 %v730
  %2083 = vmatpush1.bf16.msra.mxu0 %v729
  %2084 = vmatprep.subr.bf16.mxu0 %v726
  %2085 = vmatpush1.bf16.msra.mxu0 %v725
  %2086 = vmatprep.subr.bf16.mxu0 0
  %2087 = vmatpush2.bf16.msra.mxu0 0
  %2088 = vmatprep.subr.bf16.mxu0 0
  %2089 = vmatpush2.bf16.msra.mxu0 0
  %2090 = vmatprep.subr.bf16.mxu0 0
  %2091 = vmatpush2.bf16.msra.mxu0 0
  %2092 = vmatprep.subr.bf16.mxu0 0
  %2093 = vmatpush2.bf16.msra.mxu0 0
  %2094 = vmatprep.subr.bf16.mxu0 0
  %2095 = vmatpush2.bf16.msra.mxu0 0
  %2096 = vmatprep.subr.bf16.mxu0 0
  %2097 = vmatpush2.bf16.msra.mxu0 0
  %2098 = vmatprep.subr.bf16.mxu0 0
  %2099 = vmatpush2.bf16.msra.mxu0 0
  %2100 = vmatprep.subr.bf16.mxu0 0
  %2101 = vmatpush2.bf16.msra.mxu0 0
  %2102 = vmatprep.mubr.bf16.mxu0 0
  %2103 = vmatmul.mubr.bf16.gmra.mxu0 %v1832
  %v2104 = vpop.f32.mrf.mxu0
  %v2105 = vadd.f32 0.0, %v2104
  %v2106 = vpop.f32.mrf.mxu0
  %v2107 = vadd.f32 0.0, %v2106
  %v2108 = vpop.f32.mrf.mxu0
  %v2109 = vpop.f32.mrf.mxu0
  %2110 = vdwg.mxu0
  %v2111 = vadd.f32 %v2025, %v2064
  %v2112 = vadd.f32 %v2026, %v2066
  %v2113 = vadd.f32 %v2027, %v2105
  %v2114 = vadd.f32 %v2028, %v2107
  %v2115 = vmul.f32 %v2111, 0.5
  %v2116 = vmul.f32 %v2112, 0.5
  %v2117 = vmul.f32 %v2113, 0.5
  %v2118 = vtanh.pop %v2115
  %v2119 = vtanh.pop %v2116
  %v2120 = vtanh.pop %v2117
  %v2121 = vmul.f32 %v2118, 0.5
  %v2122 = vmul.f32 %v2119, 0.5
  %v2123 = vmul.f32 %v2120, 0.5
  %v2124 = vadd.f32 %v2121, 0.5
  %v2125 = vadd.f32 %v2122, 0.5
  %v2126 = vadd.f32 %v2123, 0.5
  %v2127 = vtanh.pop %v2114
  %v2128 = vmul.f32 %v2125, %v1829
  %v2129 = vmul.f32 %v2124, %v2127
  %v2130 = vadd.f32 %v2128, %v2129
  %v2131 = vtanh.pop %v2130
  %v2132 = vmul.f32 %v2126, %v2131
  %v2133 = vpack.c.bf16 %v2132, %v2132
  %v2134 = vpack.c.bf16 %v2019, %v2019
  %2135 = vmatprep.subr.bf16.mxu0 %v1017
  %2136 = vmatpush1.bf16.msra.mxu0 %v1016
  %2137 = vmatprep.subr.bf16.mxu0 %v1013
  %2138 = vmatpush1.bf16.msra.mxu0 %v1012
  %2139 = vmatprep.subr.bf16.mxu0 %v1009
  %2140 = vmatpush1.bf16.msra.mxu0 %v1008
  %2141 = vmatprep.subr.bf16.mxu0 %v1005
  %2142 = vmatpush1.bf16.msra.mxu0 %v1004
  %2143 = vmatprep.subr.bf16.mxu0 %v1001
  %2144 = vmatpush1.bf16.msra.mxu0 %v1000
  %2145 = vmatprep.subr.bf16.mxu0 %v997
  %2146 = vmatpush1.bf16.msra.mxu0 %v996
  %2147 = vmatprep.subr.bf16.mxu0 %v993
  %2148 = vmatpush1.bf16.msra.mxu0 %v992
  %2149 = vmatprep.subr.bf16.mxu0 %v989
  %2150 = vmatpush1.bf16.msra.mxu0 %v988
  %2151 = vmatprep.subr.bf16.mxu0 0
  %2152 = vmatpush2.bf16.msra.mxu0 0
  %2153 = vmatprep.subr.bf16.mxu0 0
  %2154 = vmatpush2.bf16.msra.mxu0 0
  %2155 = vmatprep.subr.bf16.mxu0 0
  %2156 = vmatpush2.bf16.msra.mxu0 0
  %2157 = vmatprep.subr.bf16.mxu0 0
  %2158 = vmatpush2.bf16.msra.mxu0 0
  %2159 = vmatprep.subr.bf16.mxu0 0
  %2160 = vmatpush2.bf16.msra.mxu0 0
  %2161 = vmatprep.subr.bf16.mxu0 0
  %2162 = vmatpush2.bf16.msra.mxu0 0
  %2163 = vmatprep.subr.bf16.mxu0 0
  %2164 = vmatpush2.bf16.msra.mxu0 0
  %2165 = vmatprep.subr.bf16.mxu0 0
  %2166 = vmatpush2.bf16.msra.mxu0 0
  %2167 = vmatprep.mubr.bf16.mxu0 0
  %2168 = vmatmul.mubr.bf16.gmra.mxu0 %v2134
  %v2169 = vpop.f32.mrf.mxu0
  %v2170 = vadd.f32 0.0, %v2169
  %v2171 = vpop.f32.mrf.mxu0
  %v2172 = vadd.f32 0.0, %v2171
  %v2173 = vpop.f32.mrf.mxu0
  %v2174 = vpop.f32.mrf.mxu0
  %2175 = vdwg.mxu0
  %2176 = vmatprep.subr.bf16.mxu0 %v1019
  %2177 = vmatpush1.bf16.msra.mxu0 %v1018
  %2178 = vmatprep.subr.bf16.mxu0 %v1015
  %2179 = vmatpush1.bf16.msra.mxu0 %v1014
  %2180 = vmatprep.subr.bf16.mxu0 %v1011
  %2181 = vmatpush1.bf16.msra.mxu0 %v1010
  %2182 = vmatprep.subr.bf16.mxu0 %v1007
  %2183 = vmatpush1.bf16.msra.mxu0 %v1006
  %2184 = vmatprep.subr.bf16.mxu0 %v1003
  %2185 = vmatpush1.bf16.msra.mxu0 %v1002
  %2186 = vmatprep.subr.bf16.mxu0 %v999
  %2187 = vmatpush1.bf16.msra.mxu0 %v998
  %2188 = vmatprep.subr.bf16.mxu0 %v995
  %2189 = vmatpush1.bf16.msra.mxu0 %v994
  %2190 = vmatprep.subr.bf16.mxu0 %v991
  %2191 = vmatpush1.bf16.msra.mxu0 %v990
  %2192 = vmatprep.subr.bf16.mxu0 0
  %2193 = vmatpush2.bf16.msra.mxu0 0
  %2194 = vmatprep.subr.bf16.mxu0 0
  %2195 = vmatpush2.bf16.msra.mxu0 0
  %2196 = vmatprep.subr.bf16.mxu0 0
  %2197 = vmatpush2.bf16.msra.mxu0 0
  %2198 = vmatprep.subr.bf16.mxu0 0
  %2199 = vmatpush2.bf16.msra.mxu0 0
  %2200 = vmatprep.subr.bf16.mxu0 0
  %2201 = vmatpush2.bf16.msra.mxu0 0
  %2202 = vmatprep.subr.bf16.mxu0 0
  %2203 = vmatpush2.bf16.msra.mxu0 0
  %2204 = vmatprep.subr.bf16.mxu0 0
  %2205 = vmatpush2.bf16.msra.mxu0 0
  %2206 = vmatprep.subr.bf16.mxu0 0
  %2207 = vmatpush2.bf16.msra.mxu0 0
  %2208 = vmatprep.mubr.bf16.mxu0 0
  %2209 = vmatmul.mubr.bf16.gmra.mxu0 %v2134
  %v2210 = vpop.f32.mrf.mxu0
  %v2211 = vadd.f32 0.0, %v2210
  %v2212 = vpop.f32.mrf.mxu0
  %v2213 = vadd.f32 0.0, %v2212
  %v2214 = vpop.f32.mrf.mxu0
  %v2215 = vpop.f32.mrf.mxu0
  %2216 = vdwg.mxu0
  %2217 = vmatprep.subr.bf16.mxu0 %v1259
  %2218 = vmatpush1.bf16.msra.mxu0 %v1258
  %2219 = vmatprep.subr.bf16.mxu0 %v1255
  %2220 = vmatpush1.bf16.msra.mxu0 %v1254
  %2221 = vmatprep.subr.bf16.mxu0 %v1251
  %2222 = vmatpush1.bf16.msra.mxu0 %v1250
  %2223 = vmatprep.subr.bf16.mxu0 %v1247
  %2224 = vmatpush1.bf16.msra.mxu0 %v1246
  %2225 = vmatprep.subr.bf16.mxu0 %v1243
  %2226 = vmatpush1.bf16.msra.mxu0 %v1242
  %2227 = vmatprep.subr.bf16.mxu0 %v1239
  %2228 = vmatpush1.bf16.msra.mxu0 %v1238
  %2229 = vmatprep.subr.bf16.mxu0 %v1235
  %2230 = vmatpush1.bf16.msra.mxu0 %v1234
  %2231 = vmatprep.subr.bf16.mxu0 %v1231
  %2232 = vmatpush1.bf16.msra.mxu0 %v1230
  %2233 = vmatprep.subr.bf16.mxu0 0
  %2234 = vmatpush2.bf16.msra.mxu0 0
  %2235 = vmatprep.subr.bf16.mxu0 0
  %2236 = vmatpush2.bf16.msra.mxu0 0
  %2237 = vmatprep.subr.bf16.mxu0 0
  %2238 = vmatpush2.bf16.msra.mxu0 0
  %2239 = vmatprep.subr.bf16.mxu0 0
  %2240 = vmatpush2.bf16.msra.mxu0 0
  %2241 = vmatprep.subr.bf16.mxu0 0
  %2242 = vmatpush2.bf16.msra.mxu0 0
  %2243 = vmatprep.subr.bf16.mxu0 0
  %2244 = vmatpush2.bf16.msra.mxu0 0
  %2245 = vmatprep.subr.bf16.mxu0 0
  %2246 = vmatpush2.bf16.msra.mxu0 0
  %2247 = vmatprep.subr.bf16.mxu0 0
  %2248 = vmatpush2.bf16.msra.mxu0 0
  %2249 = vmatprep.mubr.bf16.mxu0 0
  %2250 = vmatmul.mubr.bf16.gmra.mxu0 %v2133
  %v2251 = vpop.f32.mrf.mxu0
  %v2252 = vadd.f32 %v2170, %v2251
  %v2253 = vpop.f32.mrf.mxu0
  %v2254 = vadd.f32 %v2172, %v2253
  %v2255 = vpop.f32.mrf.mxu0
  %v2256 = vpop.f32.mrf.mxu0
  %2257 = vdwg.mxu0
  %2258 = vmatprep.subr.bf16.mxu0 %v1261
  %2259 = vmatpush1.bf16.msra.mxu0 %v1260
  %2260 = vmatprep.subr.bf16.mxu0 %v1257
  %2261 = vmatpush1.bf16.msra.mxu0 %v1256
  %2262 = vmatprep.subr.bf16.mxu0 %v1253
  %2263 = vmatpush1.bf16.msra.mxu0 %v1252
  %2264 = vmatprep.subr.bf16.mxu0 %v1249
  %2265 = vmatpush1.bf16.msra.mxu0 %v1248
  %2266 = vmatprep.subr.bf16.mxu0 %v1245
  %2267 = vmatpush1.bf16.msra.mxu0 %v1244
  %2268 = vmatprep.subr.bf16.mxu0 %v1241
  %2269 = vmatpush1.bf16.msra.mxu0 %v1240
  %2270 = vmatprep.subr.bf16.mxu0 %v1237
  %2271 = vmatpush1.bf16.msra.mxu0 %v1236
  %2272 = vmatprep.subr.bf16.mxu0 %v1233
  %2273 = vmatpush1.bf16.msra.mxu0 %v1232
  %2274 = vmatprep.subr.bf16.mxu0 0
  %2275 = vmatpush2.bf16.msra.mxu0 0
  %2276 = vmatprep.subr.bf16.mxu0 0
  %2277 = vmatpush2.bf16.msra.mxu0 0
  %2278 = vmatprep.subr.bf16.mxu0 0
  %2279 = vmatpush2.bf16.msra.mxu0 0
  %2280 = vmatprep.subr.bf16.mxu0 0
  %2281 = vmatpush2.bf16.msra.mxu0 0
  %2282 = vmatprep.subr.bf16.mxu0 0
  %2283 = vmatpush2.bf16.msra.mxu0 0
  %2284 = vmatprep.subr.bf16.mxu0 0
  %2285 = vmatpush2.bf16.msra.mxu0 0
  %2286 = vmatprep.subr.bf16.mxu0 0
  %2287 = vmatpush2.bf16.msra.mxu0 0
  %2288 = vmatprep.subr.bf16.mxu0 0
  %2289 = vmatpush2.bf16.msra.mxu0 0
  %2290 = vmatprep.mubr.bf16.mxu0 0
  %2291 = vmatmul.mubr.bf16.gmra.mxu0 %v2133
  %v2292 = vpop.f32.mrf.mxu0
  %v2293 = vadd.f32 %v2211, %v2292
  %v2294 = vpop.f32.mrf.mxu0
  %v2295 = vadd.f32 %v2213, %v2294
  %v2296 = vpop.f32.mrf.mxu0
  %v2297 = vpop.f32.mrf.mxu0
  %2298 = vdwg.mxu0
  %v2299 = vadd.f32 %v2252, %v1380
  %v2300 = vadd.f32 %v2254, %v1384
  %v2301 = vadd.f32 %v2293, %v1388
  %v2302 = vadd.f32 %v2295, %v1392
  %v2303 = vmul.f32 %v2299, 0.5
  %v2304 = vmul.f32 %v2300, 0.5
  %v2305 = vmul.f32 %v2301, 0.5
  %v2306 = vtanh.pop %v2303
  %v2307 = vtanh.pop %v2304
  %v2308 = vtanh.pop %v2305
  %v2309 = vmul.f32 %v2306, 0.5
  %v2310 = vmul.f32 %v2307, 0.5
  %v2311 = vmul.f32 %v2308, 0.5
  %v2312 = vadd.f32 %v2309, 0.5
  %v2313 = vadd.f32 %v2310, 0.5
  %v2314 = vadd.f32 %v2311, 0.5
  %v2315 = vtanh.pop %v2302
  %v2316 = vmul.f32 %v2313, %v2017
  %v2317 = vmul.f32 %v2312, %v2315
  %v2318 = vadd.f32 %v2316, %v2317
  %v2319 = vtanh.pop %v2318
  %v2320 = vmul.f32 %v2314, %v2319
  %s2321 = scalar_lea.vmem %s7, 24
  %2322 = vst [vmem:[%s2321] sm:$0xff] %v2320
  %s2323 = smul.u32 4, 4
  %s2324 = smul.addr %s2323, 8
  %s2325 = scalar_lea.vmem [#allocation2], %s2324
  %v2326 = vld [vmem:[%s2325] sm:$0xff]
  %v2327 = vld [vmem:[%s2325 + $0x8] sm:$0xff]
  %v2328 = vld [vmem:[%s2325 + $0x10] sm:$0xff]
  %v2329 = vld [vmem:[%s2325 + $0x18] sm:$0xff]
  %2330 = vmatprep.subr.bf16.mxu0 %v752
  %2331 = vmatpush1.bf16.msra.mxu0 %v751
  %2332 = vmatprep.subr.bf16.mxu0 %v748
  %2333 = vmatpush1.bf16.msra.mxu0 %v747
  %2334 = vmatprep.subr.bf16.mxu0 %v744
  %2335 = vmatpush1.bf16.msra.mxu0 %v743
  %2336 = vmatprep.subr.bf16.mxu0 %v740
  %2337 = vmatpush1.bf16.msra.mxu0 %v739
  %2338 = vmatprep.subr.bf16.mxu0 %v736
  %2339 = vmatpush1.bf16.msra.mxu0 %v735
  %2340 = vmatprep.subr.bf16.mxu0 %v732
  %2341 = vmatpush1.bf16.msra.mxu0 %v731
  %2342 = vmatprep.subr.bf16.mxu0 %v728
  %2343 = vmatpush1.bf16.msra.mxu0 %v727
  %2344 = vmatprep.subr.bf16.mxu0 %v724
  %2345 = vmatpush1.bf16.msra.mxu0 %v723
  %2346 = vmatprep.subr.bf16.mxu0 0
  %2347 = vmatpush2.bf16.msra.mxu0 0
  %2348 = vmatprep.subr.bf16.mxu0 0
  %2349 = vmatpush2.bf16.msra.mxu0 0
  %2350 = vmatprep.subr.bf16.mxu0 0
  %2351 = vmatpush2.bf16.msra.mxu0 0
  %2352 = vmatprep.subr.bf16.mxu0 0
  %2353 = vmatpush2.bf16.msra.mxu0 0
  %2354 = vmatprep.subr.bf16.mxu0 0
  %2355 = vmatpush2.bf16.msra.mxu0 0
  %2356 = vmatprep.subr.bf16.mxu0 0
  %2357 = vmatpush2.bf16.msra.mxu0 0
  %2358 = vmatprep.subr.bf16.mxu0 0
  %2359 = vmatpush2.bf16.msra.mxu0 0
  %2360 = vmatprep.subr.bf16.mxu0 0
  %2361 = vmatpush2.bf16.msra.mxu0 0
  %2362 = vmatprep.mubr.bf16.mxu0 0
  %2363 = vmatmul.mubr.bf16.gmra.mxu0 %v2133
  %v2364 = vpop.f32.mrf.mxu0
  %v2365 = vadd.f32 0.0, %v2364
  %v2366 = vpop.f32.mrf.mxu0
  %v2367 = vadd.f32 0.0, %v2366
  %v2368 = vpop.f32.mrf.mxu0
  %v2369 = vpop.f32.mrf.mxu0
  %2370 = vdwg.mxu0
  %2371 = vmatprep.subr.bf16.mxu0 %v754
  %2372 = vmatpush1.bf16.msra.mxu0 %v753
  %2373 = vmatprep.subr.bf16.mxu0 %v750
  %2374 = vmatpush1.bf16.msra.mxu0 %v749
  %2375 = vmatprep.subr.bf16.mxu0 %v746
  %2376 = vmatpush1.bf16.msra.mxu0 %v745
  %2377 = vmatprep.subr.bf16.mxu0 %v742
  %2378 = vmatpush1.bf16.msra.mxu0 %v741
  %2379 = vmatprep.subr.bf16.mxu0 %v738
  %2380 = vmatpush1.bf16.msra.mxu0 %v737
  %2381 = vmatprep.subr.bf16.mxu0 %v734
  %2382 = vmatpush1.bf16.msra.mxu0 %v733
  %2383 = vmatprep.subr.bf16.mxu0 %v730
  %2384 = vmatpush1.bf16.msra.mxu0 %v729
  %2385 = vmatprep.subr.bf16.mxu0 %v726
  %2386 = vmatpush1.bf16.msra.mxu0 %v725
  %2387 = vmatprep.subr.bf16.mxu0 0
  %2388 = vmatpush2.bf16.msra.mxu0 0
  %2389 = vmatprep.subr.bf16.mxu0 0
  %2390 = vmatpush2.bf16.msra.mxu0 0
  %2391 = vmatprep.subr.bf16.mxu0 0
  %2392 = vmatpush2.bf16.msra.mxu0 0
  %2393 = vmatprep.subr.bf16.mxu0 0
  %2394 = vmatpush2.bf16.msra.mxu0 0
  %2395 = vmatprep.subr.bf16.mxu0 0
  %2396 = vmatpush2.bf16.msra.mxu0 0
  %2397 = vmatprep.subr.bf16.mxu0 0
  %2398 = vmatpush2.bf16.msra.mxu0 0
  %2399 = vmatprep.subr.bf16.mxu0 0
  %2400 = vmatpush2.bf16.msra.mxu0 0
  %2401 = vmatprep.subr.bf16.mxu0 0
  %2402 = vmatpush2.bf16.msra.mxu0 0
  %2403 = vmatprep.mubr.bf16.mxu0 0
  %2404 = vmatmul.mubr.bf16.gmra.mxu0 %v2133
  %v2405 = vpop.f32.mrf.mxu0
  %v2406 = vadd.f32 0.0, %v2405
  %v2407 = vpop.f32.mrf.mxu0
  %v2408 = vadd.f32 0.0, %v2407
  %v2409 = vpop.f32.mrf.mxu0
  %v2410 = vpop.f32.mrf.mxu0
  %2411 = vdwg.mxu0
  %v2412 = vadd.f32 %v2326, %v2365
  %v2413 = vadd.f32 %v2327, %v2367
  %v2414 = vadd.f32 %v2328, %v2406
  %v2415 = vadd.f32 %v2329, %v2408
  %v2416 = vmul.f32 %v2412, 0.5
  %v2417 = vmul.f32 %v2413, 0.5
  %v2418 = vmul.f32 %v2414, 0.5
  %v2419 = vtanh.pop %v2416
  %v2420 = vtanh.pop %v2417
  %v2421 = vtanh.pop %v2418
  %v2422 = vmul.f32 %v2419, 0.5
  %v2423 = vmul.f32 %v2420, 0.5
  %v2424 = vmul.f32 %v2421, 0.5
  %v2425 = vadd.f32 %v2422, 0.5
  %v2426 = vadd.f32 %v2423, 0.5
  %v2427 = vadd.f32 %v2424, 0.5
  %v2428 = vtanh.pop %v2415
  %v2429 = vmul.f32 %v2426, %v2130
  %v2430 = vmul.f32 %v2425, %v2428
  %v2431 = vadd.f32 %v2429, %v2430
  %v2432 = vtanh.pop %v2431
  %v2433 = vmul.f32 %v2427, %v2432
  %v2434 = vpack.c.bf16 %v2433, %v2433
  %v2435 = vpack.c.bf16 %v2320, %v2320
  %2436 = vmatprep.subr.bf16.mxu0 %v1017
  %2437 = vmatpush1.bf16.msra.mxu0 %v1016
  %2438 = vmatprep.subr.bf16.mxu0 %v1013
  %2439 = vmatpush1.bf16.msra.mxu0 %v1012
  %2440 = vmatprep.subr.bf16.mxu0 %v1009
  %2441 = vmatpush1.bf16.msra.mxu0 %v1008
  %2442 = vmatprep.subr.bf16.mxu0 %v1005
  %2443 = vmatpush1.bf16.msra.mxu0 %v1004
  %2444 = vmatprep.subr.bf16.mxu0 %v1001
  %2445 = vmatpush1.bf16.msra.mxu0 %v1000
  %2446 = vmatprep.subr.bf16.mxu0 %v997
  %2447 = vmatpush1.bf16.msra.mxu0 %v996
  %2448 = vmatprep.subr.bf16.mxu0 %v993
  %2449 = vmatpush1.bf16.msra.mxu0 %v992
  %2450 = vmatprep.subr.bf16.mxu0 %v989
  %2451 = vmatpush1.bf16.msra.mxu0 %v988
  %2452 = vmatprep.subr.bf16.mxu0 0
  %2453 = vmatpush2.bf16.msra.mxu0 0
  %2454 = vmatprep.subr.bf16.mxu0 0
  %2455 = vmatpush2.bf16.msra.mxu0 0
  %2456 = vmatprep.subr.bf16.mxu0 0
  %2457 = vmatpush2.bf16.msra.mxu0 0
  %2458 = vmatprep.subr.bf16.mxu0 0
  %2459 = vmatpush2.bf16.msra.mxu0 0
  %2460 = vmatprep.subr.bf16.mxu0 0
  %2461 = vmatpush2.bf16.msra.mxu0 0
  %2462 = vmatprep.subr.bf16.mxu0 0
  %2463 = vmatpush2.bf16.msra.mxu0 0
  %2464 = vmatprep.subr.bf16.mxu0 0
  %2465 = vmatpush2.bf16.msra.mxu0 0
  %2466 = vmatprep.subr.bf16.mxu0 0
  %2467 = vmatpush2.bf16.msra.mxu0 0
  %2468 = vmatprep.mubr.bf16.mxu0 0
  %2469 = vmatmul.mubr.bf16.gmra.mxu0 %v2435
  %v2470 = vpop.f32.mrf.mxu0
  %v2471 = vadd.f32 0.0, %v2470
  %v2472 = vpop.f32.mrf.mxu0
  %v2473 = vadd.f32 0.0, %v2472
  %v2474 = vpop.f32.mrf.mxu0
  %v2475 = vpop.f32.mrf.mxu0
  %2476 = vdwg.mxu0
  %2477 = vmatprep.subr.bf16.mxu0 %v1019
  %2478 = vmatpush1.bf16.msra.mxu0 %v1018
  %2479 = vmatprep.subr.bf16.mxu0 %v1015
  %2480 = vmatpush1.bf16.msra.mxu0 %v1014
  %2481 = vmatprep.subr.bf16.mxu0 %v1011
  %2482 = vmatpush1.bf16.msra.mxu0 %v1010
  %2483 = vmatprep.subr.bf16.mxu0 %v1007
  %2484 = vmatpush1.bf16.msra.mxu0 %v1006
  %2485 = vmatprep.subr.bf16.mxu0 %v1003
  %2486 = vmatpush1.bf16.msra.mxu0 %v1002
  %2487 = vmatprep.subr.bf16.mxu0 %v999
  %2488 = vmatpush1.bf16.msra.mxu0 %v998
  %2489 = vmatprep.subr.bf16.mxu0 %v995
  %2490 = vmatpush1.bf16.msra.mxu0 %v994
  %2491 = vmatprep.subr.bf16.mxu0 %v991
  %2492 = vmatpush1.bf16.msra.mxu0 %v990
  %2493 = vmatprep.subr.bf16.mxu0 0
  %2494 = vmatpush2.bf16.msra.mxu0 0
  %2495 = vmatprep.subr.bf16.mxu0 0
  %2496 = vmatpush2.bf16.msra.mxu0 0
  %2497 = vmatprep.subr.bf16.mxu0 0
  %2498 = vmatpush2.bf16.msra.mxu0 0
  %2499 = vmatprep.subr.bf16.mxu0 0
  %2500 = vmatpush2.bf16.msra.mxu0 0
  %2501 = vmatprep.subr.bf16.mxu0 0
  %2502 = vmatpush2.bf16.msra.mxu0 0
  %2503 = vmatprep.subr.bf16.mxu0 0
  %2504 = vmatpush2.bf16.msra.mxu0 0
  %2505 = vmatprep.subr.bf16.mxu0 0
  %2506 = vmatpush2.bf16.msra.mxu0 0
  %2507 = vmatprep.subr.bf16.mxu0 0
  %2508 = vmatpush2.bf16.msra.mxu0 0
  %2509 = vmatprep.mubr.bf16.mxu0 0
  %2510 = vmatmul.mubr.bf16.gmra.mxu0 %v2435
  %v2511 = vpop.f32.mrf.mxu0
  %v2512 = vadd.f32 0.0, %v2511
  %v2513 = vpop.f32.mrf.mxu0
  %v2514 = vadd.f32 0.0, %v2513
  %v2515 = vpop.f32.mrf.mxu0
  %v2516 = vpop.f32.mrf.mxu0
  %2517 = vdwg.mxu0
  %2518 = vmatprep.subr.bf16.mxu0 %v1259
  %2519 = vmatpush1.bf16.msra.mxu0 %v1258
  %2520 = vmatprep.subr.bf16.mxu0 %v1255
  %2521 = vmatpush1.bf16.msra.mxu0 %v1254
  %2522 = vmatprep.subr.bf16.mxu0 %v1251
  %2523 = vmatpush1.bf16.msra.mxu0 %v1250
  %2524 = vmatprep.subr.bf16.mxu0 %v1247
  %2525 = vmatpush1.bf16.msra.mxu0 %v1246
  %2526 = vmatprep.subr.bf16.mxu0 %v1243
  %2527 = vmatpush1.bf16.msra.mxu0 %v1242
  %2528 = vmatprep.subr.bf16.mxu0 %v1239
  %2529 = vmatpush1.bf16.msra.mxu0 %v1238
  %2530 = vmatprep.subr.bf16.mxu0 %v1235
  %2531 = vmatpush1.bf16.msra.mxu0 %v1234
  %2532 = vmatprep.subr.bf16.mxu0 %v1231
  %2533 = vmatpush1.bf16.msra.mxu0 %v1230
  %2534 = vmatprep.subr.bf16.mxu0 0
  %2535 = vmatpush2.bf16.msra.mxu0 0
  %2536 = vmatprep.subr.bf16.mxu0 0
  %2537 = vmatpush2.bf16.msra.mxu0 0
  %2538 = vmatprep.subr.bf16.mxu0 0
  %2539 = vmatpush2.bf16.msra.mxu0 0
  %2540 = vmatprep.subr.bf16.mxu0 0
  %2541 = vmatpush2.bf16.msra.mxu0 0
  %2542 = vmatprep.subr.bf16.mxu0 0
  %2543 = vmatpush2.bf16.msra.mxu0 0
  %2544 = vmatprep.subr.bf16.mxu0 0
  %2545 = vmatpush2.bf16.msra.mxu0 0
  %2546 = vmatprep.subr.bf16.mxu0 0
  %2547 = vmatpush2.bf16.msra.mxu0 0
  %2548 = vmatprep.subr.bf16.mxu0 0
  %2549 = vmatpush2.bf16.msra.mxu0 0
  %2550 = vmatprep.mubr.bf16.mxu0 0
  %2551 = vmatmul.mubr.bf16.gmra.mxu0 %v2434
  %v2552 = vpop.f32.mrf.mxu0
  %v2553 = vadd.f32 %v2471, %v2552
  %v2554 = vpop.f32.mrf.mxu0
  %v2555 = vadd.f32 %v2473, %v2554
  %v2556 = vpop.f32.mrf.mxu0
  %v2557 = vpop.f32.mrf.mxu0
  %2558 = vdwg.mxu0
  %2559 = vmatprep.subr.bf16.mxu0 %v1261
  %2560 = vmatpush1.bf16.msra.mxu0 %v1260
  %2561 = vmatprep.subr.bf16.mxu0 %v1257
  %2562 = vmatpush1.bf16.msra.mxu0 %v1256
  %2563 = vmatprep.subr.bf16.mxu0 %v1253
  %2564 = vmatpush1.bf16.msra.mxu0 %v1252
  %2565 = vmatprep.subr.bf16.mxu0 %v1249
  %2566 = vmatpush1.bf16.msra.mxu0 %v1248
  %2567 = vmatprep.subr.bf16.mxu0 %v1245
  %2568 = vmatpush1.bf16.msra.mxu0 %v1244
  %2569 = vmatprep.subr.bf16.mxu0 %v1241
  %2570 = vmatpush1.bf16.msra.mxu0 %v1240
  %2571 = vmatprep.subr.bf16.mxu0 %v1237
  %2572 = vmatpush1.bf16.msra.mxu0 %v1236
  %2573 = vmatprep.subr.bf16.mxu0 %v1233
  %2574 = vmatpush1.bf16.msra.mxu0 %v1232
  %2575 = vmatprep.subr.bf16.mxu0 0
  %2576 = vmatpush2.bf16.msra.mxu0 0
  %2577 = vmatprep.subr.bf16.mxu0 0
  %2578 = vmatpush2.bf16.msra.mxu0 0
  %2579 = vmatprep.subr.bf16.mxu0 0
  %2580 = vmatpush2.bf16.msra.mxu0 0
  %2581 = vmatprep.subr.bf16.mxu0 0
  %2582 = vmatpush2.bf16.msra.mxu0 0
  %2583 = vmatprep.subr.bf16.mxu0 0
  %2584 = vmatpush2.bf16.msra.mxu0 0
  %2585 = vmatprep.subr.bf16.mxu0 0
  %2586 = vmatpush2.bf16.msra.mxu0 0
  %2587 = vmatprep.subr.bf16.mxu0 0
  %2588 = vmatpush2.bf16.msra.mxu0 0
  %2589 = vmatprep.subr.bf16.mxu0 0
  %2590 = vmatpush2.bf16.msra.mxu0 0
  %2591 = vmatprep.mubr.bf16.mxu0 0
  %2592 = vmatmul.mubr.bf16.gmra.mxu0 %v2434
  %v2593 = vpop.f32.mrf.mxu0
  %v2594 = vadd.f32 %v2512, %v2593
  %v2595 = vpop.f32.mrf.mxu0
  %v2596 = vadd.f32 %v2514, %v2595
  %v2597 = vpop.f32.mrf.mxu0
  %v2598 = vpop.f32.mrf.mxu0
  %2599 = vdwg.mxu0
  %v2600 = vadd.f32 %v2553, %v1380
  %v2601 = vadd.f32 %v2555, %v1384
  %v2602 = vadd.f32 %v2594, %v1388
  %v2603 = vadd.f32 %v2596, %v1392
  %v2604 = vmul.f32 %v2600, 0.5
  %v2605 = vmul.f32 %v2601, 0.5
  %v2606 = vmul.f32 %v2602, 0.5
  %v2607 = vtanh.pop %v2604
  %v2608 = vtanh.pop %v2605
  %v2609 = vtanh.pop %v2606
  %v2610 = vmul.f32 %v2607, 0.5
  %v2611 = vmul.f32 %v2608, 0.5
  %v2612 = vmul.f32 %v2609, 0.5
  %v2613 = vadd.f32 %v2610, 0.5
  %v2614 = vadd.f32 %v2611, 0.5
  %v2615 = vadd.f32 %v2612, 0.5
  %v2616 = vtanh.pop %v2603
  %v2617 = vmul.f32 %v2614, %v2318
  %v2618 = vmul.f32 %v2613, %v2616
  %v2619 = vadd.f32 %v2617, %v2618
  %v2620 = vtanh.pop %v2619
  %v2621 = vmul.f32 %v2615, %v2620
  %s2622 = scalar_lea.vmem %s7, 32
  %2623 = vst [vmem:[%s2622] sm:$0xff] %v2621
  %s2624 = smul.u32 5, 4
  %s2625 = smul.addr %s2624, 8
  %s2626 = scalar_lea.vmem [#allocation2], %s2625
  %v2627 = vld [vmem:[%s2626] sm:$0xff]
  %v2628 = vld [vmem:[%s2626 + $0x8] sm:$0xff]
  %v2629 = vld [vmem:[%s2626 + $0x10] sm:$0xff]
  %v2630 = vld [vmem:[%s2626 + $0x18] sm:$0xff]
  %2631 = vmatprep.subr.bf16.mxu0 %v752
  %2632 = vmatpush1.bf16.msra.mxu0 %v751
  %2633 = vmatprep.subr.bf16.mxu0 %v748
  %2634 = vmatpush1.bf16.msra.mxu0 %v747
  %2635 = vmatprep.subr.bf16.mxu0 %v744
  %2636 = vmatpush1.bf16.msra.mxu0 %v743
  %2637 = vmatprep.subr.bf16.mxu0 %v740
  %2638 = vmatpush1.bf16.msra.mxu0 %v739
  %2639 = vmatprep.subr.bf16.mxu0 %v736
  %2640 = vmatpush1.bf16.msra.mxu0 %v735
  %2641 = vmatprep.subr.bf16.mxu0 %v732
  %2642 = vmatpush1.bf16.msra.mxu0 %v731
  %2643 = vmatprep.subr.bf16.mxu0 %v728
  %2644 = vmatpush1.bf16.msra.mxu0 %v727
  %2645 = vmatprep.subr.bf16.mxu0 %v724
  %2646 = vmatpush1.bf16.msra.mxu0 %v723
  %2647 = vmatprep.subr.bf16.mxu0 0
  %2648 = vmatpush2.bf16.msra.mxu0 0
  %2649 = vmatprep.subr.bf16.mxu0 0
  %2650 = vmatpush2.bf16.msra.mxu0 0
  %2651 = vmatprep.subr.bf16.mxu0 0
  %2652 = vmatpush2.bf16.msra.mxu0 0
  %2653 = vmatprep.subr.bf16.mxu0 0
  %2654 = vmatpush2.bf16.msra.mxu0 0
  %2655 = vmatprep.subr.bf16.mxu0 0
  %2656 = vmatpush2.bf16.msra.mxu0 0
  %2657 = vmatprep.subr.bf16.mxu0 0
  %2658 = vmatpush2.bf16.msra.mxu0 0
  %2659 = vmatprep.subr.bf16.mxu0 0
  %2660 = vmatpush2.bf16.msra.mxu0 0
  %2661 = vmatprep.subr.bf16.mxu0 0
  %2662 = vmatpush2.bf16.msra.mxu0 0
  %2663 = vmatprep.mubr.bf16.mxu0 0
  %2664 = vmatmul.mubr.bf16.gmra.mxu0 %v2434
  %v2665 = vpop.f32.mrf.mxu0
  %v2666 = vadd.f32 0.0, %v2665
  %v2667 = vpop.f32.mrf.mxu0
  %v2668 = vadd.f32 0.0, %v2667
  %v2669 = vpop.f32.mrf.mxu0
  %v2670 = vpop.f32.mrf.mxu0
  %2671 = vdwg.mxu0
  %2672 = vmatprep.subr.bf16.mxu0 %v754
  %2673 = vmatpush1.bf16.msra.mxu0 %v753
  %2674 = vmatprep.subr.bf16.mxu0 %v750
  %2675 = vmatpush1.bf16.msra.mxu0 %v749
  %2676 = vmatprep.subr.bf16.mxu0 %v746
  %2677 = vmatpush1.bf16.msra.mxu0 %v745
  %2678 = vmatprep.subr.bf16.mxu0 %v742
  %2679 = vmatpush1.bf16.msra.mxu0 %v741
  %2680 = vmatprep.subr.bf16.mxu0 %v738
  %2681 = vmatpush1.bf16.msra.mxu0 %v737
  %2682 = vmatprep.subr.bf16.mxu0 %v734
  %2683 = vmatpush1.bf16.msra.mxu0 %v733
  %2684 = vmatprep.subr.bf16.mxu0 %v730
  %2685 = vmatpush1.bf16.msra.mxu0 %v729
  %2686 = vmatprep.subr.bf16.mxu0 %v726
  %2687 = vmatpush1.bf16.msra.mxu0 %v725
  %2688 = vmatprep.subr.bf16.mxu0 0
  %2689 = vmatpush2.bf16.msra.mxu0 0
  %2690 = vmatprep.subr.bf16.mxu0 0
  %2691 = vmatpush2.bf16.msra.mxu0 0
  %2692 = vmatprep.subr.bf16.mxu0 0
  %2693 = vmatpush2.bf16.msra.mxu0 0
  %2694 = vmatprep.subr.bf16.mxu0 0
  %2695 = vmatpush2.bf16.msra.mxu0 0
  %2696 = vmatprep.subr.bf16.mxu0 0
  %2697 = vmatpush2.bf16.msra.mxu0 0
  %2698 = vmatprep.subr.bf16.mxu0 0
  %2699 = vmatpush2.bf16.msra.mxu0 0
  %2700 = vmatprep.subr.bf16.mxu0 0
  %2701 = vmatpush2.bf16.msra.mxu0 0
  %2702 = vmatprep.subr.bf16.mxu0 0
  %2703 = vmatpush2.bf16.msra.mxu0 0
  %2704 = vmatprep.mubr.bf16.mxu0 0
  %2705 = vmatmul.mubr.bf16.gmra.mxu0 %v2434
  %v2706 = vpop.f32.mrf.mxu0
  %v2707 = vadd.f32 0.0, %v2706
  %v2708 = vpop.f32.mrf.mxu0
  %v2709 = vadd.f32 0.0, %v2708
  %v2710 = vpop.f32.mrf.mxu0
  %v2711 = vpop.f32.mrf.mxu0
  %2712 = vdwg.mxu0
  %v2713 = vadd.f32 %v2627, %v2666
  %v2714 = vadd.f32 %v2628, %v2668
  %v2715 = vadd.f32 %v2629, %v2707
  %v2716 = vadd.f32 %v2630, %v2709
  %v2717 = vmul.f32 %v2713, 0.5
  %v2718 = vmul.f32 %v2714, 0.5
  %v2719 = vmul.f32 %v2715, 0.5
  %v2720 = vtanh.pop %v2717
  %v2721 = vtanh.pop %v2718
  %v2722 = vtanh.pop %v2719
  %v2723 = vmul.f32 %v2720, 0.5
  %v2724 = vmul.f32 %v2721, 0.5
  %v2725 = vmul.f32 %v2722, 0.5
  %v2726 = vadd.f32 %v2723, 0.5
  %v2727 = vadd.f32 %v2724, 0.5
  %v2728 = vadd.f32 %v2725, 0.5
  %v2729 = vtanh.pop %v2716
  %v2730 = vmul.f32 %v2727, %v2431
  %v2731 = vmul.f32 %v2726, %v2729
  %v2732 = vadd.f32 %v2730, %v2731
  %v2733 = vtanh.pop %v2732
  %v2734 = vmul.f32 %v2728, %v2733
  %v2735 = vpack.c.bf16 %v2734, %v2734
  %v2736 = vpack.c.bf16 %v2621, %v2621
  %2737 = vmatprep.subr.bf16.mxu0 %v1017
  %2738 = vmatpush1.bf16.msra.mxu0 %v1016
  %2739 = vmatprep.subr.bf16.mxu0 %v1013
  %2740 = vmatpush1.bf16.msra.mxu0 %v1012
  %2741 = vmatprep.subr.bf16.mxu0 %v1009
  %2742 = vmatpush1.bf16.msra.mxu0 %v1008
  %2743 = vmatprep.subr.bf16.mxu0 %v1005
  %2744 = vmatpush1.bf16.msra.mxu0 %v1004
  %2745 = vmatprep.subr.bf16.mxu0 %v1001
  %2746 = vmatpush1.bf16.msra.mxu0 %v1000
  %2747 = vmatprep.subr.bf16.mxu0 %v997
  %2748 = vmatpush1.bf16.msra.mxu0 %v996
  %2749 = vmatprep.subr.bf16.mxu0 %v993
  %2750 = vmatpush1.bf16.msra.mxu0 %v992
  %2751 = vmatprep.subr.bf16.mxu0 %v989
  %2752 = vmatpush1.bf16.msra.mxu0 %v988
  %2753 = vmatprep.subr.bf16.mxu0 0
  %2754 = vmatpush2.bf16.msra.mxu0 0
  %2755 = vmatprep.subr.bf16.mxu0 0
  %2756 = vmatpush2.bf16.msra.mxu0 0
  %2757 = vmatprep.subr.bf16.mxu0 0
  %2758 = vmatpush2.bf16.msra.mxu0 0
  %2759 = vmatprep.subr.bf16.mxu0 0
  %2760 = vmatpush2.bf16.msra.mxu0 0
  %2761 = vmatprep.subr.bf16.mxu0 0
  %2762 = vmatpush2.bf16.msra.mxu0 0
  %2763 = vmatprep.subr.bf16.mxu0 0
  %2764 = vmatpush2.bf16.msra.mxu0 0
  %2765 = vmatprep.subr.bf16.mxu0 0
  %2766 = vmatpush2.bf16.msra.mxu0 0
  %2767 = vmatprep.subr.bf16.mxu0 0
  %2768 = vmatpush2.bf16.msra.mxu0 0
  %2769 = vmatprep.mubr.bf16.mxu0 0
  %2770 = vmatmul.mubr.bf16.gmra.mxu0 %v2736
  %v2771 = vpop.f32.mrf.mxu0
  %v2772 = vadd.f32 0.0, %v2771
  %v2773 = vpop.f32.mrf.mxu0
  %v2774 = vadd.f32 0.0, %v2773
  %v2775 = vpop.f32.mrf.mxu0
  %v2776 = vpop.f32.mrf.mxu0
  %2777 = vdwg.mxu0
  %2778 = vmatprep.subr.bf16.mxu0 %v1019
  %2779 = vmatpush1.bf16.msra.mxu0 %v1018
  %2780 = vmatprep.subr.bf16.mxu0 %v1015
  %2781 = vmatpush1.bf16.msra.mxu0 %v1014
  %2782 = vmatprep.subr.bf16.mxu0 %v1011
  %2783 = vmatpush1.bf16.msra.mxu0 %v1010
  %2784 = vmatprep.subr.bf16.mxu0 %v1007
  %2785 = vmatpush1.bf16.msra.mxu0 %v1006
  %2786 = vmatprep.subr.bf16.mxu0 %v1003
  %2787 = vmatpush1.bf16.msra.mxu0 %v1002
  %2788 = vmatprep.subr.bf16.mxu0 %v999
  %2789 = vmatpush1.bf16.msra.mxu0 %v998
  %2790 = vmatprep.subr.bf16.mxu0 %v995
  %2791 = vmatpush1.bf16.msra.mxu0 %v994
  %2792 = vmatprep.subr.bf16.mxu0 %v991
  %2793 = vmatpush1.bf16.msra.mxu0 %v990
  %2794 = vmatprep.subr.bf16.mxu0 0
  %2795 = vmatpush2.bf16.msra.mxu0 0
  %2796 = vmatprep.subr.bf16.mxu0 0
  %2797 = vmatpush2.bf16.msra.mxu0 0
  %2798 = vmatprep.subr.bf16.mxu0 0
  %2799 = vmatpush2.bf16.msra.mxu0 0
  %2800 = vmatprep.subr.bf16.mxu0 0
  %2801 = vmatpush2.bf16.msra.mxu0 0
  %2802 = vmatprep.subr.bf16.mxu0 0
  %2803 = vmatpush2.bf16.msra.mxu0 0
  %2804 = vmatprep.subr.bf16.mxu0 0
  %2805 = vmatpush2.bf16.msra.mxu0 0
  %2806 = vmatprep.subr.bf16.mxu0 0
  %2807 = vmatpush2.bf16.msra.mxu0 0
  %2808 = vmatprep.subr.bf16.mxu0 0
  %2809 = vmatpush2.bf16.msra.mxu0 0
  %2810 = vmatprep.mubr.bf16.mxu0 0
  %2811 = vmatmul.mubr.bf16.gmra.mxu0 %v2736
  %v2812 = vpop.f32.mrf.mxu0
  %v2813 = vadd.f32 0.0, %v2812
  %v2814 = vpop.f32.mrf.mxu0
  %v2815 = vadd.f32 0.0, %v2814
  %v2816 = vpop.f32.mrf.mxu0
  %v2817 = vpop.f32.mrf.mxu0
  %2818 = vdwg.mxu0
  %2819 = vmatprep.subr.bf16.mxu0 %v1259
  %2820 = vmatpush1.bf16.msra.mxu0 %v1258
  %2821 = vmatprep.subr.bf16.mxu0 %v1255
  %2822 = vmatpush1.bf16.msra.mxu0 %v1254
  %2823 = vmatprep.subr.bf16.mxu0 %v1251
  %2824 = vmatpush1.bf16.msra.mxu0 %v1250
  %2825 = vmatprep.subr.bf16.mxu0 %v1247
  %2826 = vmatpush1.bf16.msra.mxu0 %v1246
  %2827 = vmatprep.subr.bf16.mxu0 %v1243
  %2828 = vmatpush1.bf16.msra.mxu0 %v1242
  %2829 = vmatprep.subr.bf16.mxu0 %v1239
  %2830 = vmatpush1.bf16.msra.mxu0 %v1238
  %2831 = vmatprep.subr.bf16.mxu0 %v1235
  %2832 = vmatpush1.bf16.msra.mxu0 %v1234
  %2833 = vmatprep.subr.bf16.mxu0 %v1231
  %2834 = vmatpush1.bf16.msra.mxu0 %v1230
  %2835 = vmatprep.subr.bf16.mxu0 0
  %2836 = vmatpush2.bf16.msra.mxu0 0
  %2837 = vmatprep.subr.bf16.mxu0 0
  %2838 = vmatpush2.bf16.msra.mxu0 0
  %2839 = vmatprep.subr.bf16.mxu0 0
  %2840 = vmatpush2.bf16.msra.mxu0 0
  %2841 = vmatprep.subr.bf16.mxu0 0
  %2842 = vmatpush2.bf16.msra.mxu0 0
  %2843 = vmatprep.subr.bf16.mxu0 0
  %2844 = vmatpush2.bf16.msra.mxu0 0
  %2845 = vmatprep.subr.bf16.mxu0 0
  %2846 = vmatpush2.bf16.msra.mxu0 0
  %2847 = vmatprep.subr.bf16.mxu0 0
  %2848 = vmatpush2.bf16.msra.mxu0 0
  %2849 = vmatprep.subr.bf16.mxu0 0
  %2850 = vmatpush2.bf16.msra.mxu0 0
  %2851 = vmatprep.mubr.bf16.mxu0 0
  %2852 = vmatmul.mubr.bf16.gmra.mxu0 %v2735
  %v2853 = vpop.f32.mrf.mxu0
  %v2854 = vadd.f32 %v2772, %v2853
  %v2855 = vpop.f32.mrf.mxu0
  %v2856 = vadd.f32 %v2774, %v2855
  %v2857 = vpop.f32.mrf.mxu0
  %v2858 = vpop.f32.mrf.mxu0
  %2859 = vdwg.mxu0
  %2860 = vmatprep.subr.bf16.mxu0 %v1261
  %2861 = vmatpush1.bf16.msra.mxu0 %v1260
  %2862 = vmatprep.subr.bf16.mxu0 %v1257
  %2863 = vmatpush1.bf16.msra.mxu0 %v1256
  %2864 = vmatprep.subr.bf16.mxu0 %v1253
  %2865 = vmatpush1.bf16.msra.mxu0 %v1252
  %2866 = vmatprep.subr.bf16.mxu0 %v1249
  %2867 = vmatpush1.bf16.msra.mxu0 %v1248
  %2868 = vmatprep.subr.bf16.mxu0 %v1245
  %2869 = vmatpush1.bf16.msra.mxu0 %v1244
  %2870 = vmatprep.subr.bf16.mxu0 %v1241
  %2871 = vmatpush1.bf16.msra.mxu0 %v1240
  %2872 = vmatprep.subr.bf16.mxu0 %v1237
  %2873 = vmatpush1.bf16.msra.mxu0 %v1236
  %2874 = vmatprep.subr.bf16.mxu0 %v1233
  %2875 = vmatpush1.bf16.msra.mxu0 %v1232
  %2876 = vmatprep.subr.bf16.mxu0 0
  %2877 = vmatpush2.bf16.msra.mxu0 0
  %2878 = vmatprep.subr.bf16.mxu0 0
  %2879 = vmatpush2.bf16.msra.mxu0 0
  %2880 = vmatprep.subr.bf16.mxu0 0
  %2881 = vmatpush2.bf16.msra.mxu0 0
  %2882 = vmatprep.subr.bf16.mxu0 0
  %2883 = vmatpush2.bf16.msra.mxu0 0
  %2884 = vmatprep.subr.bf16.mxu0 0
  %2885 = vmatpush2.bf16.msra.mxu0 0
  %2886 = vmatprep.subr.bf16.mxu0 0
  %2887 = vmatpush2.bf16.msra.mxu0 0
  %2888 = vmatprep.subr.bf16.mxu0 0
  %2889 = vmatpush2.bf16.msra.mxu0 0
  %2890 = vmatprep.subr.bf16.mxu0 0
  %2891 = vmatpush2.bf16.msra.mxu0 0
  %2892 = vmatprep.mubr.bf16.mxu0 0
  %2893 = vmatmul.mubr.bf16.gmra.mxu0 %v2735
  %v2894 = vpop.f32.mrf.mxu0
  %v2895 = vadd.f32 %v2813, %v2894
  %v2896 = vpop.f32.mrf.mxu0
  %v2897 = vadd.f32 %v2815, %v2896
  %v2898 = vpop.f32.mrf.mxu0
  %v2899 = vpop.f32.mrf.mxu0
  %2900 = vdwg.mxu0
  %v2901 = vadd.f32 %v2854, %v1380
  %v2902 = vadd.f32 %v2856, %v1384
  %v2903 = vadd.f32 %v2895, %v1388
  %v2904 = vadd.f32 %v2897, %v1392
  %v2905 = vmul.f32 %v2901, 0.5
  %v2906 = vmul.f32 %v2902, 0.5
  %v2907 = vmul.f32 %v2903, 0.5
  %v2908 = vtanh.pop %v2905
  %v2909 = vtanh.pop %v2906
  %v2910 = vtanh.pop %v2907
  %v2911 = vmul.f32 %v2908, 0.5
  %v2912 = vmul.f32 %v2909, 0.5
  %v2913 = vmul.f32 %v2910, 0.5
  %v2914 = vadd.f32 %v2911, 0.5
  %v2915 = vadd.f32 %v2912, 0.5
  %v2916 = vadd.f32 %v2913, 0.5
  %v2917 = vtanh.pop %v2904
  %v2918 = vmul.f32 %v2915, %v2619
  %v2919 = vmul.f32 %v2914, %v2917
  %v2920 = vadd.f32 %v2918, %v2919
  %v2921 = vtanh.pop %v2920
  %v2922 = vmul.f32 %v2916, %v2921
  %s2923 = scalar_lea.vmem %s7, 40
  %2924 = vst [vmem:[%s2923] sm:$0xff] %v2922
  %s2925 = smul.u32 6, 4
  %s2926 = smul.addr %s2925, 8
  %s2927 = scalar_lea.vmem [#allocation2], %s2926
  %v2928 = vld [vmem:[%s2927] sm:$0xff]
  %v2929 = vld [vmem:[%s2927 + $0x8] sm:$0xff]
  %v2930 = vld [vmem:[%s2927 + $0x10] sm:$0xff]
  %v2931 = vld [vmem:[%s2927 + $0x18] sm:$0xff]
  %2932 = vmatprep.subr.bf16.mxu0 %v752
  %2933 = vmatpush1.bf16.msra.mxu0 %v751
  %2934 = vmatprep.subr.bf16.mxu0 %v748
  %2935 = vmatpush1.bf16.msra.mxu0 %v747
  %2936 = vmatprep.subr.bf16.mxu0 %v744
  %2937 = vmatpush1.bf16.msra.mxu0 %v743
  %2938 = vmatprep.subr.bf16.mxu0 %v740
  %2939 = vmatpush1.bf16.msra.mxu0 %v739
  %2940 = vmatprep.subr.bf16.mxu0 %v736
  %2941 = vmatpush1.bf16.msra.mxu0 %v735
  %2942 = vmatprep.subr.bf16.mxu0 %v732
  %2943 = vmatpush1.bf16.msra.mxu0 %v731
  %2944 = vmatprep.subr.bf16.mxu0 %v728
  %2945 = vmatpush1.bf16.msra.mxu0 %v727
  %2946 = vmatprep.subr.bf16.mxu0 %v724
  %2947 = vmatpush1.bf16.msra.mxu0 %v723
  %2948 = vmatprep.subr.bf16.mxu0 0
  %2949 = vmatpush2.bf16.msra.mxu0 0
  %2950 = vmatprep.subr.bf16.mxu0 0
  %2951 = vmatpush2.bf16.msra.mxu0 0
  %2952 = vmatprep.subr.bf16.mxu0 0
  %2953 = vmatpush2.bf16.msra.mxu0 0
  %2954 = vmatprep.subr.bf16.mxu0 0
  %2955 = vmatpush2.bf16.msra.mxu0 0
  %2956 = vmatprep.subr.bf16.mxu0 0
  %2957 = vmatpush2.bf16.msra.mxu0 0
  %2958 = vmatprep.subr.bf16.mxu0 0
  %2959 = vmatpush2.bf16.msra.mxu0 0
  %2960 = vmatprep.subr.bf16.mxu0 0
  %2961 = vmatpush2.bf16.msra.mxu0 0
  %2962 = vmatprep.subr.bf16.mxu0 0
  %2963 = vmatpush2.bf16.msra.mxu0 0
  %2964 = vmatprep.mubr.bf16.mxu0 0
  %2965 = vmatmul.mubr.bf16.gmra.mxu0 %v2735
  %v2966 = vpop.f32.mrf.mxu0
  %v2967 = vadd.f32 0.0, %v2966
  %v2968 = vpop.f32.mrf.mxu0
  %v2969 = vadd.f32 0.0, %v2968
  %v2970 = vpop.f32.mrf.mxu0
  %v2971 = vpop.f32.mrf.mxu0
  %2972 = vdwg.mxu0
  %2973 = vmatprep.subr.bf16.mxu0 %v754
  %2974 = vmatpush1.bf16.msra.mxu0 %v753
  %2975 = vmatprep.subr.bf16.mxu0 %v750
  %2976 = vmatpush1.bf16.msra.mxu0 %v749
  %2977 = vmatprep.subr.bf16.mxu0 %v746
  %2978 = vmatpush1.bf16.msra.mxu0 %v745
  %2979 = vmatprep.subr.bf16.mxu0 %v742
  %2980 = vmatpush1.bf16.msra.mxu0 %v741
  %2981 = vmatprep.subr.bf16.mxu0 %v738
  %2982 = vmatpush1.bf16.msra.mxu0 %v737
  %2983 = vmatprep.subr.bf16.mxu0 %v734
  %2984 = vmatpush1.bf16.msra.mxu0 %v733
  %2985 = vmatprep.subr.bf16.mxu0 %v730
  %2986 = vmatpush1.bf16.msra.mxu0 %v729
  %2987 = vmatprep.subr.bf16.mxu0 %v726
  %2988 = vmatpush1.bf16.msra.mxu0 %v725
  %2989 = vmatprep.subr.bf16.mxu0 0
  %2990 = vmatpush2.bf16.msra.mxu0 0
  %2991 = vmatprep.subr.bf16.mxu0 0
  %2992 = vmatpush2.bf16.msra.mxu0 0
  %2993 = vmatprep.subr.bf16.mxu0 0
  %2994 = vmatpush2.bf16.msra.mxu0 0
  %2995 = vmatprep.subr.bf16.mxu0 0
  %2996 = vmatpush2.bf16.msra.mxu0 0
  %2997 = vmatprep.subr.bf16.mxu0 0
  %2998 = vmatpush2.bf16.msra.mxu0 0
  %2999 = vmatprep.subr.bf16.mxu0 0
  %3000 = vmatpush2.bf16.msra.mxu0 0
  %3001 = vmatprep.subr.bf16.mxu0 0
  %3002 = vmatpush2.bf16.msra.mxu0 0
  %3003 = vmatprep.subr.bf16.mxu0 0
  %3004 = vmatpush2.bf16.msra.mxu0 0
  %3005 = vmatprep.mubr.bf16.mxu0 0
  %3006 = vmatmul.mubr.bf16.gmra.mxu0 %v2735
  %v3007 = vpop.f32.mrf.mxu0
  %v3008 = vadd.f32 0.0, %v3007
  %v3009 = vpop.f32.mrf.mxu0
  %v3010 = vadd.f32 0.0, %v3009
  %v3011 = vpop.f32.mrf.mxu0
  %v3012 = vpop.f32.mrf.mxu0
  %3013 = vdwg.mxu0
  %v3014 = vadd.f32 %v2928, %v2967
  %v3015 = vadd.f32 %v2929, %v2969
  %v3016 = vadd.f32 %v2930, %v3008
  %v3017 = vadd.f32 %v2931, %v3010
  %v3018 = vmul.f32 %v3014, 0.5
  %v3019 = vmul.f32 %v3015, 0.5
  %v3020 = vmul.f32 %v3016, 0.5
  %v3021 = vtanh.pop %v3018
  %v3022 = vtanh.pop %v3019
  %v3023 = vtanh.pop %v3020
  %v3024 = vmul.f32 %v3021, 0.5
  %v3025 = vmul.f32 %v3022, 0.5
  %v3026 = vmul.f32 %v3023, 0.5
  %v3027 = vadd.f32 %v3024, 0.5
  %v3028 = vadd.f32 %v3025, 0.5
  %v3029 = vadd.f32 %v3026, 0.5
  %v3030 = vtanh.pop %v3017
  %v3031 = vmul.f32 %v3028, %v2732
  %v3032 = vmul.f32 %v3027, %v3030
  %v3033 = vadd.f32 %v3031, %v3032
  %v3034 = vtanh.pop %v3033
  %v3035 = vmul.f32 %v3029, %v3034
  %v3036 = vpack.c.bf16 %v3035, %v3035
  %v3037 = vpack.c.bf16 %v2922, %v2922
  %3038 = vmatprep.subr.bf16.mxu0 %v1017
  %3039 = vmatpush1.bf16.msra.mxu0 %v1016
  %3040 = vmatprep.subr.bf16.mxu0 %v1013
  %3041 = vmatpush1.bf16.msra.mxu0 %v1012
  %3042 = vmatprep.subr.bf16.mxu0 %v1009
  %3043 = vmatpush1.bf16.msra.mxu0 %v1008
  %3044 = vmatprep.subr.bf16.mxu0 %v1005
  %3045 = vmatpush1.bf16.msra.mxu0 %v1004
  %3046 = vmatprep.subr.bf16.mxu0 %v1001
  %3047 = vmatpush1.bf16.msra.mxu0 %v1000
  %3048 = vmatprep.subr.bf16.mxu0 %v997
  %3049 = vmatpush1.bf16.msra.mxu0 %v996
  %3050 = vmatprep.subr.bf16.mxu0 %v993
  %3051 = vmatpush1.bf16.msra.mxu0 %v992
  %3052 = vmatprep.subr.bf16.mxu0 %v989
  %3053 = vmatpush1.bf16.msra.mxu0 %v988
  %3054 = vmatprep.subr.bf16.mxu0 0
  %3055 = vmatpush2.bf16.msra.mxu0 0
  %3056 = vmatprep.subr.bf16.mxu0 0
  %3057 = vmatpush2.bf16.msra.mxu0 0
  %3058 = vmatprep.subr.bf16.mxu0 0
  %3059 = vmatpush2.bf16.msra.mxu0 0
  %3060 = vmatprep.subr.bf16.mxu0 0
  %3061 = vmatpush2.bf16.msra.mxu0 0
  %3062 = vmatprep.subr.bf16.mxu0 0
  %3063 = vmatpush2.bf16.msra.mxu0 0
  %3064 = vmatprep.subr.bf16.mxu0 0
  %3065 = vmatpush2.bf16.msra.mxu0 0
  %3066 = vmatprep.subr.bf16.mxu0 0
  %3067 = vmatpush2.bf16.msra.mxu0 0
  %3068 = vmatprep.subr.bf16.mxu0 0
  %3069 = vmatpush2.bf16.msra.mxu0 0
  %3070 = vmatprep.mubr.bf16.mxu0 0
  %3071 = vmatmul.mubr.bf16.gmra.mxu0 %v3037
  %v3072 = vpop.f32.mrf.mxu0
  %v3073 = vadd.f32 0.0, %v3072
  %v3074 = vpop.f32.mrf.mxu0
  %v3075 = vadd.f32 0.0, %v3074
  %v3076 = vpop.f32.mrf.mxu0
  %v3077 = vpop.f32.mrf.mxu0
  %3078 = vdwg.mxu0
  %3079 = vmatprep.subr.bf16.mxu0 %v1019
  %3080 = vmatpush1.bf16.msra.mxu0 %v1018
  %3081 = vmatprep.subr.bf16.mxu0 %v1015
  %3082 = vmatpush1.bf16.msra.mxu0 %v1014
  %3083 = vmatprep.subr.bf16.mxu0 %v1011
  %3084 = vmatpush1.bf16.msra.mxu0 %v1010
  %3085 = vmatprep.subr.bf16.mxu0 %v1007
  %3086 = vmatpush1.bf16.msra.mxu0 %v1006
  %3087 = vmatprep.subr.bf16.mxu0 %v1003
  %3088 = vmatpush1.bf16.msra.mxu0 %v1002
  %3089 = vmatprep.subr.bf16.mxu0 %v999
  %3090 = vmatpush1.bf16.msra.mxu0 %v998
  %3091 = vmatprep.subr.bf16.mxu0 %v995
  %3092 = vmatpush1.bf16.msra.mxu0 %v994
  %3093 = vmatprep.subr.bf16.mxu0 %v991
  %3094 = vmatpush1.bf16.msra.mxu0 %v990
  %3095 = vmatprep.subr.bf16.mxu0 0
  %3096 = vmatpush2.bf16.msra.mxu0 0
  %3097 = vmatprep.subr.bf16.mxu0 0
  %3098 = vmatpush2.bf16.msra.mxu0 0
  %3099 = vmatprep.subr.bf16.mxu0 0
  %3100 = vmatpush2.bf16.msra.mxu0 0
  %3101 = vmatprep.subr.bf16.mxu0 0
  %3102 = vmatpush2.bf16.msra.mxu0 0
  %3103 = vmatprep.subr.bf16.mxu0 0
  %3104 = vmatpush2.bf16.msra.mxu0 0
  %3105 = vmatprep.subr.bf16.mxu0 0
  %3106 = vmatpush2.bf16.msra.mxu0 0
  %3107 = vmatprep.subr.bf16.mxu0 0
  %3108 = vmatpush2.bf16.msra.mxu0 0
  %3109 = vmatprep.subr.bf16.mxu0 0
  %3110 = vmatpush2.bf16.msra.mxu0 0
  %3111 = vmatprep.mubr.bf16.mxu0 0
  %3112 = vmatmul.mubr.bf16.gmra.mxu0 %v3037
  %v3113 = vpop.f32.mrf.mxu0
  %v3114 = vadd.f32 0.0, %v3113
  %v3115 = vpop.f32.mrf.mxu0
  %v3116 = vadd.f32 0.0, %v3115
  %v3117 = vpop.f32.mrf.mxu0
  %v3118 = vpop.f32.mrf.mxu0
  %3119 = vdwg.mxu0
  %3120 = vmatprep.subr.bf16.mxu0 %v1259
  %3121 = vmatpush1.bf16.msra.mxu0 %v1258
  %3122 = vmatprep.subr.bf16.mxu0 %v1255
  %3123 = vmatpush1.bf16.msra.mxu0 %v1254
  %3124 = vmatprep.subr.bf16.mxu0 %v1251
  %3125 = vmatpush1.bf16.msra.mxu0 %v1250
  %3126 = vmatprep.subr.bf16.mxu0 %v1247
  %3127 = vmatpush1.bf16.msra.mxu0 %v1246
  %3128 = vmatprep.subr.bf16.mxu0 %v1243
  %3129 = vmatpush1.bf16.msra.mxu0 %v1242
  %3130 = vmatprep.subr.bf16.mxu0 %v1239
  %3131 = vmatpush1.bf16.msra.mxu0 %v1238
  %3132 = vmatprep.subr.bf16.mxu0 %v1235
  %3133 = vmatpush1.bf16.msra.mxu0 %v1234
  %3134 = vmatprep.subr.bf16.mxu0 %v1231
  %3135 = vmatpush1.bf16.msra.mxu0 %v1230
  %3136 = vmatprep.subr.bf16.mxu0 0
  %3137 = vmatpush2.bf16.msra.mxu0 0
  %3138 = vmatprep.subr.bf16.mxu0 0
  %3139 = vmatpush2.bf16.msra.mxu0 0
  %3140 = vmatprep.subr.bf16.mxu0 0
  %3141 = vmatpush2.bf16.msra.mxu0 0
  %3142 = vmatprep.subr.bf16.mxu0 0
  %3143 = vmatpush2.bf16.msra.mxu0 0
  %3144 = vmatprep.subr.bf16.mxu0 0
  %3145 = vmatpush2.bf16.msra.mxu0 0
  %3146 = vmatprep.subr.bf16.mxu0 0
  %3147 = vmatpush2.bf16.msra.mxu0 0
  %3148 = vmatprep.subr.bf16.mxu0 0
  %3149 = vmatpush2.bf16.msra.mxu0 0
  %3150 = vmatprep.subr.bf16.mxu0 0
  %3151 = vmatpush2.bf16.msra.mxu0 0
  %3152 = vmatprep.mubr.bf16.mxu0 0
  %3153 = vmatmul.mubr.bf16.gmra.mxu0 %v3036
  %v3154 = vpop.f32.mrf.mxu0
  %v3155 = vadd.f32 %v3073, %v3154
  %v3156 = vpop.f32.mrf.mxu0
  %v3157 = vadd.f32 %v3075, %v3156
  %v3158 = vpop.f32.mrf.mxu0
  %v3159 = vpop.f32.mrf.mxu0
  %3160 = vdwg.mxu0
  %3161 = vmatprep.subr.bf16.mxu0 %v1261
  %3162 = vmatpush1.bf16.msra.mxu0 %v1260
  %3163 = vmatprep.subr.bf16.mxu0 %v1257
  %3164 = vmatpush1.bf16.msra.mxu0 %v1256
  %3165 = vmatprep.subr.bf16.mxu0 %v1253
  %3166 = vmatpush1.bf16.msra.mxu0 %v1252
  %3167 = vmatprep.subr.bf16.mxu0 %v1249
  %3168 = vmatpush1.bf16.msra.mxu0 %v1248
  %3169 = vmatprep.subr.bf16.mxu0 %v1245
  %3170 = vmatpush1.bf16.msra.mxu0 %v1244
  %3171 = vmatprep.subr.bf16.mxu0 %v1241
  %3172 = vmatpush1.bf16.msra.mxu0 %v1240
  %3173 = vmatprep.subr.bf16.mxu0 %v1237
  %3174 = vmatpush1.bf16.msra.mxu0 %v1236
  %3175 = vmatprep.subr.bf16.mxu0 %v1233
  %3176 = vmatpush1.bf16.msra.mxu0 %v1232
  %3177 = vmatprep.subr.bf16.mxu0 0
  %3178 = vmatpush2.bf16.msra.mxu0 0
  %3179 = vmatprep.subr.bf16.mxu0 0
  %3180 = vmatpush2.bf16.msra.mxu0 0
  %3181 = vmatprep.subr.bf16.mxu0 0
  %3182 = vmatpush2.bf16.msra.mxu0 0
  %3183 = vmatprep.subr.bf16.mxu0 0
  %3184 = vmatpush2.bf16.msra.mxu0 0
  %3185 = vmatprep.subr.bf16.mxu0 0
  %3186 = vmatpush2.bf16.msra.mxu0 0
  %3187 = vmatprep.subr.bf16.mxu0 0
  %3188 = vmatpush2.bf16.msra.mxu0 0
  %3189 = vmatprep.subr.bf16.mxu0 0
  %3190 = vmatpush2.bf16.msra.mxu0 0
  %3191 = vmatprep.subr.bf16.mxu0 0
  %3192 = vmatpush2.bf16.msra.mxu0 0
  %3193 = vmatprep.mubr.bf16.mxu0 0
  %3194 = vmatmul.mubr.bf16.gmra.mxu0 %v3036
  %v3195 = vpop.f32.mrf.mxu0
  %v3196 = vadd.f32 %v3114, %v3195
  %v3197 = vpop.f32.mrf.mxu0
  %v3198 = vadd.f32 %v3116, %v3197
  %v3199 = vpop.f32.mrf.mxu0
  %v3200 = vpop.f32.mrf.mxu0
  %3201 = vdwg.mxu0
  %v3202 = vadd.f32 %v3155, %v1380
  %v3203 = vadd.f32 %v3157, %v1384
  %v3204 = vadd.f32 %v3196, %v1388
  %v3205 = vadd.f32 %v3198, %v1392
  %v3206 = vmul.f32 %v3202, 0.5
  %v3207 = vmul.f32 %v3203, 0.5
  %v3208 = vmul.f32 %v3204, 0.5
  %v3209 = vtanh.pop %v3206
  %v3210 = vtanh.pop %v3207
  %v3211 = vtanh.pop %v3208
  %v3212 = vmul.f32 %v3209, 0.5
  %v3213 = vmul.f32 %v3210, 0.5
  %v3214 = vmul.f32 %v3211, 0.5
  %v3215 = vadd.f32 %v3212, 0.5
  %v3216 = vadd.f32 %v3213, 0.5
  %v3217 = vadd.f32 %v3214, 0.5
  %v3218 = vtanh.pop %v3205
  %v3219 = vmul.f32 %v3216, %v2920
  %v3220 = vmul.f32 %v3215, %v3218
  %v3221 = vadd.f32 %v3219, %v3220
  %v3222 = vtanh.pop %v3221
  %v3223 = vmul.f32 %v3217, %v3222
  %s3224 = scalar_lea.vmem %s7, 48
  %3225 = vst [vmem:[%s3224] sm:$0xff] %v3223
  %s3226 = smul.u32 7, 4
  %s3227 = smul.addr %s3226, 8
  %s3228 = scalar_lea.vmem [#allocation2], %s3227
  %v3229 = vld [vmem:[%s3228] sm:$0xff]
  %v3230 = vld [vmem:[%s3228 + $0x8] sm:$0xff]
  %v3231 = vld [vmem:[%s3228 + $0x10] sm:$0xff]
  %v3232 = vld [vmem:[%s3228 + $0x18] sm:$0xff]
  %3233 = vmatprep.subr.bf16.mxu0 %v752
  %3234 = vmatpush1.bf16.msra.mxu0 %v751
  %3235 = vmatprep.subr.bf16.mxu0 %v748
  %3236 = vmatpush1.bf16.msra.mxu0 %v747
  %3237 = vmatprep.subr.bf16.mxu0 %v744
  %3238 = vmatpush1.bf16.msra.mxu0 %v743
  %3239 = vmatprep.subr.bf16.mxu0 %v740
  %3240 = vmatpush1.bf16.msra.mxu0 %v739
  %3241 = vmatprep.subr.bf16.mxu0 %v736
  %3242 = vmatpush1.bf16.msra.mxu0 %v735
  %3243 = vmatprep.subr.bf16.mxu0 %v732
  %3244 = vmatpush1.bf16.msra.mxu0 %v731
  %3245 = vmatprep.subr.bf16.mxu0 %v728
  %3246 = vmatpush1.bf16.msra.mxu0 %v727
  %3247 = vmatprep.subr.bf16.mxu0 %v724
  %3248 = vmatpush1.bf16.msra.mxu0 %v723
  %3249 = vmatprep.subr.bf16.mxu0 0
  %3250 = vmatpush2.bf16.msra.mxu0 0
  %3251 = vmatprep.subr.bf16.mxu0 0
  %3252 = vmatpush2.bf16.msra.mxu0 0
  %3253 = vmatprep.subr.bf16.mxu0 0
  %3254 = vmatpush2.bf16.msra.mxu0 0
  %3255 = vmatprep.subr.bf16.mxu0 0
  %3256 = vmatpush2.bf16.msra.mxu0 0
  %3257 = vmatprep.subr.bf16.mxu0 0
  %3258 = vmatpush2.bf16.msra.mxu0 0
  %3259 = vmatprep.subr.bf16.mxu0 0
  %3260 = vmatpush2.bf16.msra.mxu0 0
  %3261 = vmatprep.subr.bf16.mxu0 0
  %3262 = vmatpush2.bf16.msra.mxu0 0
  %3263 = vmatprep.subr.bf16.mxu0 0
  %3264 = vmatpush2.bf16.msra.mxu0 0
  %3265 = vmatprep.mubr.bf16.mxu0 0
  %3266 = vmatmul.mubr.bf16.gmra.mxu0 %v3036
  %v3267 = vpop.f32.mrf.mxu0
  %v3268 = vadd.f32 0.0, %v3267
  %v3269 = vpop.f32.mrf.mxu0
  %v3270 = vadd.f32 0.0, %v3269
  %v3271 = vpop.f32.mrf.mxu0
  %v3272 = vpop.f32.mrf.mxu0
  %3273 = vdwg.mxu0
  %3274 = vmatprep.subr.bf16.mxu0 %v754
  %3275 = vmatpush1.bf16.msra.mxu0 %v753
  %3276 = vmatprep.subr.bf16.mxu0 %v750
  %3277 = vmatpush1.bf16.msra.mxu0 %v749
  %3278 = vmatprep.subr.bf16.mxu0 %v746
  %3279 = vmatpush1.bf16.msra.mxu0 %v745
  %3280 = vmatprep.subr.bf16.mxu0 %v742
  %3281 = vmatpush1.bf16.msra.mxu0 %v741
  %3282 = vmatprep.subr.bf16.mxu0 %v738
  %3283 = vmatpush1.bf16.msra.mxu0 %v737
  %3284 = vmatprep.subr.bf16.mxu0 %v734
  %3285 = vmatpush1.bf16.msra.mxu0 %v733
  %3286 = vmatprep.subr.bf16.mxu0 %v730
  %3287 = vmatpush1.bf16.msra.mxu0 %v729
  %3288 = vmatprep.subr.bf16.mxu0 %v726
  %3289 = vmatpush1.bf16.msra.mxu0 %v725
  %3290 = vmatprep.subr.bf16.mxu0 0
  %3291 = vmatpush2.bf16.msra.mxu0 0
  %3292 = vmatprep.subr.bf16.mxu0 0
  %3293 = vmatpush2.bf16.msra.mxu0 0
  %3294 = vmatprep.subr.bf16.mxu0 0
  %3295 = vmatpush2.bf16.msra.mxu0 0
  %3296 = vmatprep.subr.bf16.mxu0 0
  %3297 = vmatpush2.bf16.msra.mxu0 0
  %3298 = vmatprep.subr.bf16.mxu0 0
  %3299 = vmatpush2.bf16.msra.mxu0 0
  %3300 = vmatprep.subr.bf16.mxu0 0
  %3301 = vmatpush2.bf16.msra.mxu0 0
  %3302 = vmatprep.subr.bf16.mxu0 0
  %3303 = vmatpush2.bf16.msra.mxu0 0
  %3304 = vmatprep.subr.bf16.mxu0 0
  %3305 = vmatpush2.bf16.msra.mxu0 0
  %3306 = vmatprep.mubr.bf16.mxu0 0
  %3307 = vmatmul.mubr.bf16.gmra.mxu0 %v3036
  %v3308 = vpop.f32.mrf.mxu0
  %v3309 = vadd.f32 0.0, %v3308
  %v3310 = vpop.f32.mrf.mxu0
  %v3311 = vadd.f32 0.0, %v3310
  %v3312 = vpop.f32.mrf.mxu0
  %v3313 = vpop.f32.mrf.mxu0
  %3314 = vdwg.mxu0
  %v3315 = vadd.f32 %v3229, %v3268
  %v3316 = vadd.f32 %v3230, %v3270
  %v3317 = vadd.f32 %v3231, %v3309
  %v3318 = vadd.f32 %v3232, %v3311
  %v3319 = vmul.f32 %v3315, 0.5
  %v3320 = vmul.f32 %v3316, 0.5
  %v3321 = vmul.f32 %v3317, 0.5
  %v3322 = vtanh.pop %v3319
  %v3323 = vtanh.pop %v3320
  %v3324 = vtanh.pop %v3321
  %v3325 = vmul.f32 %v3322, 0.5
  %v3326 = vmul.f32 %v3323, 0.5
  %v3327 = vmul.f32 %v3324, 0.5
  %v3328 = vadd.f32 %v3325, 0.5
  %v3329 = vadd.f32 %v3326, 0.5
  %v3330 = vadd.f32 %v3327, 0.5
  %v3331 = vtanh.pop %v3318
  %v3332 = vmul.f32 %v3329, %v3033
  %v3333 = vmul.f32 %v3328, %v3331
  %v3334 = vadd.f32 %v3332, %v3333
  %v3335 = vtanh.pop %v3334
  %v3336 = vmul.f32 %v3330, %v3335
  %v3337 = vpack.c.bf16 %v3336, %v3336
  %v3338 = vpack.c.bf16 %v3223, %v3223
  %3339 = vmatprep.subr.bf16.mxu0 %v1017
  %3340 = vmatpush1.bf16.msra.mxu0 %v1016
  %3341 = vmatprep.subr.bf16.mxu0 %v1013
  %3342 = vmatpush1.bf16.msra.mxu0 %v1012
  %3343 = vmatprep.subr.bf16.mxu0 %v1009
  %3344 = vmatpush1.bf16.msra.mxu0 %v1008
  %3345 = vmatprep.subr.bf16.mxu0 %v1005
  %3346 = vmatpush1.bf16.msra.mxu0 %v1004
  %3347 = vmatprep.subr.bf16.mxu0 %v1001
  %3348 = vmatpush1.bf16.msra.mxu0 %v1000
  %3349 = vmatprep.subr.bf16.mxu0 %v997
  %3350 = vmatpush1.bf16.msra.mxu0 %v996
  %3351 = vmatprep.subr.bf16.mxu0 %v993
  %3352 = vmatpush1.bf16.msra.mxu0 %v992
  %3353 = vmatprep.subr.bf16.mxu0 %v989
  %3354 = vmatpush1.bf16.msra.mxu0 %v988
  %3355 = vmatprep.subr.bf16.mxu0 0
  %3356 = vmatpush2.bf16.msra.mxu0 0
  %3357 = vmatprep.subr.bf16.mxu0 0
  %3358 = vmatpush2.bf16.msra.mxu0 0
  %3359 = vmatprep.subr.bf16.mxu0 0
  %3360 = vmatpush2.bf16.msra.mxu0 0
  %3361 = vmatprep.subr.bf16.mxu0 0
  %3362 = vmatpush2.bf16.msra.mxu0 0
  %3363 = vmatprep.subr.bf16.mxu0 0
  %3364 = vmatpush2.bf16.msra.mxu0 0
  %3365 = vmatprep.subr.bf16.mxu0 0
  %3366 = vmatpush2.bf16.msra.mxu0 0
  %3367 = vmatprep.subr.bf16.mxu0 0
  %3368 = vmatpush2.bf16.msra.mxu0 0
  %3369 = vmatprep.subr.bf16.mxu0 0
  %3370 = vmatpush2.bf16.msra.mxu0 0
  %3371 = vmatprep.mubr.bf16.mxu0 0
  %3372 = vmatmul.mubr.bf16.gmra.mxu0 %v3338
  %v3373 = vpop.f32.mrf.mxu0
  %v3374 = vadd.f32 0.0, %v3373
  %v3375 = vpop.f32.mrf.mxu0
  %v3376 = vadd.f32 0.0, %v3375
  %v3377 = vpop.f32.mrf.mxu0
  %v3378 = vpop.f32.mrf.mxu0
  %3379 = vdwg.mxu0
  %3380 = vmatprep.subr.bf16.mxu0 %v1019
  %3381 = vmatpush1.bf16.msra.mxu0 %v1018
  %3382 = vmatprep.subr.bf16.mxu0 %v1015
  %3383 = vmatpush1.bf16.msra.mxu0 %v1014
  %3384 = vmatprep.subr.bf16.mxu0 %v1011
  %3385 = vmatpush1.bf16.msra.mxu0 %v1010
  %3386 = vmatprep.subr.bf16.mxu0 %v1007
  %3387 = vmatpush1.bf16.msra.mxu0 %v1006
  %3388 = vmatprep.subr.bf16.mxu0 %v1003
  %3389 = vmatpush1.bf16.msra.mxu0 %v1002
  %3390 = vmatprep.subr.bf16.mxu0 %v999
  %3391 = vmatpush1.bf16.msra.mxu0 %v998
  %3392 = vmatprep.subr.bf16.mxu0 %v995
  %3393 = vmatpush1.bf16.msra.mxu0 %v994
  %3394 = vmatprep.subr.bf16.mxu0 %v991
  %3395 = vmatpush1.bf16.msra.mxu0 %v990
  %3396 = vmatprep.subr.bf16.mxu0 0
  %3397 = vmatpush2.bf16.msra.mxu0 0
  %3398 = vmatprep.subr.bf16.mxu0 0
  %3399 = vmatpush2.bf16.msra.mxu0 0
  %3400 = vmatprep.subr.bf16.mxu0 0
  %3401 = vmatpush2.bf16.msra.mxu0 0
  %3402 = vmatprep.subr.bf16.mxu0 0
  %3403 = vmatpush2.bf16.msra.mxu0 0
  %3404 = vmatprep.subr.bf16.mxu0 0
  %3405 = vmatpush2.bf16.msra.mxu0 0
  %3406 = vmatprep.subr.bf16.mxu0 0
  %3407 = vmatpush2.bf16.msra.mxu0 0
  %3408 = vmatprep.subr.bf16.mxu0 0
  %3409 = vmatpush2.bf16.msra.mxu0 0
  %3410 = vmatprep.subr.bf16.mxu0 0
  %3411 = vmatpush2.bf16.msra.mxu0 0
  %3412 = vmatprep.mubr.bf16.mxu0 0
  %3413 = vmatmul.mubr.bf16.gmra.mxu0 %v3338
  %v3414 = vpop.f32.mrf.mxu0
  %v3415 = vadd.f32 0.0, %v3414
  %v3416 = vpop.f32.mrf.mxu0
  %v3417 = vadd.f32 0.0, %v3416
  %v3418 = vpop.f32.mrf.mxu0
  %v3419 = vpop.f32.mrf.mxu0
  %3420 = vdwg.mxu0
  %3421 = vmatprep.subr.bf16.mxu0 %v1259
  %3422 = vmatpush1.bf16.msra.mxu0 %v1258
  %3423 = vmatprep.subr.bf16.mxu0 %v1255
  %3424 = vmatpush1.bf16.msra.mxu0 %v1254
  %3425 = vmatprep.subr.bf16.mxu0 %v1251
  %3426 = vmatpush1.bf16.msra.mxu0 %v1250
  %3427 = vmatprep.subr.bf16.mxu0 %v1247
  %3428 = vmatpush1.bf16.msra.mxu0 %v1246
  %3429 = vmatprep.subr.bf16.mxu0 %v1243
  %3430 = vmatpush1.bf16.msra.mxu0 %v1242
  %3431 = vmatprep.subr.bf16.mxu0 %v1239
  %3432 = vmatpush1.bf16.msra.mxu0 %v1238
  %3433 = vmatprep.subr.bf16.mxu0 %v1235
  %3434 = vmatpush1.bf16.msra.mxu0 %v1234
  %3435 = vmatprep.subr.bf16.mxu0 %v1231
  %3436 = vmatpush1.bf16.msra.mxu0 %v1230
  %3437 = vmatprep.subr.bf16.mxu0 0
  %3438 = vmatpush2.bf16.msra.mxu0 0
  %3439 = vmatprep.subr.bf16.mxu0 0
  %3440 = vmatpush2.bf16.msra.mxu0 0
  %3441 = vmatprep.subr.bf16.mxu0 0
  %3442 = vmatpush2.bf16.msra.mxu0 0
  %3443 = vmatprep.subr.bf16.mxu0 0
  %3444 = vmatpush2.bf16.msra.mxu0 0
  %3445 = vmatprep.subr.bf16.mxu0 0
  %3446 = vmatpush2.bf16.msra.mxu0 0
  %3447 = vmatprep.subr.bf16.mxu0 0
  %3448 = vmatpush2.bf16.msra.mxu0 0
  %3449 = vmatprep.subr.bf16.mxu0 0
  %3450 = vmatpush2.bf16.msra.mxu0 0
  %3451 = vmatprep.subr.bf16.mxu0 0
  %3452 = vmatpush2.bf16.msra.mxu0 0
  %3453 = vmatprep.mubr.bf16.mxu0 0
  %3454 = vmatmul.mubr.bf16.gmra.mxu0 %v3337
  %v3455 = vpop.f32.mrf.mxu0
  %v3456 = vadd.f32 %v3374, %v3455
  %v3457 = vpop.f32.mrf.mxu0
  %v3458 = vadd.f32 %v3376, %v3457
  %v3459 = vpop.f32.mrf.mxu0
  %v3460 = vpop.f32.mrf.mxu0
  %3461 = vdwg.mxu0
  %3462 = vmatprep.subr.bf16.mxu0 %v1261
  %3463 = vmatpush1.bf16.msra.mxu0 %v1260
  %3464 = vmatprep.subr.bf16.mxu0 %v1257
  %3465 = vmatpush1.bf16.msra.mxu0 %v1256
  %3466 = vmatprep.subr.bf16.mxu0 %v1253
  %3467 = vmatpush1.bf16.msra.mxu0 %v1252
  %3468 = vmatprep.subr.bf16.mxu0 %v1249
  %3469 = vmatpush1.bf16.msra.mxu0 %v1248
  %3470 = vmatprep.subr.bf16.mxu0 %v1245
  %3471 = vmatpush1.bf16.msra.mxu0 %v1244
  %3472 = vmatprep.subr.bf16.mxu0 %v1241
  %3473 = vmatpush1.bf16.msra.mxu0 %v1240
  %3474 = vmatprep.subr.bf16.mxu0 %v1237
  %3475 = vmatpush1.bf16.msra.mxu0 %v1236
  %3476 = vmatprep.subr.bf16.mxu0 %v1233
  %3477 = vmatpush1.bf16.msra.mxu0 %v1232
  %3478 = vmatprep.subr.bf16.mxu0 0
  %3479 = vmatpush2.bf16.msra.mxu0 0
  %3480 = vmatprep.subr.bf16.mxu0 0
  %3481 = vmatpush2.bf16.msra.mxu0 0
  %3482 = vmatprep.subr.bf16.mxu0 0
  %3483 = vmatpush2.bf16.msra.mxu0 0
  %3484 = vmatprep.subr.bf16.mxu0 0
  %3485 = vmatpush2.bf16.msra.mxu0 0
  %3486 = vmatprep.subr.bf16.mxu0 0
  %3487 = vmatpush2.bf16.msra.mxu0 0
  %3488 = vmatprep.subr.bf16.mxu0 0
  %3489 = vmatpush2.bf16.msra.mxu0 0
  %3490 = vmatprep.subr.bf16.mxu0 0
  %3491 = vmatpush2.bf16.msra.mxu0 0
  %3492 = vmatprep.subr.bf16.mxu0 0
  %3493 = vmatpush2.bf16.msra.mxu0 0
  %3494 = vmatprep.mubr.bf16.mxu0 0
  %3495 = vmatmul.mubr.bf16.gmra.mxu0 %v3337
  %v3496 = vpop.f32.mrf.mxu0
  %v3497 = vadd.f32 %v3415, %v3496
  %v3498 = vpop.f32.mrf.mxu0
  %v3499 = vadd.f32 %v3417, %v3498
  %v3500 = vpop.f32.mrf.mxu0
  %v3501 = vpop.f32.mrf.mxu0
  %3502 = vdwg.mxu0
  %v3503 = vadd.f32 %v3456, %v1380
  %v3504 = vadd.f32 %v3458, %v1384
  %v3505 = vadd.f32 %v3497, %v1388
  %v3506 = vadd.f32 %v3499, %v1392
  %v3507 = vmul.f32 %v3503, 0.5
  %v3508 = vmul.f32 %v3504, 0.5
  %v3509 = vmul.f32 %v3505, 0.5
  %v3510 = vtanh.pop %v3507
  %v3511 = vtanh.pop %v3508
  %v3512 = vtanh.pop %v3509
  %v3513 = vmul.f32 %v3510, 0.5
  %v3514 = vmul.f32 %v3511, 0.5
  %v3515 = vmul.f32 %v3512, 0.5
  %v3516 = vadd.f32 %v3513, 0.5
  %v3517 = vadd.f32 %v3514, 0.5
  %v3518 = vadd.f32 %v3515, 0.5
  %v3519 = vtanh.pop %v3506
  %v3520 = vmul.f32 %v3517, %v3221
  %v3521 = vmul.f32 %v3516, %v3519
  %v3522 = vadd.f32 %v3520, %v3521
  %v3523 = vtanh.pop %v3522
  %v3524 = vmul.f32 %v3518, %v3523
  %s3525 = scalar_lea.vmem %s7, 56
  %3526 = vst [vmem:[%s3525] sm:$0xff] %v3524
  %s3527 = smul.u32 8, 4
  %s3528 = smul.addr %s3527, 8
  %s3529 = scalar_lea.vmem [#allocation2], %s3528
  %v3530 = vld [vmem:[%s3529] sm:$0xff]
  %v3531 = vld [vmem:[%s3529 + $0x8] sm:$0xff]
  %v3532 = vld [vmem:[%s3529 + $0x10] sm:$0xff]
  %v3533 = vld [vmem:[%s3529 + $0x18] sm:$0xff]
  %3534 = vmatprep.subr.bf16.mxu0 %v752
  %3535 = vmatpush1.bf16.msra.mxu0 %v751
  %3536 = vmatprep.subr.bf16.mxu0 %v748
  %3537 = vmatpush1.bf16.msra.mxu0 %v747
  %3538 = vmatprep.subr.bf16.mxu0 %v744
  %3539 = vmatpush1.bf16.msra.mxu0 %v743
  %3540 = vmatprep.subr.bf16.mxu0 %v740
  %3541 = vmatpush1.bf16.msra.mxu0 %v739
  %3542 = vmatprep.subr.bf16.mxu0 %v736
  %3543 = vmatpush1.bf16.msra.mxu0 %v735
  %3544 = vmatprep.subr.bf16.mxu0 %v732
  %3545 = vmatpush1.bf16.msra.mxu0 %v731
  %3546 = vmatprep.subr.bf16.mxu0 %v728
  %3547 = vmatpush1.bf16.msra.mxu0 %v727
  %3548 = vmatprep.subr.bf16.mxu0 %v724
  %3549 = vmatpush1.bf16.msra.mxu0 %v723
  %3550 = vmatprep.subr.bf16.mxu0 0
  %3551 = vmatpush2.bf16.msra.mxu0 0
  %3552 = vmatprep.subr.bf16.mxu0 0
  %3553 = vmatpush2.bf16.msra.mxu0 0
  %3554 = vmatprep.subr.bf16.mxu0 0
  %3555 = vmatpush2.bf16.msra.mxu0 0
  %3556 = vmatprep.subr.bf16.mxu0 0
  %3557 = vmatpush2.bf16.msra.mxu0 0
  %3558 = vmatprep.subr.bf16.mxu0 0
  %3559 = vmatpush2.bf16.msra.mxu0 0
  %3560 = vmatprep.subr.bf16.mxu0 0
  %3561 = vmatpush2.bf16.msra.mxu0 0
  %3562 = vmatprep.subr.bf16.mxu0 0
  %3563 = vmatpush2.bf16.msra.mxu0 0
  %3564 = vmatprep.subr.bf16.mxu0 0
  %3565 = vmatpush2.bf16.msra.mxu0 0
  %3566 = vmatprep.mubr.bf16.mxu0 0
  %3567 = vmatmul.mubr.bf16.gmra.mxu0 %v3337
  %v3568 = vpop.f32.mrf.mxu0
  %v3569 = vadd.f32 0.0, %v3568
  %v3570 = vpop.f32.mrf.mxu0
  %v3571 = vadd.f32 0.0, %v3570
  %v3572 = vpop.f32.mrf.mxu0
  %v3573 = vpop.f32.mrf.mxu0
  %3574 = vdwg.mxu0
  %3575 = vmatprep.subr.bf16.mxu0 %v754
  %3576 = vmatpush1.bf16.msra.mxu0 %v753
  %3577 = vmatprep.subr.bf16.mxu0 %v750
  %3578 = vmatpush1.bf16.msra.mxu0 %v749
  %3579 = vmatprep.subr.bf16.mxu0 %v746
  %3580 = vmatpush1.bf16.msra.mxu0 %v745
  %3581 = vmatprep.subr.bf16.mxu0 %v742
  %3582 = vmatpush1.bf16.msra.mxu0 %v741
  %3583 = vmatprep.subr.bf16.mxu0 %v738
  %3584 = vmatpush1.bf16.msra.mxu0 %v737
  %3585 = vmatprep.subr.bf16.mxu0 %v734
  %3586 = vmatpush1.bf16.msra.mxu0 %v733
  %3587 = vmatprep.subr.bf16.mxu0 %v730
  %3588 = vmatpush1.bf16.msra.mxu0 %v729
  %3589 = vmatprep.subr.bf16.mxu0 %v726
  %3590 = vmatpush1.bf16.msra.mxu0 %v725
  %3591 = vmatprep.subr.bf16.mxu0 0
  %3592 = vmatpush2.bf16.msra.mxu0 0
  %3593 = vmatprep.subr.bf16.mxu0 0
  %3594 = vmatpush2.bf16.msra.mxu0 0
  %3595 = vmatprep.subr.bf16.mxu0 0
  %3596 = vmatpush2.bf16.msra.mxu0 0
  %3597 = vmatprep.subr.bf16.mxu0 0
  %3598 = vmatpush2.bf16.msra.mxu0 0
  %3599 = vmatprep.subr.bf16.mxu0 0
  %3600 = vmatpush2.bf16.msra.mxu0 0
  %3601 = vmatprep.subr.bf16.mxu0 0
  %3602 = vmatpush2.bf16.msra.mxu0 0
  %3603 = vmatprep.subr.bf16.mxu0 0
  %3604 = vmatpush2.bf16.msra.mxu0 0
  %3605 = vmatprep.subr.bf16.mxu0 0
  %3606 = vmatpush2.bf16.msra.mxu0 0
  %3607 = vmatprep.mubr.bf16.mxu0 0
  %3608 = vmatmul.mubr.bf16.gmra.mxu0 %v3337
  %v3609 = vpop.f32.mrf.mxu0
  %v3610 = vadd.f32 0.0, %v3609
  %v3611 = vpop.f32.mrf.mxu0
  %v3612 = vadd.f32 0.0, %v3611
  %v3613 = vpop.f32.mrf.mxu0
  %v3614 = vpop.f32.mrf.mxu0
  %3615 = vdwg.mxu0
  %v3616 = vadd.f32 %v3530, %v3569
  %v3617 = vadd.f32 %v3531, %v3571
  %v3618 = vadd.f32 %v3532, %v3610
  %v3619 = vadd.f32 %v3533, %v3612
  %v3620 = vmul.f32 %v3616, 0.5
  %v3621 = vmul.f32 %v3617, 0.5
  %v3622 = vmul.f32 %v3618, 0.5
  %v3623 = vtanh.pop %v3620
  %v3624 = vtanh.pop %v3621
  %v3625 = vtanh.pop %v3622
  %v3626 = vmul.f32 %v3623, 0.5
  %v3627 = vmul.f32 %v3624, 0.5
  %v3628 = vmul.f32 %v3625, 0.5
  %v3629 = vadd.f32 %v3626, 0.5
  %v3630 = vadd.f32 %v3627, 0.5
  %v3631 = vadd.f32 %v3628, 0.5
  %v3632 = vtanh.pop %v3619
  %v3633 = vmul.f32 %v3630, %v3334
  %v3634 = vmul.f32 %v3629, %v3632
  %v3635 = vadd.f32 %v3633, %v3634
  %v3636 = vtanh.pop %v3635
  %v3637 = vmul.f32 %v3631, %v3636
  %v3638 = vpack.c.bf16 %v3637, %v3637
  %v3639 = vpack.c.bf16 %v3524, %v3524
  %3640 = vmatprep.subr.bf16.mxu0 %v1017
  %3641 = vmatpush1.bf16.msra.mxu0 %v1016
  %3642 = vmatprep.subr.bf16.mxu0 %v1013
  %3643 = vmatpush1.bf16.msra.mxu0 %v1012
  %3644 = vmatprep.subr.bf16.mxu0 %v1009
  %3645 = vmatpush1.bf16.msra.mxu0 %v1008
  %3646 = vmatprep.subr.bf16.mxu0 %v1005
  %3647 = vmatpush1.bf16.msra.mxu0 %v1004
  %3648 = vmatprep.subr.bf16.mxu0 %v1001
  %3649 = vmatpush1.bf16.msra.mxu0 %v1000
  %3650 = vmatprep.subr.bf16.mxu0 %v997
  %3651 = vmatpush1.bf16.msra.mxu0 %v996
  %3652 = vmatprep.subr.bf16.mxu0 %v993
  %3653 = vmatpush1.bf16.msra.mxu0 %v992
  %3654 = vmatprep.subr.bf16.mxu0 %v989
  %3655 = vmatpush1.bf16.msra.mxu0 %v988
  %3656 = vmatprep.subr.bf16.mxu0 0
  %3657 = vmatpush2.bf16.msra.mxu0 0
  %3658 = vmatprep.subr.bf16.mxu0 0
  %3659 = vmatpush2.bf16.msra.mxu0 0
  %3660 = vmatprep.subr.bf16.mxu0 0
  %3661 = vmatpush2.bf16.msra.mxu0 0
  %3662 = vmatprep.subr.bf16.mxu0 0
  %3663 = vmatpush2.bf16.msra.mxu0 0
  %3664 = vmatprep.subr.bf16.mxu0 0
  %3665 = vmatpush2.bf16.msra.mxu0 0
  %3666 = vmatprep.subr.bf16.mxu0 0
  %3667 = vmatpush2.bf16.msra.mxu0 0
  %3668 = vmatprep.subr.bf16.mxu0 0
  %3669 = vmatpush2.bf16.msra.mxu0 0
  %3670 = vmatprep.subr.bf16.mxu0 0
  %3671 = vmatpush2.bf16.msra.mxu0 0
  %3672 = vmatprep.mubr.bf16.mxu0 0
  %3673 = vmatmul.mubr.bf16.gmra.mxu0 %v3639
  %v3674 = vpop.f32.mrf.mxu0
  %v3675 = vadd.f32 0.0, %v3674
  %v3676 = vpop.f32.mrf.mxu0
  %v3677 = vadd.f32 0.0, %v3676
  %v3678 = vpop.f32.mrf.mxu0
  %v3679 = vpop.f32.mrf.mxu0
  %3680 = vdwg.mxu0
  %3681 = vmatprep.subr.bf16.mxu0 %v1019
  %3682 = vmatpush1.bf16.msra.mxu0 %v1018
  %3683 = vmatprep.subr.bf16.mxu0 %v1015
  %3684 = vmatpush1.bf16.msra.mxu0 %v1014
  %3685 = vmatprep.subr.bf16.mxu0 %v1011
  %3686 = vmatpush1.bf16.msra.mxu0 %v1010
  %3687 = vmatprep.subr.bf16.mxu0 %v1007
  %3688 = vmatpush1.bf16.msra.mxu0 %v1006
  %3689 = vmatprep.subr.bf16.mxu0 %v1003
  %3690 = vmatpush1.bf16.msra.mxu0 %v1002
  %3691 = vmatprep.subr.bf16.mxu0 %v999
  %3692 = vmatpush1.bf16.msra.mxu0 %v998
  %3693 = vmatprep.subr.bf16.mxu0 %v995
  %3694 = vmatpush1.bf16.msra.mxu0 %v994
  %3695 = vmatprep.subr.bf16.mxu0 %v991
  %3696 = vmatpush1.bf16.msra.mxu0 %v990
  %3697 = vmatprep.subr.bf16.mxu0 0
  %3698 = vmatpush2.bf16.msra.mxu0 0
  %3699 = vmatprep.subr.bf16.mxu0 0
  %3700 = vmatpush2.bf16.msra.mxu0 0
  %3701 = vmatprep.subr.bf16.mxu0 0
  %3702 = vmatpush2.bf16.msra.mxu0 0
  %3703 = vmatprep.subr.bf16.mxu0 0
  %3704 = vmatpush2.bf16.msra.mxu0 0
  %3705 = vmatprep.subr.bf16.mxu0 0
  %3706 = vmatpush2.bf16.msra.mxu0 0
  %3707 = vmatprep.subr.bf16.mxu0 0
  %3708 = vmatpush2.bf16.msra.mxu0 0
  %3709 = vmatprep.subr.bf16.mxu0 0
  %3710 = vmatpush2.bf16.msra.mxu0 0
  %3711 = vmatprep.subr.bf16.mxu0 0
  %3712 = vmatpush2.bf16.msra.mxu0 0
  %3713 = vmatprep.mubr.bf16.mxu0 0
  %3714 = vmatmul.mubr.bf16.gmra.mxu0 %v3639
  %v3715 = vpop.f32.mrf.mxu0
  %v3716 = vadd.f32 0.0, %v3715
  %v3717 = vpop.f32.mrf.mxu0
  %v3718 = vadd.f32 0.0, %v3717
  %v3719 = vpop.f32.mrf.mxu0
  %v3720 = vpop.f32.mrf.mxu0
  %3721 = vdwg.mxu0
  %3722 = vmatprep.subr.bf16.mxu0 %v1259
  %3723 = vmatpush1.bf16.msra.mxu0 %v1258
  %3724 = vmatprep.subr.bf16.mxu0 %v1255
  %3725 = vmatpush1.bf16.msra.mxu0 %v1254
  %3726 = vmatprep.subr.bf16.mxu0 %v1251
  %3727 = vmatpush1.bf16.msra.mxu0 %v1250
  %3728 = vmatprep.subr.bf16.mxu0 %v1247
  %3729 = vmatpush1.bf16.msra.mxu0 %v1246
  %3730 = vmatprep.subr.bf16.mxu0 %v1243
  %3731 = vmatpush1.bf16.msra.mxu0 %v1242
  %3732 = vmatprep.subr.bf16.mxu0 %v1239
  %3733 = vmatpush1.bf16.msra.mxu0 %v1238
  %3734 = vmatprep.subr.bf16.mxu0 %v1235
  %3735 = vmatpush1.bf16.msra.mxu0 %v1234
  %3736 = vmatprep.subr.bf16.mxu0 %v1231
  %3737 = vmatpush1.bf16.msra.mxu0 %v1230
  %3738 = vmatprep.subr.bf16.mxu0 0
  %3739 = vmatpush2.bf16.msra.mxu0 0
  %3740 = vmatprep.subr.bf16.mxu0 0
  %3741 = vmatpush2.bf16.msra.mxu0 0
  %3742 = vmatprep.subr.bf16.mxu0 0
  %3743 = vmatpush2.bf16.msra.mxu0 0
  %3744 = vmatprep.subr.bf16.mxu0 0
  %3745 = vmatpush2.bf16.msra.mxu0 0
  %3746 = vmatprep.subr.bf16.mxu0 0
  %3747 = vmatpush2.bf16.msra.mxu0 0
  %3748 = vmatprep.subr.bf16.mxu0 0
  %3749 = vmatpush2.bf16.msra.mxu0 0
  %3750 = vmatprep.subr.bf16.mxu0 0
  %3751 = vmatpush2.bf16.msra.mxu0 0
  %3752 = vmatprep.subr.bf16.mxu0 0
  %3753 = vmatpush2.bf16.msra.mxu0 0
  %3754 = vmatprep.mubr.bf16.mxu0 0
  %3755 = vmatmul.mubr.bf16.gmra.mxu0 %v3638
  %v3756 = vpop.f32.mrf.mxu0
  %v3757 = vadd.f32 %v3675, %v3756
  %v3758 = vpop.f32.mrf.mxu0
  %v3759 = vadd.f32 %v3677, %v3758
  %v3760 = vpop.f32.mrf.mxu0
  %v3761 = vpop.f32.mrf.mxu0
  %3762 = vdwg.mxu0
  %3763 = vmatprep.subr.bf16.mxu0 %v1261
  %3764 = vmatpush1.bf16.msra.mxu0 %v1260
  %3765 = vmatprep.subr.bf16.mxu0 %v1257
  %3766 = vmatpush1.bf16.msra.mxu0 %v1256
  %3767 = vmatprep.subr.bf16.mxu0 %v1253
  %3768 = vmatpush1.bf16.msra.mxu0 %v1252
  %3769 = vmatprep.subr.bf16.mxu0 %v1249
  %3770 = vmatpush1.bf16.msra.mxu0 %v1248
  %3771 = vmatprep.subr.bf16.mxu0 %v1245
  %3772 = vmatpush1.bf16.msra.mxu0 %v1244
  %3773 = vmatprep.subr.bf16.mxu0 %v1241
  %3774 = vmatpush1.bf16.msra.mxu0 %v1240
  %3775 = vmatprep.subr.bf16.mxu0 %v1237
  %3776 = vmatpush1.bf16.msra.mxu0 %v1236
  %3777 = vmatprep.subr.bf16.mxu0 %v1233
  %3778 = vmatpush1.bf16.msra.mxu0 %v1232
  %3779 = vmatprep.subr.bf16.mxu0 0
  %3780 = vmatpush2.bf16.msra.mxu0 0
  %3781 = vmatprep.subr.bf16.mxu0 0
  %3782 = vmatpush2.bf16.msra.mxu0 0
  %3783 = vmatprep.subr.bf16.mxu0 0
  %3784 = vmatpush2.bf16.msra.mxu0 0
  %3785 = vmatprep.subr.bf16.mxu0 0
  %3786 = vmatpush2.bf16.msra.mxu0 0
  %3787 = vmatprep.subr.bf16.mxu0 0
  %3788 = vmatpush2.bf16.msra.mxu0 0
  %3789 = vmatprep.subr.bf16.mxu0 0
  %3790 = vmatpush2.bf16.msra.mxu0 0
  %3791 = vmatprep.subr.bf16.mxu0 0
  %3792 = vmatpush2.bf16.msra.mxu0 0
  %3793 = vmatprep.subr.bf16.mxu0 0
  %3794 = vmatpush2.bf16.msra.mxu0 0
  %3795 = vmatprep.mubr.bf16.mxu0 0
  %3796 = vmatmul.mubr.bf16.gmra.mxu0 %v3638
  %v3797 = vpop.f32.mrf.mxu0
  %v3798 = vadd.f32 %v3716, %v3797
  %v3799 = vpop.f32.mrf.mxu0
  %v3800 = vadd.f32 %v3718, %v3799
  %v3801 = vpop.f32.mrf.mxu0
  %v3802 = vpop.f32.mrf.mxu0
  %3803 = vdwg.mxu0
  %v3804 = vadd.f32 %v3757, %v1380
  %v3805 = vadd.f32 %v3759, %v1384
  %v3806 = vadd.f32 %v3798, %v1388
  %v3807 = vadd.f32 %v3800, %v1392
  %v3808 = vmul.f32 %v3804, 0.5
  %v3809 = vmul.f32 %v3805, 0.5
  %v3810 = vmul.f32 %v3806, 0.5
  %v3811 = vtanh.pop %v3808
  %v3812 = vtanh.pop %v3809
  %v3813 = vtanh.pop %v3810
  %v3814 = vmul.f32 %v3811, 0.5
  %v3815 = vmul.f32 %v3812, 0.5
  %v3816 = vmul.f32 %v3813, 0.5
  %v3817 = vadd.f32 %v3814, 0.5
  %v3818 = vadd.f32 %v3815, 0.5
  %v3819 = vadd.f32 %v3816, 0.5
  %v3820 = vtanh.pop %v3807
  %v3821 = vmul.f32 %v3818, %v3522
  %v3822 = vmul.f32 %v3817, %v3820
  %v3823 = vadd.f32 %v3821, %v3822
  %v3824 = vtanh.pop %v3823
  %v3825 = vmul.f32 %v3819, %v3824
  %s3826 = scalar_lea.vmem %s7, 64
  %3827 = vst [vmem:[%s3826] sm:$0xff] %v3825
  %s3828 = smul.u32 9, 4
  %s3829 = smul.addr %s3828, 8
  %s3830 = scalar_lea.vmem [#allocation2], %s3829
  %v3831 = vld [vmem:[%s3830] sm:$0xff]
  %v3832 = vld [vmem:[%s3830 + $0x8] sm:$0xff]
  %v3833 = vld [vmem:[%s3830 + $0x10] sm:$0xff]
  %v3834 = vld [vmem:[%s3830 + $0x18] sm:$0xff]
  %3835 = vmatprep.subr.bf16.mxu0 %v752
  %3836 = vmatpush1.bf16.msra.mxu0 %v751
  %3837 = vmatprep.subr.bf16.mxu0 %v748
  %3838 = vmatpush1.bf16.msra.mxu0 %v747
  %3839 = vmatprep.subr.bf16.mxu0 %v744
  %3840 = vmatpush1.bf16.msra.mxu0 %v743
  %3841 = vmatprep.subr.bf16.mxu0 %v740
  %3842 = vmatpush1.bf16.msra.mxu0 %v739
  %3843 = vmatprep.subr.bf16.mxu0 %v736
  %3844 = vmatpush1.bf16.msra.mxu0 %v735
  %3845 = vmatprep.subr.bf16.mxu0 %v732
  %3846 = vmatpush1.bf16.msra.mxu0 %v731
  %3847 = vmatprep.subr.bf16.mxu0 %v728
  %3848 = vmatpush1.bf16.msra.mxu0 %v727
  %3849 = vmatprep.subr.bf16.mxu0 %v724
  %3850 = vmatpush1.bf16.msra.mxu0 %v723
  %3851 = vmatprep.subr.bf16.mxu0 0
  %3852 = vmatpush2.bf16.msra.mxu0 0
  %3853 = vmatprep.subr.bf16.mxu0 0
  %3854 = vmatpush2.bf16.msra.mxu0 0
  %3855 = vmatprep.subr.bf16.mxu0 0
  %3856 = vmatpush2.bf16.msra.mxu0 0
  %3857 = vmatprep.subr.bf16.mxu0 0
  %3858 = vmatpush2.bf16.msra.mxu0 0
  %3859 = vmatprep.subr.bf16.mxu0 0
  %3860 = vmatpush2.bf16.msra.mxu0 0
  %3861 = vmatprep.subr.bf16.mxu0 0
  %3862 = vmatpush2.bf16.msra.mxu0 0
  %3863 = vmatprep.subr.bf16.mxu0 0
  %3864 = vmatpush2.bf16.msra.mxu0 0
  %3865 = vmatprep.subr.bf16.mxu0 0
  %3866 = vmatpush2.bf16.msra.mxu0 0
  %3867 = vmatprep.mubr.bf16.mxu0 0
  %3868 = vmatmul.mubr.bf16.gmra.mxu0 %v3638
  %v3869 = vpop.f32.mrf.mxu0
  %v3870 = vadd.f32 0.0, %v3869
  %v3871 = vpop.f32.mrf.mxu0
  %v3872 = vadd.f32 0.0, %v3871
  %v3873 = vpop.f32.mrf.mxu0
  %v3874 = vpop.f32.mrf.mxu0
  %3875 = vdwg.mxu0
  %3876 = vmatprep.subr.bf16.mxu0 %v754
  %3877 = vmatpush1.bf16.msra.mxu0 %v753
  %3878 = vmatprep.subr.bf16.mxu0 %v750
  %3879 = vmatpush1.bf16.msra.mxu0 %v749
  %3880 = vmatprep.subr.bf16.mxu0 %v746
  %3881 = vmatpush1.bf16.msra.mxu0 %v745
  %3882 = vmatprep.subr.bf16.mxu0 %v742
  %3883 = vmatpush1.bf16.msra.mxu0 %v741
  %3884 = vmatprep.subr.bf16.mxu0 %v738
  %3885 = vmatpush1.bf16.msra.mxu0 %v737
  %3886 = vmatprep.subr.bf16.mxu0 %v734
  %3887 = vmatpush1.bf16.msra.mxu0 %v733
  %3888 = vmatprep.subr.bf16.mxu0 %v730
  %3889 = vmatpush1.bf16.msra.mxu0 %v729
  %3890 = vmatprep.subr.bf16.mxu0 %v726
  %3891 = vmatpush1.bf16.msra.mxu0 %v725
  %3892 = vmatprep.subr.bf16.mxu0 0
  %3893 = vmatpush2.bf16.msra.mxu0 0
  %3894 = vmatprep.subr.bf16.mxu0 0
  %3895 = vmatpush2.bf16.msra.mxu0 0
  %3896 = vmatprep.subr.bf16.mxu0 0
  %3897 = vmatpush2.bf16.msra.mxu0 0
  %3898 = vmatprep.subr.bf16.mxu0 0
  %3899 = vmatpush2.bf16.msra.mxu0 0
  %3900 = vmatprep.subr.bf16.mxu0 0
  %3901 = vmatpush2.bf16.msra.mxu0 0
  %3902 = vmatprep.subr.bf16.mxu0 0
  %3903 = vmatpush2.bf16.msra.mxu0 0
  %3904 = vmatprep.subr.bf16.mxu0 0
  %3905 = vmatpush2.bf16.msra.mxu0 0
  %3906 = vmatprep.subr.bf16.mxu0 0
  %3907 = vmatpush2.bf16.msra.mxu0 0
  %3908 = vmatprep.mubr.bf16.mxu0 0
  %3909 = vmatmul.mubr.bf16.gmra.mxu0 %v3638
  %v3910 = vpop.f32.mrf.mxu0
  %v3911 = vadd.f32 0.0, %v3910
  %v3912 = vpop.f32.mrf.mxu0
  %v3913 = vadd.f32 0.0, %v3912
  %v3914 = vpop.f32.mrf.mxu0
  %v3915 = vpop.f32.mrf.mxu0
  %3916 = vdwg.mxu0
  %v3917 = vadd.f32 %v3831, %v3870
  %v3918 = vadd.f32 %v3832, %v3872
  %v3919 = vadd.f32 %v3833, %v3911
  %v3920 = vadd.f32 %v3834, %v3913
  %v3921 = vmul.f32 %v3917, 0.5
  %v3922 = vmul.f32 %v3918, 0.5
  %v3923 = vmul.f32 %v3919, 0.5
  %v3924 = vtanh.pop %v3921
  %v3925 = vtanh.pop %v3922
  %v3926 = vtanh.pop %v3923
  %v3927 = vmul.f32 %v3924, 0.5
  %v3928 = vmul.f32 %v3925, 0.5
  %v3929 = vmul.f32 %v3926, 0.5
  %v3930 = vadd.f32 %v3927, 0.5
  %v3931 = vadd.f32 %v3928, 0.5
  %v3932 = vadd.f32 %v3929, 0.5
  %v3933 = vtanh.pop %v3920
  %v3934 = vmul.f32 %v3931, %v3635
  %v3935 = vmul.f32 %v3930, %v3933
  %v3936 = vadd.f32 %v3934, %v3935
  %v3937 = vtanh.pop %v3936
  %v3938 = vmul.f32 %v3932, %v3937
  %v3939 = vpack.c.bf16 %v3938, %v3938
  %v3940 = vpack.c.bf16 %v3825, %v3825
  %3941 = vmatprep.subr.bf16.mxu0 %v1017
  %3942 = vmatpush1.bf16.msra.mxu0 %v1016
  %3943 = vmatprep.subr.bf16.mxu0 %v1013
  %3944 = vmatpush1.bf16.msra.mxu0 %v1012
  %3945 = vmatprep.subr.bf16.mxu0 %v1009
  %3946 = vmatpush1.bf16.msra.mxu0 %v1008
  %3947 = vmatprep.subr.bf16.mxu0 %v1005
  %3948 = vmatpush1.bf16.msra.mxu0 %v1004
  %3949 = vmatprep.subr.bf16.mxu0 %v1001
  %3950 = vmatpush1.bf16.msra.mxu0 %v1000
  %3951 = vmatprep.subr.bf16.mxu0 %v997
  %3952 = vmatpush1.bf16.msra.mxu0 %v996
  %3953 = vmatprep.subr.bf16.mxu0 %v993
  %3954 = vmatpush1.bf16.msra.mxu0 %v992
  %3955 = vmatprep.subr.bf16.mxu0 %v989
  %3956 = vmatpush1.bf16.msra.mxu0 %v988
  %3957 = vmatprep.subr.bf16.mxu0 0
  %3958 = vmatpush2.bf16.msra.mxu0 0
  %3959 = vmatprep.subr.bf16.mxu0 0
  %3960 = vmatpush2.bf16.msra.mxu0 0
  %3961 = vmatprep.subr.bf16.mxu0 0
  %3962 = vmatpush2.bf16.msra.mxu0 0
  %3963 = vmatprep.subr.bf16.mxu0 0
  %3964 = vmatpush2.bf16.msra.mxu0 0
  %3965 = vmatprep.subr.bf16.mxu0 0
  %3966 = vmatpush2.bf16.msra.mxu0 0
  %3967 = vmatprep.subr.bf16.mxu0 0
  %3968 = vmatpush2.bf16.msra.mxu0 0
  %3969 = vmatprep.subr.bf16.mxu0 0
  %3970 = vmatpush2.bf16.msra.mxu0 0
  %3971 = vmatprep.subr.bf16.mxu0 0
  %3972 = vmatpush2.bf16.msra.mxu0 0
  %3973 = vmatprep.mubr.bf16.mxu0 0
  %3974 = vmatmul.mubr.bf16.gmra.mxu0 %v3940
  %v3975 = vpop.f32.mrf.mxu0
  %v3976 = vadd.f32 0.0, %v3975
  %v3977 = vpop.f32.mrf.mxu0
  %v3978 = vadd.f32 0.0, %v3977
  %v3979 = vpop.f32.mrf.mxu0
  %v3980 = vpop.f32.mrf.mxu0
  %3981 = vdwg.mxu0
  %3982 = vmatprep.subr.bf16.mxu0 %v1019
  %3983 = vmatpush1.bf16.msra.mxu0 %v1018
  %3984 = vmatprep.subr.bf16.mxu0 %v1015
  %3985 = vmatpush1.bf16.msra.mxu0 %v1014
  %3986 = vmatprep.subr.bf16.mxu0 %v1011
  %3987 = vmatpush1.bf16.msra.mxu0 %v1010
  %3988 = vmatprep.subr.bf16.mxu0 %v1007
  %3989 = vmatpush1.bf16.msra.mxu0 %v1006
  %3990 = vmatprep.subr.bf16.mxu0 %v1003
  %3991 = vmatpush1.bf16.msra.mxu0 %v1002
  %3992 = vmatprep.subr.bf16.mxu0 %v999
  %3993 = vmatpush1.bf16.msra.mxu0 %v998
  %3994 = vmatprep.subr.bf16.mxu0 %v995
  %3995 = vmatpush1.bf16.msra.mxu0 %v994
  %3996 = vmatprep.subr.bf16.mxu0 %v991
  %3997 = vmatpush1.bf16.msra.mxu0 %v990
  %3998 = vmatprep.subr.bf16.mxu0 0
  %3999 = vmatpush2.bf16.msra.mxu0 0
  %4000 = vmatprep.subr.bf16.mxu0 0
  %4001 = vmatpush2.bf16.msra.mxu0 0
  %4002 = vmatprep.subr.bf16.mxu0 0
  %4003 = vmatpush2.bf16.msra.mxu0 0
  %4004 = vmatprep.subr.bf16.mxu0 0
  %4005 = vmatpush2.bf16.msra.mxu0 0
  %4006 = vmatprep.subr.bf16.mxu0 0
  %4007 = vmatpush2.bf16.msra.mxu0 0
  %4008 = vmatprep.subr.bf16.mxu0 0
  %4009 = vmatpush2.bf16.msra.mxu0 0
  %4010 = vmatprep.subr.bf16.mxu0 0
  %4011 = vmatpush2.bf16.msra.mxu0 0
  %4012 = vmatprep.subr.bf16.mxu0 0
  %4013 = vmatpush2.bf16.msra.mxu0 0
  %4014 = vmatprep.mubr.bf16.mxu0 0
  %4015 = vmatmul.mubr.bf16.gmra.mxu0 %v3940
  %v4016 = vpop.f32.mrf.mxu0
  %v4017 = vadd.f32 0.0, %v4016
  %v4018 = vpop.f32.mrf.mxu0
  %v4019 = vadd.f32 0.0, %v4018
  %v4020 = vpop.f32.mrf.mxu0
  %v4021 = vpop.f32.mrf.mxu0
  %4022 = vdwg.mxu0
  %4023 = vmatprep.subr.bf16.mxu0 %v1259
  %4024 = vmatpush1.bf16.msra.mxu0 %v1258
  %4025 = vmatprep.subr.bf16.mxu0 %v1255
  %4026 = vmatpush1.bf16.msra.mxu0 %v1254
  %4027 = vmatprep.subr.bf16.mxu0 %v1251
  %4028 = vmatpush1.bf16.msra.mxu0 %v1250
  %4029 = vmatprep.subr.bf16.mxu0 %v1247
  %4030 = vmatpush1.bf16.msra.mxu0 %v1246
  %4031 = vmatprep.subr.bf16.mxu0 %v1243
  %4032 = vmatpush1.bf16.msra.mxu0 %v1242
  %4033 = vmatprep.subr.bf16.mxu0 %v1239
  %4034 = vmatpush1.bf16.msra.mxu0 %v1238
  %4035 = vmatprep.subr.bf16.mxu0 %v1235
  %4036 = vmatpush1.bf16.msra.mxu0 %v1234
  %4037 = vmatprep.subr.bf16.mxu0 %v1231
  %4038 = vmatpush1.bf16.msra.mxu0 %v1230
  %4039 = vmatprep.subr.bf16.mxu0 0
  %4040 = vmatpush2.bf16.msra.mxu0 0
  %4041 = vmatprep.subr.bf16.mxu0 0
  %4042 = vmatpush2.bf16.msra.mxu0 0
  %4043 = vmatprep.subr.bf16.mxu0 0
  %4044 = vmatpush2.bf16.msra.mxu0 0
  %4045 = vmatprep.subr.bf16.mxu0 0
  %4046 = vmatpush2.bf16.msra.mxu0 0
  %4047 = vmatprep.subr.bf16.mxu0 0
  %4048 = vmatpush2.bf16.msra.mxu0 0
  %4049 = vmatprep.subr.bf16.mxu0 0
  %4050 = vmatpush2.bf16.msra.mxu0 0
  %4051 = vmatprep.subr.bf16.mxu0 0
  %4052 = vmatpush2.bf16.msra.mxu0 0
  %4053 = vmatprep.subr.bf16.mxu0 0
  %4054 = vmatpush2.bf16.msra.mxu0 0
  %4055 = vmatprep.mubr.bf16.mxu0 0
  %4056 = vmatmul.mubr.bf16.gmra.mxu0 %v3939
  %v4057 = vpop.f32.mrf.mxu0
  %v4058 = vadd.f32 %v3976, %v4057
  %v4059 = vpop.f32.mrf.mxu0
  %v4060 = vadd.f32 %v3978, %v4059
  %v4061 = vpop.f32.mrf.mxu0
  %v4062 = vpop.f32.mrf.mxu0
  %4063 = vdwg.mxu0
  %4064 = vmatprep.subr.bf16.mxu0 %v1261
  %4065 = vmatpush1.bf16.msra.mxu0 %v1260
  %4066 = vmatprep.subr.bf16.mxu0 %v1257
  %4067 = vmatpush1.bf16.msra.mxu0 %v1256
  %4068 = vmatprep.subr.bf16.mxu0 %v1253
  %4069 = vmatpush1.bf16.msra.mxu0 %v1252
  %4070 = vmatprep.subr.bf16.mxu0 %v1249
  %4071 = vmatpush1.bf16.msra.mxu0 %v1248
  %4072 = vmatprep.subr.bf16.mxu0 %v1245
  %4073 = vmatpush1.bf16.msra.mxu0 %v1244
  %4074 = vmatprep.subr.bf16.mxu0 %v1241
  %4075 = vmatpush1.bf16.msra.mxu0 %v1240
  %4076 = vmatprep.subr.bf16.mxu0 %v1237
  %4077 = vmatpush1.bf16.msra.mxu0 %v1236
  %4078 = vmatprep.subr.bf16.mxu0 %v1233
  %4079 = vmatpush1.bf16.msra.mxu0 %v1232
  %4080 = vmatprep.subr.bf16.mxu0 0
  %4081 = vmatpush2.bf16.msra.mxu0 0
  %4082 = vmatprep.subr.bf16.mxu0 0
  %4083 = vmatpush2.bf16.msra.mxu0 0
  %4084 = vmatprep.subr.bf16.mxu0 0
  %4085 = vmatpush2.bf16.msra.mxu0 0
  %4086 = vmatprep.subr.bf16.mxu0 0
  %4087 = vmatpush2.bf16.msra.mxu0 0
  %4088 = vmatprep.subr.bf16.mxu0 0
  %4089 = vmatpush2.bf16.msra.mxu0 0
  %4090 = vmatprep.subr.bf16.mxu0 0
  %4091 = vmatpush2.bf16.msra.mxu0 0
  %4092 = vmatprep.subr.bf16.mxu0 0
  %4093 = vmatpush2.bf16.msra.mxu0 0
  %4094 = vmatprep.subr.bf16.mxu0 0
  %4095 = vmatpush2.bf16.msra.mxu0 0
  %4096 = vmatprep.mubr.bf16.mxu0 0
  %4097 = vmatmul.mubr.bf16.gmra.mxu0 %v3939
  %v4098 = vpop.f32.mrf.mxu0
  %v4099 = vadd.f32 %v4017, %v4098
  %v4100 = vpop.f32.mrf.mxu0
  %v4101 = vadd.f32 %v4019, %v4100
  %v4102 = vpop.f32.mrf.mxu0
  %v4103 = vpop.f32.mrf.mxu0
  %4104 = vdwg.mxu0
  %v4105 = vadd.f32 %v4058, %v1380
  %v4106 = vadd.f32 %v4060, %v1384
  %v4107 = vadd.f32 %v4099, %v1388
  %v4108 = vadd.f32 %v4101, %v1392
  %v4109 = vmul.f32 %v4105, 0.5
  %v4110 = vmul.f32 %v4106, 0.5
  %v4111 = vmul.f32 %v4107, 0.5
  %v4112 = vtanh.pop %v4109
  %v4113 = vtanh.pop %v4110
  %v4114 = vtanh.pop %v4111
  %v4115 = vmul.f32 %v4112, 0.5
  %v4116 = vmul.f32 %v4113, 0.5
  %v4117 = vmul.f32 %v4114, 0.5
  %v4118 = vadd.f32 %v4115, 0.5
  %v4119 = vadd.f32 %v4116, 0.5
  %v4120 = vadd.f32 %v4117, 0.5
  %v4121 = vtanh.pop %v4108
  %v4122 = vmul.f32 %v4119, %v3823
  %v4123 = vmul.f32 %v4118, %v4121
  %v4124 = vadd.f32 %v4122, %v4123
  %v4125 = vtanh.pop %v4124
  %v4126 = vmul.f32 %v4120, %v4125
  %s4127 = scalar_lea.vmem %s7, 72
  %4128 = vst [vmem:[%s4127] sm:$0xff] %v4126
  %s4129 = smul.u32 10, 4
  %s4130 = smul.addr %s4129, 8
  %s4131 = scalar_lea.vmem [#allocation2], %s4130
  %v4132 = vld [vmem:[%s4131] sm:$0xff]
  %v4133 = vld [vmem:[%s4131 + $0x8] sm:$0xff]
  %v4134 = vld [vmem:[%s4131 + $0x10] sm:$0xff]
  %v4135 = vld [vmem:[%s4131 + $0x18] sm:$0xff]
  %4136 = vmatprep.subr.bf16.mxu0 %v752
  %4137 = vmatpush1.bf16.msra.mxu0 %v751
  %4138 = vmatprep.subr.bf16.mxu0 %v748
  %4139 = vmatpush1.bf16.msra.mxu0 %v747
  %4140 = vmatprep.subr.bf16.mxu0 %v744
  %4141 = vmatpush1.bf16.msra.mxu0 %v743
  %4142 = vmatprep.subr.bf16.mxu0 %v740
  %4143 = vmatpush1.bf16.msra.mxu0 %v739
  %4144 = vmatprep.subr.bf16.mxu0 %v736
  %4145 = vmatpush1.bf16.msra.mxu0 %v735
  %4146 = vmatprep.subr.bf16.mxu0 %v732
  %4147 = vmatpush1.bf16.msra.mxu0 %v731
  %4148 = vmatprep.subr.bf16.mxu0 %v728
  %4149 = vmatpush1.bf16.msra.mxu0 %v727
  %4150 = vmatprep.subr.bf16.mxu0 %v724
  %4151 = vmatpush1.bf16.msra.mxu0 %v723
  %4152 = vmatprep.subr.bf16.mxu0 0
  %4153 = vmatpush2.bf16.msra.mxu0 0
  %4154 = vmatprep.subr.bf16.mxu0 0
  %4155 = vmatpush2.bf16.msra.mxu0 0
  %4156 = vmatprep.subr.bf16.mxu0 0
  %4157 = vmatpush2.bf16.msra.mxu0 0
  %4158 = vmatprep.subr.bf16.mxu0 0
  %4159 = vmatpush2.bf16.msra.mxu0 0
  %4160 = vmatprep.subr.bf16.mxu0 0
  %4161 = vmatpush2.bf16.msra.mxu0 0
  %4162 = vmatprep.subr.bf16.mxu0 0
  %4163 = vmatpush2.bf16.msra.mxu0 0
  %4164 = vmatprep.subr.bf16.mxu0 0
  %4165 = vmatpush2.bf16.msra.mxu0 0
  %4166 = vmatprep.subr.bf16.mxu0 0
  %4167 = vmatpush2.bf16.msra.mxu0 0
  %4168 = vmatprep.mubr.bf16.mxu0 0
  %4169 = vmatmul.mubr.bf16.gmra.mxu0 %v3939
  %v4170 = vpop.f32.mrf.mxu0
  %v4171 = vadd.f32 0.0, %v4170
  %v4172 = vpop.f32.mrf.mxu0
  %v4173 = vadd.f32 0.0, %v4172
  %v4174 = vpop.f32.mrf.mxu0
  %v4175 = vpop.f32.mrf.mxu0
  %4176 = vdwg.mxu0
  %4177 = vmatprep.subr.bf16.mxu0 %v754
  %4178 = vmatpush1.bf16.msra.mxu0 %v753
  %4179 = vmatprep.subr.bf16.mxu0 %v750
  %4180 = vmatpush1.bf16.msra.mxu0 %v749
  %4181 = vmatprep.subr.bf16.mxu0 %v746
  %4182 = vmatpush1.bf16.msra.mxu0 %v745
  %4183 = vmatprep.subr.bf16.mxu0 %v742
  %4184 = vmatpush1.bf16.msra.mxu0 %v741
  %4185 = vmatprep.subr.bf16.mxu0 %v738
  %4186 = vmatpush1.bf16.msra.mxu0 %v737
  %4187 = vmatprep.subr.bf16.mxu0 %v734
  %4188 = vmatpush1.bf16.msra.mxu0 %v733
  %4189 = vmatprep.subr.bf16.mxu0 %v730
  %4190 = vmatpush1.bf16.msra.mxu0 %v729
  %4191 = vmatprep.subr.bf16.mxu0 %v726
  %4192 = vmatpush1.bf16.msra.mxu0 %v725
  %4193 = vmatprep.subr.bf16.mxu0 0
  %4194 = vmatpush2.bf16.msra.mxu0 0
  %4195 = vmatprep.subr.bf16.mxu0 0
  %4196 = vmatpush2.bf16.msra.mxu0 0
  %4197 = vmatprep.subr.bf16.mxu0 0
  %4198 = vmatpush2.bf16.msra.mxu0 0
  %4199 = vmatprep.subr.bf16.mxu0 0
  %4200 = vmatpush2.bf16.msra.mxu0 0
  %4201 = vmatprep.subr.bf16.mxu0 0
  %4202 = vmatpush2.bf16.msra.mxu0 0
  %4203 = vmatprep.subr.bf16.mxu0 0
  %4204 = vmatpush2.bf16.msra.mxu0 0
  %4205 = vmatprep.subr.bf16.mxu0 0
  %4206 = vmatpush2.bf16.msra.mxu0 0
  %4207 = vmatprep.subr.bf16.mxu0 0
  %4208 = vmatpush2.bf16.msra.mxu0 0
  %4209 = vmatprep.mubr.bf16.mxu0 0
  %4210 = vmatmul.mubr.bf16.gmra.mxu0 %v3939
  %v4211 = vpop.f32.mrf.mxu0
  %v4212 = vadd.f32 0.0, %v4211
  %v4213 = vpop.f32.mrf.mxu0
  %v4214 = vadd.f32 0.0, %v4213
  %v4215 = vpop.f32.mrf.mxu0
  %v4216 = vpop.f32.mrf.mxu0
  %4217 = vdwg.mxu0
  %v4218 = vadd.f32 %v4132, %v4171
  %v4219 = vadd.f32 %v4133, %v4173
  %v4220 = vadd.f32 %v4134, %v4212
  %v4221 = vadd.f32 %v4135, %v4214
  %v4222 = vmul.f32 %v4218, 0.5
  %v4223 = vmul.f32 %v4219, 0.5
  %v4224 = vmul.f32 %v4220, 0.5
  %v4225 = vtanh.pop %v4222
  %v4226 = vtanh.pop %v4223
  %v4227 = vtanh.pop %v4224
  %v4228 = vmul.f32 %v4225, 0.5
  %v4229 = vmul.f32 %v4226, 0.5
  %v4230 = vmul.f32 %v4227, 0.5
  %v4231 = vadd.f32 %v4228, 0.5
  %v4232 = vadd.f32 %v4229, 0.5
  %v4233 = vadd.f32 %v4230, 0.5
  %v4234 = vtanh.pop %v4221
  %v4235 = vmul.f32 %v4232, %v3936
  %v4236 = vmul.f32 %v4231, %v4234
  %v4237 = vadd.f32 %v4235, %v4236
  %v4238 = vtanh.pop %v4237
  %v4239 = vmul.f32 %v4233, %v4238
  %v4240 = vpack.c.bf16 %v4239, %v4239
  %v4241 = vpack.c.bf16 %v4126, %v4126
  %4242 = vmatprep.subr.bf16.mxu0 %v1017
  %4243 = vmatpush1.bf16.msra.mxu0 %v1016
  %4244 = vmatprep.subr.bf16.mxu0 %v1013
  %4245 = vmatpush1.bf16.msra.mxu0 %v1012
  %4246 = vmatprep.subr.bf16.mxu0 %v1009
  %4247 = vmatpush1.bf16.msra.mxu0 %v1008
  %4248 = vmatprep.subr.bf16.mxu0 %v1005
  %4249 = vmatpush1.bf16.msra.mxu0 %v1004
  %4250 = vmatprep.subr.bf16.mxu0 %v1001
  %4251 = vmatpush1.bf16.msra.mxu0 %v1000
  %4252 = vmatprep.subr.bf16.mxu0 %v997
  %4253 = vmatpush1.bf16.msra.mxu0 %v996
  %4254 = vmatprep.subr.bf16.mxu0 %v993
  %4255 = vmatpush1.bf16.msra.mxu0 %v992
  %4256 = vmatprep.subr.bf16.mxu0 %v989
  %4257 = vmatpush1.bf16.msra.mxu0 %v988
  %4258 = vmatprep.subr.bf16.mxu0 0
  %4259 = vmatpush2.bf16.msra.mxu0 0
  %4260 = vmatprep.subr.bf16.mxu0 0
  %4261 = vmatpush2.bf16.msra.mxu0 0
  %4262 = vmatprep.subr.bf16.mxu0 0
  %4263 = vmatpush2.bf16.msra.mxu0 0
  %4264 = vmatprep.subr.bf16.mxu0 0
  %4265 = vmatpush2.bf16.msra.mxu0 0
  %4266 = vmatprep.subr.bf16.mxu0 0
  %4267 = vmatpush2.bf16.msra.mxu0 0
  %4268 = vmatprep.subr.bf16.mxu0 0
  %4269 = vmatpush2.bf16.msra.mxu0 0
  %4270 = vmatprep.subr.bf16.mxu0 0
  %4271 = vmatpush2.bf16.msra.mxu0 0
  %4272 = vmatprep.subr.bf16.mxu0 0
  %4273 = vmatpush2.bf16.msra.mxu0 0
  %4274 = vmatprep.mubr.bf16.mxu0 0
  %4275 = vmatmul.mubr.bf16.gmra.mxu0 %v4241
  %v4276 = vpop.f32.mrf.mxu0
  %v4277 = vadd.f32 0.0, %v4276
  %v4278 = vpop.f32.mrf.mxu0
  %v4279 = vadd.f32 0.0, %v4278
  %v4280 = vpop.f32.mrf.mxu0
  %v4281 = vpop.f32.mrf.mxu0
  %4282 = vdwg.mxu0
  %4283 = vmatprep.subr.bf16.mxu0 %v1019
  %4284 = vmatpush1.bf16.msra.mxu0 %v1018
  %4285 = vmatprep.subr.bf16.mxu0 %v1015
  %4286 = vmatpush1.bf16.msra.mxu0 %v1014
  %4287 = vmatprep.subr.bf16.mxu0 %v1011
  %4288 = vmatpush1.bf16.msra.mxu0 %v1010
  %4289 = vmatprep.subr.bf16.mxu0 %v1007
  %4290 = vmatpush1.bf16.msra.mxu0 %v1006
  %4291 = vmatprep.subr.bf16.mxu0 %v1003
  %4292 = vmatpush1.bf16.msra.mxu0 %v1002
  %4293 = vmatprep.subr.bf16.mxu0 %v999
  %4294 = vmatpush1.bf16.msra.mxu0 %v998
  %4295 = vmatprep.subr.bf16.mxu0 %v995
  %4296 = vmatpush1.bf16.msra.mxu0 %v994
  %4297 = vmatprep.subr.bf16.mxu0 %v991
  %4298 = vmatpush1.bf16.msra.mxu0 %v990
  %4299 = vmatprep.subr.bf16.mxu0 0
  %4300 = vmatpush2.bf16.msra.mxu0 0
  %4301 = vmatprep.subr.bf16.mxu0 0
  %4302 = vmatpush2.bf16.msra.mxu0 0
  %4303 = vmatprep.subr.bf16.mxu0 0
  %4304 = vmatpush2.bf16.msra.mxu0 0
  %4305 = vmatprep.subr.bf16.mxu0 0
  %4306 = vmatpush2.bf16.msra.mxu0 0
  %4307 = vmatprep.subr.bf16.mxu0 0
  %4308 = vmatpush2.bf16.msra.mxu0 0
  %4309 = vmatprep.subr.bf16.mxu0 0
  %4310 = vmatpush2.bf16.msra.mxu0 0
  %4311 = vmatprep.subr.bf16.mxu0 0
  %4312 = vmatpush2.bf16.msra.mxu0 0
  %4313 = vmatprep.subr.bf16.mxu0 0
  %4314 = vmatpush2.bf16.msra.mxu0 0
  %4315 = vmatprep.mubr.bf16.mxu0 0
  %4316 = vmatmul.mubr.bf16.gmra.mxu0 %v4241
  %v4317 = vpop.f32.mrf.mxu0
  %v4318 = vadd.f32 0.0, %v4317
  %v4319 = vpop.f32.mrf.mxu0
  %v4320 = vadd.f32 0.0, %v4319
  %v4321 = vpop.f32.mrf.mxu0
  %v4322 = vpop.f32.mrf.mxu0
  %4323 = vdwg.mxu0
  %4324 = vmatprep.subr.bf16.mxu0 %v1259
  %4325 = vmatpush1.bf16.msra.mxu0 %v1258
  %4326 = vmatprep.subr.bf16.mxu0 %v1255
  %4327 = vmatpush1.bf16.msra.mxu0 %v1254
  %4328 = vmatprep.subr.bf16.mxu0 %v1251
  %4329 = vmatpush1.bf16.msra.mxu0 %v1250
  %4330 = vmatprep.subr.bf16.mxu0 %v1247
  %4331 = vmatpush1.bf16.msra.mxu0 %v1246
  %4332 = vmatprep.subr.bf16.mxu0 %v1243
  %4333 = vmatpush1.bf16.msra.mxu0 %v1242
  %4334 = vmatprep.subr.bf16.mxu0 %v1239
  %4335 = vmatpush1.bf16.msra.mxu0 %v1238
  %4336 = vmatprep.subr.bf16.mxu0 %v1235
  %4337 = vmatpush1.bf16.msra.mxu0 %v1234
  %4338 = vmatprep.subr.bf16.mxu0 %v1231
  %4339 = vmatpush1.bf16.msra.mxu0 %v1230
  %4340 = vmatprep.subr.bf16.mxu0 0
  %4341 = vmatpush2.bf16.msra.mxu0 0
  %4342 = vmatprep.subr.bf16.mxu0 0
  %4343 = vmatpush2.bf16.msra.mxu0 0
  %4344 = vmatprep.subr.bf16.mxu0 0
  %4345 = vmatpush2.bf16.msra.mxu0 0
  %4346 = vmatprep.subr.bf16.mxu0 0
  %4347 = vmatpush2.bf16.msra.mxu0 0
  %4348 = vmatprep.subr.bf16.mxu0 0
  %4349 = vmatpush2.bf16.msra.mxu0 0
  %4350 = vmatprep.subr.bf16.mxu0 0
  %4351 = vmatpush2.bf16.msra.mxu0 0
  %4352 = vmatprep.subr.bf16.mxu0 0
  %4353 = vmatpush2.bf16.msra.mxu0 0
  %4354 = vmatprep.subr.bf16.mxu0 0
  %4355 = vmatpush2.bf16.msra.mxu0 0
  %4356 = vmatprep.mubr.bf16.mxu0 0
  %4357 = vmatmul.mubr.bf16.gmra.mxu0 %v4240
  %v4358 = vpop.f32.mrf.mxu0
  %v4359 = vadd.f32 %v4277, %v4358
  %v4360 = vpop.f32.mrf.mxu0
  %v4361 = vadd.f32 %v4279, %v4360
  %v4362 = vpop.f32.mrf.mxu0
  %v4363 = vpop.f32.mrf.mxu0
  %4364 = vdwg.mxu0
  %4365 = vmatprep.subr.bf16.mxu0 %v1261
  %4366 = vmatpush1.bf16.msra.mxu0 %v1260
  %4367 = vmatprep.subr.bf16.mxu0 %v1257
  %4368 = vmatpush1.bf16.msra.mxu0 %v1256
  %4369 = vmatprep.subr.bf16.mxu0 %v1253
  %4370 = vmatpush1.bf16.msra.mxu0 %v1252
  %4371 = vmatprep.subr.bf16.mxu0 %v1249
  %4372 = vmatpush1.bf16.msra.mxu0 %v1248
  %4373 = vmatprep.subr.bf16.mxu0 %v1245
  %4374 = vmatpush1.bf16.msra.mxu0 %v1244
  %4375 = vmatprep.subr.bf16.mxu0 %v1241
  %4376 = vmatpush1.bf16.msra.mxu0 %v1240
  %4377 = vmatprep.subr.bf16.mxu0 %v1237
  %4378 = vmatpush1.bf16.msra.mxu0 %v1236
  %4379 = vmatprep.subr.bf16.mxu0 %v1233
  %4380 = vmatpush1.bf16.msra.mxu0 %v1232
  %4381 = vmatprep.subr.bf16.mxu0 0
  %4382 = vmatpush2.bf16.msra.mxu0 0
  %4383 = vmatprep.subr.bf16.mxu0 0
  %4384 = vmatpush2.bf16.msra.mxu0 0
  %4385 = vmatprep.subr.bf16.mxu0 0
  %4386 = vmatpush2.bf16.msra.mxu0 0
  %4387 = vmatprep.subr.bf16.mxu0 0
  %4388 = vmatpush2.bf16.msra.mxu0 0
  %4389 = vmatprep.subr.bf16.mxu0 0
  %4390 = vmatpush2.bf16.msra.mxu0 0
  %4391 = vmatprep.subr.bf16.mxu0 0
  %4392 = vmatpush2.bf16.msra.mxu0 0
  %4393 = vmatprep.subr.bf16.mxu0 0
  %4394 = vmatpush2.bf16.msra.mxu0 0
  %4395 = vmatprep.subr.bf16.mxu0 0
  %4396 = vmatpush2.bf16.msra.mxu0 0
  %4397 = vmatprep.mubr.bf16.mxu0 0
  %4398 = vmatmul.mubr.bf16.gmra.mxu0 %v4240
  %v4399 = vpop.f32.mrf.mxu0
  %v4400 = vadd.f32 %v4318, %v4399
  %v4401 = vpop.f32.mrf.mxu0
  %v4402 = vadd.f32 %v4320, %v4401
  %v4403 = vpop.f32.mrf.mxu0
  %v4404 = vpop.f32.mrf.mxu0
  %4405 = vdwg.mxu0
  %v4406 = vadd.f32 %v4359, %v1380
  %v4407 = vadd.f32 %v4361, %v1384
  %v4408 = vadd.f32 %v4400, %v1388
  %v4409 = vadd.f32 %v4402, %v1392
  %v4410 = vmul.f32 %v4406, 0.5
  %v4411 = vmul.f32 %v4407, 0.5
  %v4412 = vmul.f32 %v4408, 0.5
  %v4413 = vtanh.pop %v4410
  %v4414 = vtanh.pop %v4411
  %v4415 = vtanh.pop %v4412
  %v4416 = vmul.f32 %v4413, 0.5
  %v4417 = vmul.f32 %v4414, 0.5
  %v4418 = vmul.f32 %v4415, 0.5
  %v4419 = vadd.f32 %v4416, 0.5
  %v4420 = vadd.f32 %v4417, 0.5
  %v4421 = vadd.f32 %v4418, 0.5
  %v4422 = vtanh.pop %v4409
  %v4423 = vmul.f32 %v4420, %v4124
  %v4424 = vmul.f32 %v4419, %v4422
  %v4425 = vadd.f32 %v4423, %v4424
  %v4426 = vtanh.pop %v4425
  %v4427 = vmul.f32 %v4421, %v4426
  %s4428 = scalar_lea.vmem %s7, 80
  %4429 = vst [vmem:[%s4428] sm:$0xff] %v4427
  %s4430 = smul.u32 11, 4
  %s4431 = smul.addr %s4430, 8
  %s4432 = scalar_lea.vmem [#allocation2], %s4431
  %v4433 = vld [vmem:[%s4432] sm:$0xff]
  %v4434 = vld [vmem:[%s4432 + $0x8] sm:$0xff]
  %v4435 = vld [vmem:[%s4432 + $0x10] sm:$0xff]
  %v4436 = vld [vmem:[%s4432 + $0x18] sm:$0xff]
  %4437 = vmatprep.subr.bf16.mxu0 %v752
  %4438 = vmatpush1.bf16.msra.mxu0 %v751
  %4439 = vmatprep.subr.bf16.mxu0 %v748
  %4440 = vmatpush1.bf16.msra.mxu0 %v747
  %4441 = vmatprep.subr.bf16.mxu0 %v744
  %4442 = vmatpush1.bf16.msra.mxu0 %v743
  %4443 = vmatprep.subr.bf16.mxu0 %v740
  %4444 = vmatpush1.bf16.msra.mxu0 %v739
  %4445 = vmatprep.subr.bf16.mxu0 %v736
  %4446 = vmatpush1.bf16.msra.mxu0 %v735
  %4447 = vmatprep.subr.bf16.mxu0 %v732
  %4448 = vmatpush1.bf16.msra.mxu0 %v731
  %4449 = vmatprep.subr.bf16.mxu0 %v728
  %4450 = vmatpush1.bf16.msra.mxu0 %v727
  %4451 = vmatprep.subr.bf16.mxu0 %v724
  %4452 = vmatpush1.bf16.msra.mxu0 %v723
  %4453 = vmatprep.subr.bf16.mxu0 0
  %4454 = vmatpush2.bf16.msra.mxu0 0
  %4455 = vmatprep.subr.bf16.mxu0 0
  %4456 = vmatpush2.bf16.msra.mxu0 0
  %4457 = vmatprep.subr.bf16.mxu0 0
  %4458 = vmatpush2.bf16.msra.mxu0 0
  %4459 = vmatprep.subr.bf16.mxu0 0
  %4460 = vmatpush2.bf16.msra.mxu0 0
  %4461 = vmatprep.subr.bf16.mxu0 0
  %4462 = vmatpush2.bf16.msra.mxu0 0
  %4463 = vmatprep.subr.bf16.mxu0 0
  %4464 = vmatpush2.bf16.msra.mxu0 0
  %4465 = vmatprep.subr.bf16.mxu0 0
  %4466 = vmatpush2.bf16.msra.mxu0 0
  %4467 = vmatprep.subr.bf16.mxu0 0
  %4468 = vmatpush2.bf16.msra.mxu0 0
  %4469 = vmatprep.mubr.bf16.mxu0 0
  %4470 = vmatmul.mubr.bf16.gmra.mxu0 %v4240
  %v4471 = vpop.f32.mrf.mxu0
  %v4472 = vadd.f32 0.0, %v4471
  %v4473 = vpop.f32.mrf.mxu0
  %v4474 = vadd.f32 0.0, %v4473
  %v4475 = vpop.f32.mrf.mxu0
  %v4476 = vpop.f32.mrf.mxu0
  %4477 = vdwg.mxu0
  %4478 = vmatprep.subr.bf16.mxu0 %v754
  %4479 = vmatpush1.bf16.msra.mxu0 %v753
  %4480 = vmatprep.subr.bf16.mxu0 %v750
  %4481 = vmatpush1.bf16.msra.mxu0 %v749
  %4482 = vmatprep.subr.bf16.mxu0 %v746
  %4483 = vmatpush1.bf16.msra.mxu0 %v745
  %4484 = vmatprep.subr.bf16.mxu0 %v742
  %4485 = vmatpush1.bf16.msra.mxu0 %v741
  %4486 = vmatprep.subr.bf16.mxu0 %v738
  %4487 = vmatpush1.bf16.msra.mxu0 %v737
  %4488 = vmatprep.subr.bf16.mxu0 %v734
  %4489 = vmatpush1.bf16.msra.mxu0 %v733
  %4490 = vmatprep.subr.bf16.mxu0 %v730
  %4491 = vmatpush1.bf16.msra.mxu0 %v729
  %4492 = vmatprep.subr.bf16.mxu0 %v726
  %4493 = vmatpush1.bf16.msra.mxu0 %v725
  %4494 = vmatprep.subr.bf16.mxu0 0
  %4495 = vmatpush2.bf16.msra.mxu0 0
  %4496 = vmatprep.subr.bf16.mxu0 0
  %4497 = vmatpush2.bf16.msra.mxu0 0
  %4498 = vmatprep.subr.bf16.mxu0 0
  %4499 = vmatpush2.bf16.msra.mxu0 0
  %4500 = vmatprep.subr.bf16.mxu0 0
  %4501 = vmatpush2.bf16.msra.mxu0 0
  %4502 = vmatprep.subr.bf16.mxu0 0
  %4503 = vmatpush2.bf16.msra.mxu0 0
  %4504 = vmatprep.subr.bf16.mxu0 0
  %4505 = vmatpush2.bf16.msra.mxu0 0
  %4506 = vmatprep.subr.bf16.mxu0 0
  %4507 = vmatpush2.bf16.msra.mxu0 0
  %4508 = vmatprep.subr.bf16.mxu0 0
  %4509 = vmatpush2.bf16.msra.mxu0 0
  %4510 = vmatprep.mubr.bf16.mxu0 0
  %4511 = vmatmul.mubr.bf16.gmra.mxu0 %v4240
  %v4512 = vpop.f32.mrf.mxu0
  %v4513 = vadd.f32 0.0, %v4512
  %v4514 = vpop.f32.mrf.mxu0
  %v4515 = vadd.f32 0.0, %v4514
  %v4516 = vpop.f32.mrf.mxu0
  %v4517 = vpop.f32.mrf.mxu0
  %4518 = vdwg.mxu0
  %v4519 = vadd.f32 %v4433, %v4472
  %v4520 = vadd.f32 %v4434, %v4474
  %v4521 = vadd.f32 %v4435, %v4513
  %v4522 = vadd.f32 %v4436, %v4515
  %v4523 = vmul.f32 %v4519, 0.5
  %v4524 = vmul.f32 %v4520, 0.5
  %v4525 = vmul.f32 %v4521, 0.5
  %v4526 = vtanh.pop %v4523
  %v4527 = vtanh.pop %v4524
  %v4528 = vtanh.pop %v4525
  %v4529 = vmul.f32 %v4526, 0.5
  %v4530 = vmul.f32 %v4527, 0.5
  %v4531 = vmul.f32 %v4528, 0.5
  %v4532 = vadd.f32 %v4529, 0.5
  %v4533 = vadd.f32 %v4530, 0.5
  %v4534 = vadd.f32 %v4531, 0.5
  %v4535 = vtanh.pop %v4522
  %v4536 = vmul.f32 %v4533, %v4237
  %v4537 = vmul.f32 %v4532, %v4535
  %v4538 = vadd.f32 %v4536, %v4537
  %v4539 = vtanh.pop %v4538
  %v4540 = vmul.f32 %v4534, %v4539
  %v4541 = vpack.c.bf16 %v4540, %v4540
  %v4542 = vpack.c.bf16 %v4427, %v4427
  %4543 = vmatprep.subr.bf16.mxu0 %v1017
  %4544 = vmatpush1.bf16.msra.mxu0 %v1016
  %4545 = vmatprep.subr.bf16.mxu0 %v1013
  %4546 = vmatpush1.bf16.msra.mxu0 %v1012
  %4547 = vmatprep.subr.bf16.mxu0 %v1009
  %4548 = vmatpush1.bf16.msra.mxu0 %v1008
  %4549 = vmatprep.subr.bf16.mxu0 %v1005
  %4550 = vmatpush1.bf16.msra.mxu0 %v1004
  %4551 = vmatprep.subr.bf16.mxu0 %v1001
  %4552 = vmatpush1.bf16.msra.mxu0 %v1000
  %4553 = vmatprep.subr.bf16.mxu0 %v997
  %4554 = vmatpush1.bf16.msra.mxu0 %v996
  %4555 = vmatprep.subr.bf16.mxu0 %v993
  %4556 = vmatpush1.bf16.msra.mxu0 %v992
  %4557 = vmatprep.subr.bf16.mxu0 %v989
  %4558 = vmatpush1.bf16.msra.mxu0 %v988
  %4559 = vmatprep.subr.bf16.mxu0 0
  %4560 = vmatpush2.bf16.msra.mxu0 0
  %4561 = vmatprep.subr.bf16.mxu0 0
  %4562 = vmatpush2.bf16.msra.mxu0 0
  %4563 = vmatprep.subr.bf16.mxu0 0
  %4564 = vmatpush2.bf16.msra.mxu0 0
  %4565 = vmatprep.subr.bf16.mxu0 0
  %4566 = vmatpush2.bf16.msra.mxu0 0
  %4567 = vmatprep.subr.bf16.mxu0 0
  %4568 = vmatpush2.bf16.msra.mxu0 0
  %4569 = vmatprep.subr.bf16.mxu0 0
  %4570 = vmatpush2.bf16.msra.mxu0 0
  %4571 = vmatprep.subr.bf16.mxu0 0
  %4572 = vmatpush2.bf16.msra.mxu0 0
  %4573 = vmatprep.subr.bf16.mxu0 0
  %4574 = vmatpush2.bf16.msra.mxu0 0
  %4575 = vmatprep.mubr.bf16.mxu0 0
  %4576 = vmatmul.mubr.bf16.gmra.mxu0 %v4542
  %v4577 = vpop.f32.mrf.mxu0
  %v4578 = vadd.f32 0.0, %v4577
  %v4579 = vpop.f32.mrf.mxu0
  %v4580 = vadd.f32 0.0, %v4579
  %v4581 = vpop.f32.mrf.mxu0
  %v4582 = vpop.f32.mrf.mxu0
  %4583 = vdwg.mxu0
  %4584 = vmatprep.subr.bf16.mxu0 %v1019
  %4585 = vmatpush1.bf16.msra.mxu0 %v1018
  %4586 = vmatprep.subr.bf16.mxu0 %v1015
  %4587 = vmatpush1.bf16.msra.mxu0 %v1014
  %4588 = vmatprep.subr.bf16.mxu0 %v1011
  %4589 = vmatpush1.bf16.msra.mxu0 %v1010
  %4590 = vmatprep.subr.bf16.mxu0 %v1007
  %4591 = vmatpush1.bf16.msra.mxu0 %v1006
  %4592 = vmatprep.subr.bf16.mxu0 %v1003
  %4593 = vmatpush1.bf16.msra.mxu0 %v1002
  %4594 = vmatprep.subr.bf16.mxu0 %v999
  %4595 = vmatpush1.bf16.msra.mxu0 %v998
  %4596 = vmatprep.subr.bf16.mxu0 %v995
  %4597 = vmatpush1.bf16.msra.mxu0 %v994
  %4598 = vmatprep.subr.bf16.mxu0 %v991
  %4599 = vmatpush1.bf16.msra.mxu0 %v990
  %4600 = vmatprep.subr.bf16.mxu0 0
  %4601 = vmatpush2.bf16.msra.mxu0 0
  %4602 = vmatprep.subr.bf16.mxu0 0
  %4603 = vmatpush2.bf16.msra.mxu0 0
  %4604 = vmatprep.subr.bf16.mxu0 0
  %4605 = vmatpush2.bf16.msra.mxu0 0
  %4606 = vmatprep.subr.bf16.mxu0 0
  %4607 = vmatpush2.bf16.msra.mxu0 0
  %4608 = vmatprep.subr.bf16.mxu0 0
  %4609 = vmatpush2.bf16.msra.mxu0 0
  %4610 = vmatprep.subr.bf16.mxu0 0
  %4611 = vmatpush2.bf16.msra.mxu0 0
  %4612 = vmatprep.subr.bf16.mxu0 0
  %4613 = vmatpush2.bf16.msra.mxu0 0
  %4614 = vmatprep.subr.bf16.mxu0 0
  %4615 = vmatpush2.bf16.msra.mxu0 0
  %4616 = vmatprep.mubr.bf16.mxu0 0
  %4617 = vmatmul.mubr.bf16.gmra.mxu0 %v4542
  %v4618 = vpop.f32.mrf.mxu0
  %v4619 = vadd.f32 0.0, %v4618
  %v4620 = vpop.f32.mrf.mxu0
  %v4621 = vadd.f32 0.0, %v4620
  %v4622 = vpop.f32.mrf.mxu0
  %v4623 = vpop.f32.mrf.mxu0
  %4624 = vdwg.mxu0
  %4625 = vmatprep.subr.bf16.mxu0 %v1259
  %4626 = vmatpush1.bf16.msra.mxu0 %v1258
  %4627 = vmatprep.subr.bf16.mxu0 %v1255
  %4628 = vmatpush1.bf16.msra.mxu0 %v1254
  %4629 = vmatprep.subr.bf16.mxu0 %v1251
  %4630 = vmatpush1.bf16.msra.mxu0 %v1250
  %4631 = vmatprep.subr.bf16.mxu0 %v1247
  %4632 = vmatpush1.bf16.msra.mxu0 %v1246
  %4633 = vmatprep.subr.bf16.mxu0 %v1243
  %4634 = vmatpush1.bf16.msra.mxu0 %v1242
  %4635 = vmatprep.subr.bf16.mxu0 %v1239
  %4636 = vmatpush1.bf16.msra.mxu0 %v1238
  %4637 = vmatprep.subr.bf16.mxu0 %v1235
  %4638 = vmatpush1.bf16.msra.mxu0 %v1234
  %4639 = vmatprep.subr.bf16.mxu0 %v1231
  %4640 = vmatpush1.bf16.msra.mxu0 %v1230
  %4641 = vmatprep.subr.bf16.mxu0 0
  %4642 = vmatpush2.bf16.msra.mxu0 0
  %4643 = vmatprep.subr.bf16.mxu0 0
  %4644 = vmatpush2.bf16.msra.mxu0 0
  %4645 = vmatprep.subr.bf16.mxu0 0
  %4646 = vmatpush2.bf16.msra.mxu0 0
  %4647 = vmatprep.subr.bf16.mxu0 0
  %4648 = vmatpush2.bf16.msra.mxu0 0
  %4649 = vmatprep.subr.bf16.mxu0 0
  %4650 = vmatpush2.bf16.msra.mxu0 0
  %4651 = vmatprep.subr.bf16.mxu0 0
  %4652 = vmatpush2.bf16.msra.mxu0 0
  %4653 = vmatprep.subr.bf16.mxu0 0
  %4654 = vmatpush2.bf16.msra.mxu0 0
  %4655 = vmatprep.subr.bf16.mxu0 0
  %4656 = vmatpush2.bf16.msra.mxu0 0
  %4657 = vmatprep.mubr.bf16.mxu0 0
  %4658 = vmatmul.mubr.bf16.gmra.mxu0 %v4541
  %v4659 = vpop.f32.mrf.mxu0
  %v4660 = vadd.f32 %v4578, %v4659
  %v4661 = vpop.f32.mrf.mxu0
  %v4662 = vadd.f32 %v4580, %v4661
  %v4663 = vpop.f32.mrf.mxu0
  %v4664 = vpop.f32.mrf.mxu0
  %4665 = vdwg.mxu0
  %4666 = vmatprep.subr.bf16.mxu0 %v1261
  %4667 = vmatpush1.bf16.msra.mxu0 %v1260
  %4668 = vmatprep.subr.bf16.mxu0 %v1257
  %4669 = vmatpush1.bf16.msra.mxu0 %v1256
  %4670 = vmatprep.subr.bf16.mxu0 %v1253
  %4671 = vmatpush1.bf16.msra.mxu0 %v1252
  %4672 = vmatprep.subr.bf16.mxu0 %v1249
  %4673 = vmatpush1.bf16.msra.mxu0 %v1248
  %4674 = vmatprep.subr.bf16.mxu0 %v1245
  %4675 = vmatpush1.bf16.msra.mxu0 %v1244
  %4676 = vmatprep.subr.bf16.mxu0 %v1241
  %4677 = vmatpush1.bf16.msra.mxu0 %v1240
  %4678 = vmatprep.subr.bf16.mxu0 %v1237
  %4679 = vmatpush1.bf16.msra.mxu0 %v1236
  %4680 = vmatprep.subr.bf16.mxu0 %v1233
  %4681 = vmatpush1.bf16.msra.mxu0 %v1232
  %4682 = vmatprep.subr.bf16.mxu0 0
  %4683 = vmatpush2.bf16.msra.mxu0 0
  %4684 = vmatprep.subr.bf16.mxu0 0
  %4685 = vmatpush2.bf16.msra.mxu0 0
  %4686 = vmatprep.subr.bf16.mxu0 0
  %4687 = vmatpush2.bf16.msra.mxu0 0
  %4688 = vmatprep.subr.bf16.mxu0 0
  %4689 = vmatpush2.bf16.msra.mxu0 0
  %4690 = vmatprep.subr.bf16.mxu0 0
  %4691 = vmatpush2.bf16.msra.mxu0 0
  %4692 = vmatprep.subr.bf16.mxu0 0
  %4693 = vmatpush2.bf16.msra.mxu0 0
  %4694 = vmatprep.subr.bf16.mxu0 0
  %4695 = vmatpush2.bf16.msra.mxu0 0
  %4696 = vmatprep.subr.bf16.mxu0 0
  %4697 = vmatpush2.bf16.msra.mxu0 0
  %4698 = vmatprep.mubr.bf16.mxu0 0
  %4699 = vmatmul.mubr.bf16.gmra.mxu0 %v4541
  %v4700 = vpop.f32.mrf.mxu0
  %v4701 = vadd.f32 %v4619, %v4700
  %v4702 = vpop.f32.mrf.mxu0
  %v4703 = vadd.f32 %v4621, %v4702
  %v4704 = vpop.f32.mrf.mxu0
  %v4705 = vpop.f32.mrf.mxu0
  %4706 = vdwg.mxu0
  %v4707 = vadd.f32 %v4660, %v1380
  %v4708 = vadd.f32 %v4662, %v1384
  %v4709 = vadd.f32 %v4701, %v1388
  %v4710 = vadd.f32 %v4703, %v1392
  %v4711 = vmul.f32 %v4707, 0.5
  %v4712 = vmul.f32 %v4708, 0.5
  %v4713 = vmul.f32 %v4709, 0.5
  %v4714 = vtanh.pop %v4711
  %v4715 = vtanh.pop %v4712
  %v4716 = vtanh.pop %v4713
  %v4717 = vmul.f32 %v4714, 0.5
  %v4718 = vmul.f32 %v4715, 0.5
  %v4719 = vmul.f32 %v4716, 0.5
  %v4720 = vadd.f32 %v4717, 0.5
  %v4721 = vadd.f32 %v4718, 0.5
  %v4722 = vadd.f32 %v4719, 0.5
  %v4723 = vtanh.pop %v4710
  %v4724 = vmul.f32 %v4721, %v4425
  %v4725 = vmul.f32 %v4720, %v4723
  %v4726 = vadd.f32 %v4724, %v4725
  %v4727 = vtanh.pop %v4726
  %v4728 = vmul.f32 %v4722, %v4727
  %s4729 = scalar_lea.vmem %s7, 88
  %4730 = vst [vmem:[%s4729] sm:$0xff] %v4728
  // Predicated region
  $region30: #{lstm_encoder_forward.1} parent=0 // pred_check
    _
  $region31: #{lstm_encoder_forward.1} parent=0 // pred_check_branch
    %4732 = sbr.rel (0) target = $region33
  $region32: #{lstm_encoder_forward.1} parent=0 // pred_region
    _
  $region33: #{lstm_encoder_forward.1} parent=0 // pred_fallthru
    _
  // Predicated region
  $region34: #{lstm_encoder_forward.1} parent=0 // pred_check
    _
  $region35: #{lstm_encoder_forward.1} parent=0 // pred_check_branch
    %4734 = sbr.rel (0) target = $region37
  $region36: #{lstm_encoder_forward.1} parent=0 // pred_region
    _
  $region37: #{lstm_encoder_forward.1} parent=0 // pred_fallthru
    _

</llo_original>
